<compile_context>
chip_gen: v7x
topology: tpu7x:2x2x1
jax: 0.10.0
libtpu: 0.0.40
codegen_flags: <defaults>
</compile_context>

<pallas_src>
import numpy as np
from typing import NamedTuple

import jax
import jax.numpy as jnp
from jax import lax
from jax.experimental import pallas as pl
from jax.experimental.pallas import tpu as pltpu

LEAKY_SLOPE = 0.01
KSIZE = 4
PAD = 1
LANE = 128


class LayerGeom(NamedTuple):
    c_in: int
    c_out: int
    stride: int
    h_in: int
    w_in: int
    h_out: int
    w_out: int
    has_bias: bool
    act: bool


def _ceil_to(x, m):
    return ((x + m - 1) // m) * m


def make_geometry(image_size=32, conv_dim=8, repeat_num=3):
    """Static layer geometry of the PyTorch Discriminator."""
    geom = []

    def add(cin, cout, stride, has_bias, act, h_in):
        h_out = (h_in + 2 * PAD - KSIZE) // stride + 1
        geom.append(LayerGeom(cin, cout, stride, h_in, h_in, h_out, h_out,
                              has_bias, act))
        return h_out

    h = image_size
    h = add(3, conv_dim, 2, True, True, h)
    cur = conv_dim
    for _ in range(1, repeat_num):
        h = add(cur, cur * 2, 2, True, True, h)
        cur *= 2
    h = add(cur, cur * 2, 1, True, True, h)
    cur *= 2
    add(cur, 1, 1, False, False, h)          # conv1: no bias, no activation
    return geom


def compute_lanes(geom):
    lanes_out = [_ceil_to(g.w_out * g.c_out, LANE) for g in geom]
    lanes_in = [_ceil_to(geom[0].w_in * geom[0].c_in, LANE)] + lanes_out[:-1]
    return lanes_in, lanes_out


# ----------------------------------------------------------------------------
# SpectralNorm (1 power iteration) -- plain-JAX parameter preprocessing.
# TODO(synk): PyTorch SpectralNorm keeps a persistent `u` buffer across steps;
# here u is re-drawn deterministically at init (forward-parity only).
# ----------------------------------------------------------------------------
def _l2norm(v, eps=1e-12):
    return v / (jnp.linalg.norm(v) + eps)


def spectral_norm_weight(w_oihw, key, n_iter=1):
    c_out = w_oihw.shape[0]
    w_mat = w_oihw.reshape(c_out, -1)
    u = _l2norm(jax.random.normal(key, (c_out,), jnp.float32))
    v = None
    for _ in range(n_iter):
        v = _l2norm(w_mat.T @ u)
        u = _l2norm(w_mat @ v)
    sigma = u @ (w_mat @ v)
    return w_oihw / sigma


def init_raw_params(key, geom):
    """Synthetic deterministic params matching the PyTorch layer shapes."""
    params = []
    keys = jax.random.split(key, 3 * len(geom))
    for i, g in enumerate(geom):
        w = 0.05 * jax.random.normal(
            keys[3 * i], (g.c_out, g.c_in, KSIZE, KSIZE), jnp.float32)
        w = spectral_norm_weight(w, keys[3 * i + 1])
        b = (0.05 * jax.random.normal(keys[3 * i + 2], (g.c_out,), jnp.float32)
             if g.has_bias else None)
        params.append((w, b))
    return params


# ----------------------------------------------------------------------------
# One-time kernel-parameter preparation (banded bf16 weights, tiled f32 bias
# rows, 0/1 row-selection matrices for the stride-2 layers).
# ----------------------------------------------------------------------------
def prepare_kernel_params(raw_params, geom, lanes_in, lanes_out):
    sel, wband, bias_rows = [], [], []
    for li, (g, (w, b)) in enumerate(zip(geom, raw_params)):
        w_np = np.asarray(w, dtype=np.float32)        # (c_out, c_in, 4, 4)
        band = np.zeros((KSIZE, lanes_in[li], lanes_out[li]), np.float32)
        for kh in range(KSIZE):
            for kw in range(KSIZE):
                blk = w_np[:, :, kh, kw].T            # (c_in, c_out)
                for ow in range(g.w_out):
                    wi = ow * g.stride + kw - PAD     # unpadded input column
                    if 0 <= wi < g.w_in:
                        band[kh,
                             wi * g.c_in:(wi + 1) * g.c_in,
                             ow * g.c_out:(ow + 1) * g.c_out] = blk
        wband.append(jnp.asarray(band, dtype=jnp.bfloat16))

        if g.stride == 2:
            hp = g.h_in + 2 * PAD
            s = np.zeros((KSIZE, g.h_out, hp), np.float32)
            oh = np.arange(g.h_out)
            for kh in range(KSIZE):
                s[kh, oh, kh + g.stride * oh] = 1.0   # padded-row selection
            sel.append(jnp.asarray(s, dtype=jnp.bfloat16))

        if g.has_bias:
            row = np.zeros((1, lanes_out[li]), np.float32)
            row[0, :g.w_out * g.c_out] = np.tile(np.asarray(b, np.float32),
                                                 g.w_out)
            bias_rows.append(jnp.asarray(row))
    return {"sel": sel, "wband": wband, "bias": bias_rows}


# ----------------------------------------------------------------------------
# Fused forward: single pallas_call over the batch.
# ----------------------------------------------------------------------------
def make_forward(geom, lanes_in, lanes_out):
    n_layers = len(geom)
    s2_layers = [i for i, g in enumerate(geom) if g.stride == 2]
    bias_layers = [i for i, g in enumerate(geom) if g.has_bias]
    n_s2, n_b = len(s2_layers), len(bias_layers)
    hp0 = geom[0].h_in + 2 * PAD
    l0 = lanes_in[0]
    ho_last = geom[-1].h_out
    l_last = lanes_out[-1]

    def kernel(*refs):
        x_ref = refs[0]
        sel_refs = dict(zip(s2_layers, refs[1:1 + n_s2]))
        w_refs = refs[1 + n_s2:1 + n_s2 + n_layers]
        b_refs = dict(zip(bias_layers,
                          refs[1 + n_s2 + n_layers:1 + n_s2 + n_layers + n_b]))
        o_ref = refs[1 + n_s2 + n_layers + n_b]
        scratch = refs[2 + n_s2 + n_layers + n_b:]

        in_ref = x_ref                                   # (Hp, lanes_in) f32
        for li, g in enumerate(geom):
            ho, lout = g.h_out, lanes_out[li]
            acc = jnp.zeros((ho, lout), jnp.float32)
            if g.stride == 2:
                a16 = in_ref[...].astype(jnp.bfloat16)   # full padded act
            for kh in range(KSIZE):
                if g.stride == 2:
                    # 0/1 selection matmul gathers rows kh, kh+2, ... (exact).
                    rows = jnp.dot(sel_refs[li][kh], a16,
                                   preferred_element_type=jnp.float32)
                    rows = rows.astype(jnp.bfloat16)
                else:
                    rows = in_ref[kh:kh + ho, :].astype(jnp.bfloat16)
                acc = acc + jnp.dot(rows, w_refs[li][kh],
                                    preferred_element_type=jnp.float32)
            if li in b_refs:
                acc = acc + b_refs[li][...]              # f32 epilogue
            if g.act:
                acc = jnp.where(acc >= 0.0, acc, LEAKY_SLOPE * acc)
            if li < n_layers - 1:
                s = scratch[li]
                s[...] = jnp.zeros_like(s)               # zero pad rows/lanes
                s[1:1 + ho, :] = acc                     # interior rows
                in_ref = s
            else:
                o_ref[...] = acc

    in_specs = [pl.BlockSpec((None, hp0, l0), lambda b: (b, 0, 0))]
    for li in s2_layers:
        g = geom[li]
        in_specs.append(
            pl.BlockSpec((KSIZE, g.h_out, g.h_in + 2 * PAD),
                         lambda b: (0, 0, 0)))
    for li in range(n_layers):
        in_specs.append(
            pl.BlockSpec((KSIZE, lanes_in[li], lanes_out[li]),
                         lambda b: (0, 0, 0)))
    for li in bias_layers:
        in_specs.append(pl.BlockSpec((1, lanes_out[li]), lambda b: (0, 0)))
    out_specs = pl.BlockSpec((None, ho_last, l_last), lambda b: (b, 0, 0))
    scratch_shapes = [
        pltpu.VMEM((geom[li].h_out + 2 * PAD, lanes_out[li]), jnp.float32)
        for li in range(n_layers - 1)
    ]

    def forward(x_nchw, kparams):
        n = x_nchw.shape[0]
        h, w, cin = geom[0].h_in, geom[0].w_in, geom[0].c_in
        x = jnp.transpose(x_nchw, (0, 2, 3, 1)).astype(jnp.float32)  # NHWC
        x = x.reshape(n, h, w * cin)             # (h, w*c) row layout
        x = jnp.pad(x, ((0, 0), (PAD, PAD), (0, l0 - w * cin)))
        out = pl.pallas_call(
            kernel,
            out_shape=jax.ShapeDtypeStruct((n, ho_last, l_last), jnp.float32),
            grid=(n,),
            in_specs=in_specs,
            out_specs=out_specs,
            scratch_shapes=scratch_shapes,
            compiler_params=pltpu.CompilerParams(
                dimension_semantics=("parallel",),
                vmem_limit_bytes=32 * 1024 * 1024),
        )(x, *kparams["sel"], *kparams["wband"], *kparams["bias"])
        g_last = geom[-1]
        res = out[:, :, :g_last.w_out * g_last.c_out]
        res = res.reshape(n, g_last.h_out, g_last.w_out, g_last.c_out)
        res = jnp.transpose(res, (0, 3, 1, 2))   # NCHW, C=1
        return jnp.squeeze(res)                  # matches out_makeup.squeeze()

    return forward


# ----------------------------------------------------------------------------
# Pure-JAX reference (bf16 conv inputs, f32 accumulation -- mirrors kernel).
# ----------------------------------------------------------------------------
def discriminator_reference(x_nchw, raw_params, geom):
    x = jnp.transpose(x_nchw, (0, 2, 3, 1)).astype(jnp.float32)
    for g, (w, b) in zip(geom, raw_params):
        lhs = x.astype(jnp.bfloat16)
        rhs = jnp.transpose(w, (2, 3, 1, 0)).astype(jnp.bfloat16)
        y = lax.conv_general_dilated(
            lhs, rhs, window_strides=(g.stride, g.stride),
            padding=[(PAD, PAD), (PAD, PAD)],
            dimension_numbers=("NHWC", "HWIO", "NHWC"),
            preferred_element_type=jnp.float32)
        if b is not None:
            y = y + b
        if g.act:
            y = jnp.where(y >= 0.0, y, LEAKY_SLOPE * y)
        x = y
    return jnp.squeeze(jnp.transpose(x, (0, 3, 1, 2)))


# ----------------------------------------------------------------------------
if __name__ == "__main__":
    key = jax.random.PRNGKey(0)
    kx, kp = jax.random.split(key)

    IMAGE_SIZE, CONV_DIM, REPEAT_NUM, BATCH = 32, 8, 3, 2
    geom = make_geometry(IMAGE_SIZE, CONV_DIM, REPEAT_NUM)
    lanes_in, lanes_out = compute_lanes(geom)

    raw_params = init_raw_params(kp, geom)
    kparams = prepare_kernel_params(raw_params, geom, lanes_in, lanes_out)
    forward = make_forward(geom, lanes_in, lanes_out)

    x = jax.random.normal(kx, (BATCH, 3, IMAGE_SIZE, IMAGE_SIZE), jnp.float32)

    out = jax.block_until_ready(jax.jit(forward)(x, kparams))
    ref = jax.block_until_ready(discriminator_reference(x, raw_params, geom))

    assert out.shape == ref.shape == (BATCH, 2, 2), (out.shape, ref.shape)
    max_err = float(jnp.max(jnp.abs(out - ref)))
    assert jnp.allclose(out, ref, rtol=1e-2, atol=1e-3), max_err
    print("KERNEL_OK")
</pallas_src>

<mosaic_0001>
module attributes {stable_mosaic.version = 11 : i64} {
  func.func @kernel(%arg0: i32, %arg1: memref<1x34x128xf32, #tpu.memory_space<vmem>>, %arg2: memref<4x16x34xbf16, #tpu.memory_space<vmem>>, %arg3: memref<4x8x18xbf16, #tpu.memory_space<vmem>>, %arg4: memref<4x4x10xbf16, #tpu.memory_space<vmem>>, %arg5: memref<4x128x128xbf16, #tpu.memory_space<vmem>>, %arg6: memref<4x128x128xbf16, #tpu.memory_space<vmem>>, %arg7: memref<4x128x128xbf16, #tpu.memory_space<vmem>>, %arg8: memref<4x128x256xbf16, #tpu.memory_space<vmem>>, %arg9: memref<4x256x128xbf16, #tpu.memory_space<vmem>>, %arg10: memref<1x128xf32, #tpu.memory_space<vmem>>, %arg11: memref<1x128xf32, #tpu.memory_space<vmem>>, %arg12: memref<1x128xf32, #tpu.memory_space<vmem>>, %arg13: memref<1x256xf32, #tpu.memory_space<vmem>>, %arg14: memref<1x2x128xf32, #tpu.memory_space<vmem>>, %arg15: memref<18x128xf32, #tpu.memory_space<vmem>>, %arg16: memref<10x128xf32, #tpu.memory_space<vmem>>, %arg17: memref<6x128xf32, #tpu.memory_space<vmem>>, %arg18: memref<5x256xf32, #tpu.memory_space<vmem>>) attributes {dimension_semantics = [#tpu.dimension_semantics<parallel>], iteration_bounds = array<i64: 2>, scalar_prefetch = 0 : i64, scratch_operands = 4 : i64, tpu.core_type = #tpu.core_type<tc>, window_params = [{transform_indices = @transform_0, window_bounds = array<i64: 1, 34, 128>}, {pipeline_mode = #tpu.pipeline_mode<synchronous>, transform_indices = @transform_1, window_bounds = array<i64: 4, 16, 34>}, {pipeline_mode = #tpu.pipeline_mode<synchronous>, transform_indices = @transform_2, window_bounds = array<i64: 4, 8, 18>}, {pipeline_mode = #tpu.pipeline_mode<synchronous>, transform_indices = @transform_3, window_bounds = array<i64: 4, 4, 10>}, {pipeline_mode = #tpu.pipeline_mode<synchronous>, transform_indices = @transform_4, window_bounds = array<i64: 4, 128, 128>}, {pipeline_mode = #tpu.pipeline_mode<synchronous>, transform_indices = @transform_5, window_bounds = array<i64: 4, 128, 128>}, {pipeline_mode = #tpu.pipeline_mode<synchronous>, transform_indices = @transform_6, window_bounds = array<i64: 4, 128, 128>}, {pipeline_mode = #tpu.pipeline_mode<synchronous>, transform_indices = @transform_7, window_bounds = array<i64: 4, 128, 256>}, {pipeline_mode = #tpu.pipeline_mode<synchronous>, transform_indices = @transform_8, window_bounds = array<i64: 4, 256, 128>}, {pipeline_mode = #tpu.pipeline_mode<synchronous>, transform_indices = @transform_9, window_bounds = array<i64: 1, 128>}, {pipeline_mode = #tpu.pipeline_mode<synchronous>, transform_indices = @transform_10, window_bounds = array<i64: 1, 128>}, {pipeline_mode = #tpu.pipeline_mode<synchronous>, transform_indices = @transform_11, window_bounds = array<i64: 1, 128>}, {pipeline_mode = #tpu.pipeline_mode<synchronous>, transform_indices = @transform_12, window_bounds = array<i64: 1, 256>}, {transform_indices = @transform_13, window_bounds = array<i64: 1, 2, 128>}]} {
    %cst = arith.constant 0.000000e+00 : f32
    %0 = vector.broadcast %cst : f32 to vector<16x128xf32>
    %c0 = arith.constant 0 : index
    %c0_0 = arith.constant 0 : index
    %c0_1 = arith.constant 0 : index
    %1 = vector.load %arg1[%c0, %c0_0, %c0_1] : memref<1x34x128xf32, #tpu.memory_space<vmem>>, vector<1x34x128xf32>
    %2 = vector.shape_cast %1 : vector<1x34x128xf32> to vector<34x128xf32>
    %3 = arith.truncf %2 : vector<34x128xf32> to vector<34x128xbf16>
    %c0_2 = arith.constant 0 : index
    %c0_3 = arith.constant 0 : index
    %c0_4 = arith.constant 0 : index
    %4 = vector.load %arg2[%c0_2, %c0_3, %c0_4] : memref<4x16x34xbf16, #tpu.memory_space<vmem>>, vector<1x16x34xbf16>
    %5 = vector.shape_cast %4 : vector<1x16x34xbf16> to vector<16x34xbf16>
    %cst_5 = arith.constant dense<0.000000e+00> : vector<16x128xf32>
    %6 = tpu.matmul %5, %3, %cst_5 {dimension_numbers = #tpu.dot_dimension_numbers<[1], [0], [0], [1], [0, 0, 1, 1], [], []>} : vector<16x34xbf16>, vector<34x128xbf16>, vector<16x128xf32> -> vector<16x128xf32>
    %7 = arith.truncf %6 : vector<16x128xf32> to vector<16x128xbf16>
    %c0_6 = arith.constant 0 : index
    %c0_7 = arith.constant 0 : index
    %c0_8 = arith.constant 0 : index
    %8 = vector.load %arg5[%c0_6, %c0_7, %c0_8] : memref<4x128x128xbf16, #tpu.memory_space<vmem>>, vector<1x128x128xbf16>
    %9 = vector.shape_cast %8 : vector<1x128x128xbf16> to vector<128x128xbf16>
    %cst_9 = arith.constant dense<0.000000e+00> : vector<16x128xf32>
    %10 = tpu.matmul %7, %9, %cst_9 {dimension_numbers = #tpu.dot_dimension_numbers<[1], [0], [0], [1], [0, 0, 1, 1], [], []>} : vector<16x128xbf16>, vector<128x128xbf16>, vector<16x128xf32> -> vector<16x128xf32>
    %11 = arith.addf %0, %10 : vector<16x128xf32>
    %c1 = arith.constant 1 : index
    %c0_10 = arith.constant 0 : index
    %c0_11 = arith.constant 0 : index
    %12 = vector.load %arg2[%c1, %c0_10, %c0_11] : memref<4x16x34xbf16, #tpu.memory_space<vmem>>, vector<1x16x34xbf16>
    %13 = vector.shape_cast %12 : vector<1x16x34xbf16> to vector<16x34xbf16>
    %cst_12 = arith.constant dense<0.000000e+00> : vector<16x128xf32>
    %14 = tpu.matmul %13, %3, %cst_12 {dimension_numbers = #tpu.dot_dimension_numbers<[1], [0], [0], [1], [0, 0, 1, 1], [], []>} : vector<16x34xbf16>, vector<34x128xbf16>, vector<16x128xf32> -> vector<16x128xf32>
    %15 = arith.truncf %14 : vector<16x128xf32> to vector<16x128xbf16>
    %c1_13 = arith.constant 1 : index
    %c0_14 = arith.constant 0 : index
    %c0_15 = arith.constant 0 : index
    %16 = vector.load %arg5[%c1_13, %c0_14, %c0_15] : memref<4x128x128xbf16, #tpu.memory_space<vmem>>, vector<1x128x128xbf16>
    %17 = vector.shape_cast %16 : vector<1x128x128xbf16> to vector<128x128xbf16>
    %cst_16 = arith.constant dense<0.000000e+00> : vector<16x128xf32>
    %18 = tpu.matmul %15, %17, %cst_16 {dimension_numbers = #tpu.dot_dimension_numbers<[1], [0], [0], [1], [0, 0, 1, 1], [], []>} : vector<16x128xbf16>, vector<128x128xbf16>, vector<16x128xf32> -> vector<16x128xf32>
    %19 = arith.addf %11, %18 : vector<16x128xf32>
    %c2 = arith.constant 2 : index
    %c0_17 = arith.constant 0 : index
    %c0_18 = arith.constant 0 : index
    %20 = vector.load %arg2[%c2, %c0_17, %c0_18] : memref<4x16x34xbf16, #tpu.memory_space<vmem>>, vector<1x16x34xbf16>
    %21 = vector.shape_cast %20 : vector<1x16x34xbf16> to vector<16x34xbf16>
    %cst_19 = arith.constant dense<0.000000e+00> : vector<16x128xf32>
    %22 = tpu.matmul %21, %3, %cst_19 {dimension_numbers = #tpu.dot_dimension_numbers<[1], [0], [0], [1], [0, 0, 1, 1], [], []>} : vector<16x34xbf16>, vector<34x128xbf16>, vector<16x128xf32> -> vector<16x128xf32>
    %23 = arith.truncf %22 : vector<16x128xf32> to vector<16x128xbf16>
    %c2_20 = arith.constant 2 : index
    %c0_21 = arith.constant 0 : index
    %c0_22 = arith.constant 0 : index
    %24 = vector.load %arg5[%c2_20, %c0_21, %c0_22] : memref<4x128x128xbf16, #tpu.memory_space<vmem>>, vector<1x128x128xbf16>
    %25 = vector.shape_cast %24 : vector<1x128x128xbf16> to vector<128x128xbf16>
    %cst_23 = arith.constant dense<0.000000e+00> : vector<16x128xf32>
    %26 = tpu.matmul %23, %25, %cst_23 {dimension_numbers = #tpu.dot_dimension_numbers<[1], [0], [0], [1], [0, 0, 1, 1], [], []>} : vector<16x128xbf16>, vector<128x128xbf16>, vector<16x128xf32> -> vector<16x128xf32>
    %27 = arith.addf %19, %26 : vector<16x128xf32>
    %c3 = arith.constant 3 : index
    %c0_24 = arith.constant 0 : index
    %c0_25 = arith.constant 0 : index
    %28 = vector.load %arg2[%c3, %c0_24, %c0_25] : memref<4x16x34xbf16, #tpu.memory_space<vmem>>, vector<1x16x34xbf16>
    %29 = vector.shape_cast %28 : vector<1x16x34xbf16> to vector<16x34xbf16>
    %cst_26 = arith.constant dense<0.000000e+00> : vector<16x128xf32>
    %30 = tpu.matmul %29, %3, %cst_26 {dimension_numbers = #tpu.dot_dimension_numbers<[1], [0], [0], [1], [0, 0, 1, 1], [], []>} : vector<16x34xbf16>, vector<34x128xbf16>, vector<16x128xf32> -> vector<16x128xf32>
    %31 = arith.truncf %30 : vector<16x128xf32> to vector<16x128xbf16>
    %c3_27 = arith.constant 3 : index
    %c0_28 = arith.constant 0 : index
    %c0_29 = arith.constant 0 : index
    %32 = vector.load %arg5[%c3_27, %c0_28, %c0_29] : memref<4x128x128xbf16, #tpu.memory_space<vmem>>, vector<1x128x128xbf16>
    %33 = vector.shape_cast %32 : vector<1x128x128xbf16> to vector<128x128xbf16>
    %cst_30 = arith.constant dense<0.000000e+00> : vector<16x128xf32>
    %34 = tpu.matmul %31, %33, %cst_30 {dimension_numbers = #tpu.dot_dimension_numbers<[1], [0], [0], [1], [0, 0, 1, 1], [], []>} : vector<16x128xbf16>, vector<128x128xbf16>, vector<16x128xf32> -> vector<16x128xf32>
    %35 = arith.addf %27, %34 : vector<16x128xf32>
    %c0_31 = arith.constant 0 : index
    %c0_32 = arith.constant 0 : index
    %36 = vector.load %arg10[%c0_31, %c0_32] : memref<1x128xf32, #tpu.memory_space<vmem>>, vector<1x128xf32>
    %37 = vector.broadcast %36 : vector<1x128xf32> to vector<16x128xf32>
    %38 = arith.addf %35, %37 : vector<16x128xf32>
    %cst_33 = arith.constant 0.000000e+00 : f32
    %39 = vector.broadcast %cst_33 : f32 to vector<16x128xf32>
    %40 = arith.cmpf oge, %38, %39 : vector<16x128xf32>
    %cst_34 = arith.constant 0.00999999977 : f32
    %41 = vector.broadcast %cst_34 : f32 to vector<16x128xf32>
    %42 = arith.mulf %41, %38 : vector<16x128xf32>
    %43 = arith.select %40, %38, %42 : vector<16x128xi1>, vector<16x128xf32>
    %cst_35 = arith.constant 0.000000e+00 : f32
    %44 = vector.broadcast %cst_35 : f32 to vector<18x128xf32>
    %c0_36 = arith.constant 0 : index
    %c0_37 = arith.constant 0 : index
    %45 = vector.load %arg15[%c0_36, %c0_37] : memref<18x128xf32, #tpu.memory_space<vmem>>, vector<18x128xf32>
    tpu.vector_store %arg15[%c0_36, %c0_37], %44 {strides = array<i32>} : memref<18x128xf32, #tpu.memory_space<vmem>>, vector<18x128xf32>,
    %c1_38 = arith.constant 1 : index
    %c0_39 = arith.constant 0 : index
    %46 = vector.load %arg15[%c1_38, %c0_39] : memref<18x128xf32, #tpu.memory_space<vmem>>, vector<16x128xf32>
    tpu.vector_store %arg15[%c1_38, %c0_39], %43 {strides = array<i32>} : memref<18x128xf32, #tpu.memory_space<vmem>>, vector<16x128xf32>,
    %cst_40 = arith.constant 0.000000e+00 : f32
    %47 = vector.broadcast %cst_40 : f32 to vector<8x128xf32>
    %c0_41 = arith.constant 0 : index
    %c0_42 = arith.constant 0 : index
    %48 = vector.load %arg15[%c0_41, %c0_42] : memref<18x128xf32, #tpu.memory_space<vmem>>, vector<18x128xf32>
    %49 = arith.truncf %48 : vector<18x128xf32> to vector<18x128xbf16>
    %c0_43 = arith.constant 0 : index
    %c0_44 = arith.constant 0 : index
    %c0_45 = arith.constant 0 : index
    %50 = vector.load %arg3[%c0_43, %c0_44, %c0_45] : memref<4x8x18xbf16, #tpu.memory_space<vmem>>, vector<1x8x18xbf16>
    %51 = vector.shape_cast %50 : vector<1x8x18xbf16> to vector<8x18xbf16>
    %cst_46 = arith.constant dense<0.000000e+00> : vector<8x128xf32>
    %52 = tpu.matmul %51, %49, %cst_46 {dimension_numbers = #tpu.dot_dimension_numbers<[1], [0], [0], [1], [0, 0, 1, 1], [], []>} : vector<8x18xbf16>, vector<18x128xbf16>, vector<8x128xf32> -> vector<8x128xf32>
    %53 = arith.truncf %52 : vector<8x128xf32> to vector<8x128xbf16>
    %c0_47 = arith.constant 0 : index
    %c0_48 = arith.constant 0 : index
    %c0_49 = arith.constant 0 : index
    %54 = vector.load %arg6[%c0_47, %c0_48, %c0_49] : memref<4x128x128xbf16, #tpu.memory_space<vmem>>, vector<1x128x128xbf16>
    %55 = vector.shape_cast %54 : vector<1x128x128xbf16> to vector<128x128xbf16>
    %cst_50 = arith.constant dense<0.000000e+00> : vector<8x128xf32>
    %56 = tpu.matmul %53, %55, %cst_50 {dimension_numbers = #tpu.dot_dimension_numbers<[1], [0], [0], [1], [0, 0, 1, 1], [], []>} : vector<8x128xbf16>, vector<128x128xbf16>, vector<8x128xf32> -> vector<8x128xf32>
    %57 = arith.addf %47, %56 : vector<8x128xf32>
    %c1_51 = arith.constant 1 : index
    %c0_52 = arith.constant 0 : index
    %c0_53 = arith.constant 0 : index
    %58 = vector.load %arg3[%c1_51, %c0_52, %c0_53] : memref<4x8x18xbf16, #tpu.memory_space<vmem>>, vector<1x8x18xbf16>
    %59 = vector.shape_cast %58 : vector<1x8x18xbf16> to vector<8x18xbf16>
    %cst_54 = arith.constant dense<0.000000e+00> : vector<8x128xf32>
    %60 = tpu.matmul %59, %49, %cst_54 {dimension_numbers = #tpu.dot_dimension_numbers<[1], [0], [0], [1], [0, 0, 1, 1], [], []>} : vector<8x18xbf16>, vector<18x128xbf16>, vector<8x128xf32> -> vector<8x128xf32>
    %61 = arith.truncf %60 : vector<8x128xf32> to vector<8x128xbf16>
    %c1_55 = arith.constant 1 : index
    %c0_56 = arith.constant 0 : index
    %c0_57 = arith.constant 0 : index
    %62 = vector.load %arg6[%c1_55, %c0_56, %c0_57] : memref<4x128x128xbf16, #tpu.memory_space<vmem>>, vector<1x128x128xbf16>
    %63 = vector.shape_cast %62 : vector<1x128x128xbf16> to vector<128x128xbf16>
    %cst_58 = arith.constant dense<0.000000e+00> : vector<8x128xf32>
    %64 = tpu.matmul %61, %63, %cst_58 {dimension_numbers = #tpu.dot_dimension_numbers<[1], [0], [0], [1], [0, 0, 1, 1], [], []>} : vector<8x128xbf16>, vector<128x128xbf16>, vector<8x128xf32> -> vector<8x128xf32>
    %65 = arith.addf %57, %64 : vector<8x128xf32>
    %c2_59 = arith.constant 2 : index
    %c0_60 = arith.constant 0 : index
    %c0_61 = arith.constant 0 : index
    %66 = vector.load %arg3[%c2_59, %c0_60, %c0_61] : memref<4x8x18xbf16, #tpu.memory_space<vmem>>, vector<1x8x18xbf16>
    %67 = vector.shape_cast %66 : vector<1x8x18xbf16> to vector<8x18xbf16>
    %cst_62 = arith.constant dense<0.000000e+00> : vector<8x128xf32>
    %68 = tpu.matmul %67, %49, %cst_62 {dimension_numbers = #tpu.dot_dimension_numbers<[1], [0], [0], [1], [0, 0, 1, 1], [], []>} : vector<8x18xbf16>, vector<18x128xbf16>, vector<8x128xf32> -> vector<8x128xf32>
    %69 = arith.truncf %68 : vector<8x128xf32> to vector<8x128xbf16>
    %c2_63 = arith.constant 2 : index
    %c0_64 = arith.constant 0 : index
    %c0_65 = arith.constant 0 : index
    %70 = vector.load %arg6[%c2_63, %c0_64, %c0_65] : memref<4x128x128xbf16, #tpu.memory_space<vmem>>, vector<1x128x128xbf16>
    %71 = vector.shape_cast %70 : vector<1x128x128xbf16> to vector<128x128xbf16>
    %cst_66 = arith.constant dense<0.000000e+00> : vector<8x128xf32>
    %72 = tpu.matmul %69, %71, %cst_66 {dimension_numbers = #tpu.dot_dimension_numbers<[1], [0], [0], [1], [0, 0, 1, 1], [], []>} : vector<8x128xbf16>, vector<128x128xbf16>, vector<8x128xf32> -> vector<8x128xf32>
    %73 = arith.addf %65, %72 : vector<8x128xf32>
    %c3_67 = arith.constant 3 : index
    %c0_68 = arith.constant 0 : index
    %c0_69 = arith.constant 0 : index
    %74 = vector.load %arg3[%c3_67, %c0_68, %c0_69] : memref<4x8x18xbf16, #tpu.memory_space<vmem>>, vector<1x8x18xbf16>
    %75 = vector.shape_cast %74 : vector<1x8x18xbf16> to vector<8x18xbf16>
    %cst_70 = arith.constant dense<0.000000e+00> : vector<8x128xf32>
    %76 = tpu.matmul %75, %49, %cst_70 {dimension_numbers = #tpu.dot_dimension_numbers<[1], [0], [0], [1], [0, 0, 1, 1], [], []>} : vector<8x18xbf16>, vector<18x128xbf16>, vector<8x128xf32> -> vector<8x128xf32>
    %77 = arith.truncf %76 : vector<8x128xf32> to vector<8x128xbf16>
    %c3_71 = arith.constant 3 : index
    %c0_72 = arith.constant 0 : index
    %c0_73 = arith.constant 0 : index
    %78 = vector.load %arg6[%c3_71, %c0_72, %c0_73] : memref<4x128x128xbf16, #tpu.memory_space<vmem>>, vector<1x128x128xbf16>
    %79 = vector.shape_cast %78 : vector<1x128x128xbf16> to vector<128x128xbf16>
    %cst_74 = arith.constant dense<0.000000e+00> : vector<8x128xf32>
    %80 = tpu.matmul %77, %79, %cst_74 {dimension_numbers = #tpu.dot_dimension_numbers<[1], [0], [0], [1], [0, 0, 1, 1], [], []>} : vector<8x128xbf16>, vector<128x128xbf16>, vector<8x128xf32> -> vector<8x128xf32>
    %81 = arith.addf %73, %80 : vector<8x128xf32>
    %c0_75 = arith.constant 0 : index
    %c0_76 = arith.constant 0 : index
    %82 = vector.load %arg11[%c0_75, %c0_76] : memref<1x128xf32, #tpu.memory_space<vmem>>, vector<1x128xf32>
    %83 = vector.broadcast %82 : vector<1x128xf32> to vector<8x128xf32>
    %84 = arith.addf %81, %83 : vector<8x128xf32>
    %cst_77 = arith.constant 0.000000e+00 : f32
    %85 = vector.broadcast %cst_77 : f32 to vector<8x128xf32>
    %86 = arith.cmpf oge, %84, %85 : vector<8x128xf32>
    %cst_78 = arith.constant 0.00999999977 : f32
    %87 = vector.broadcast %cst_78 : f32 to vector<8x128xf32>
    %88 = arith.mulf %87, %84 : vector<8x128xf32>
    %89 = arith.select %86, %84, %88 : vector<8x128xi1>, vector<8x128xf32>
    %cst_79 = arith.constant 0.000000e+00 : f32
    %90 = vector.broadcast %cst_79 : f32 to vector<10x128xf32>
    %c0_80 = arith.constant 0 : index
    %c0_81 = arith.constant 0 : index
    %91 = vector.load %arg16[%c0_80, %c0_81] : memref<10x128xf32, #tpu.memory_space<vmem>>, vector<10x128xf32>
    tpu.vector_store %arg16[%c0_80, %c0_81], %90 {strides = array<i32>} : memref<10x128xf32, #tpu.memory_space<vmem>>, vector<10x128xf32>,
    %c1_82 = arith.constant 1 : index
    %c0_83 = arith.constant 0 : index
    %92 = vector.load %arg16[%c1_82, %c0_83] : memref<10x128xf32, #tpu.memory_space<vmem>>, vector<8x128xf32>
    tpu.vector_store %arg16[%c1_82, %c0_83], %89 {strides = array<i32>} : memref<10x128xf32, #tpu.memory_space<vmem>>, vector<8x128xf32>,
    %cst_84 = arith.constant 0.000000e+00 : f32
    %93 = vector.broadcast %cst_84 : f32 to vector<4x128xf32>
    %c0_85 = arith.constant 0 : index
    %c0_86 = arith.constant 0 : index
    %94 = vector.load %arg16[%c0_85, %c0_86] : memref<10x128xf32, #tpu.memory_space<vmem>>, vector<10x128xf32>
    %95 = arith.truncf %94 : vector<10x128xf32> to vector<10x128xbf16>
    %c0_87 = arith.constant 0 : index
    %c0_88 = arith.constant 0 : index
    %c0_89 = arith.constant 0 : index
    %96 = vector.load %arg4[%c0_87, %c0_88, %c0_89] : memref<4x4x10xbf16, #tpu.memory_space<vmem>>, vector<1x4x10xbf16>
    %97 = vector.shape_cast %96 : vector<1x4x10xbf16> to vector<4x10xbf16>
    %cst_90 = arith.constant dense<0.000000e+00> : vector<4x128xf32>
    %98 = tpu.matmul %97, %95, %cst_90 {dimension_numbers = #tpu.dot_dimension_numbers<[1], [0], [0], [1], [0, 0, 1, 1], [], []>} : vector<4x10xbf16>, vector<10x128xbf16>, vector<4x128xf32> -> vector<4x128xf32>
    %99 = arith.truncf %98 : vector<4x128xf32> to vector<4x128xbf16>
    %c0_91 = arith.constant 0 : index
    %c0_92 = arith.constant 0 : index
    %c0_93 = arith.constant 0 : index
    %100 = vector.load %arg7[%c0_91, %c0_92, %c0_93] : memref<4x128x128xbf16, #tpu.memory_space<vmem>>, vector<1x128x128xbf16>
    %101 = vector.shape_cast %100 : vector<1x128x128xbf16> to vector<128x128xbf16>
    %cst_94 = arith.constant dense<0.000000e+00> : vector<4x128xf32>
    %102 = tpu.matmul %99, %101, %cst_94 {dimension_numbers = #tpu.dot_dimension_numbers<[1], [0], [0], [1], [0, 0, 1, 1], [], []>} : vector<4x128xbf16>, vector<128x128xbf16>, vector<4x128xf32> -> vector<4x128xf32>
    %103 = arith.addf %93, %102 : vector<4x128xf32>
    %c1_95 = arith.constant 1 : index
    %c0_96 = arith.constant 0 : index
    %c0_97 = arith.constant 0 : index
    %104 = vector.load %arg4[%c1_95, %c0_96, %c0_97] : memref<4x4x10xbf16, #tpu.memory_space<vmem>>, vector<1x4x10xbf16>
    %105 = vector.shape_cast %104 : vector<1x4x10xbf16> to vector<4x10xbf16>
    %cst_98 = arith.constant dense<0.000000e+00> : vector<4x128xf32>
    %106 = tpu.matmul %105, %95, %cst_98 {dimension_numbers = #tpu.dot_dimension_numbers<[1], [0], [0], [1], [0, 0, 1, 1], [], []>} : vector<4x10xbf16>, vector<10x128xbf16>, vector<4x128xf32> -> vector<4x128xf32>
    %107 = arith.truncf %106 : vector<4x128xf32> to vector<4x128xbf16>
    %c1_99 = arith.constant 1 : index
    %c0_100 = arith.constant 0 : index
    %c0_101 = arith.constant 0 : index
    %108 = vector.load %arg7[%c1_99, %c0_100, %c0_101] : memref<4x128x128xbf16, #tpu.memory_space<vmem>>, vector<1x128x128xbf16>
    %109 = vector.shape_cast %108 : vector<1x128x128xbf16> to vector<128x128xbf16>
    %cst_102 = arith.constant dense<0.000000e+00> : vector<4x128xf32>
    %110 = tpu.matmul %107, %109, %cst_102 {dimension_numbers = #tpu.dot_dimension_numbers<[1], [0], [0], [1], [0, 0, 1, 1], [], []>} : vector<4x128xbf16>, vector<128x128xbf16>, vector<4x128xf32> -> vector<4x128xf32>
    %111 = arith.addf %103, %110 : vector<4x128xf32>
    %c2_103 = arith.constant 2 : index
    %c0_104 = arith.constant 0 : index
    %c0_105 = arith.constant 0 : index
    %112 = vector.load %arg4[%c2_103, %c0_104, %c0_105] : memref<4x4x10xbf16, #tpu.memory_space<vmem>>, vector<1x4x10xbf16>
    %113 = vector.shape_cast %112 : vector<1x4x10xbf16> to vector<4x10xbf16>
    %cst_106 = arith.constant dense<0.000000e+00> : vector<4x128xf32>
    %114 = tpu.matmul %113, %95, %cst_106 {dimension_numbers = #tpu.dot_dimension_numbers<[1], [0], [0], [1], [0, 0, 1, 1], [], []>} : vector<4x10xbf16>, vector<10x128xbf16>, vector<4x128xf32> -> vector<4x128xf32>
    %115 = arith.truncf %114 : vector<4x128xf32> to vector<4x128xbf16>
    %c2_107 = arith.constant 2 : index
    %c0_108 = arith.constant 0 : index
    %c0_109 = arith.constant 0 : index
    %116 = vector.load %arg7[%c2_107, %c0_108, %c0_109] : memref<4x128x128xbf16, #tpu.memory_space<vmem>>, vector<1x128x128xbf16>
    %117 = vector.shape_cast %116 : vector<1x128x128xbf16> to vector<128x128xbf16>
    %cst_110 = arith.constant dense<0.000000e+00> : vector<4x128xf32>
    %118 = tpu.matmul %115, %117, %cst_110 {dimension_numbers = #tpu.dot_dimension_numbers<[1], [0], [0], [1], [0, 0, 1, 1], [], []>} : vector<4x128xbf16>, vector<128x128xbf16>, vector<4x128xf32> -> vector<4x128xf32>
    %119 = arith.addf %111, %118 : vector<4x128xf32>
    %c3_111 = arith.constant 3 : index
    %c0_112 = arith.constant 0 : index
    %c0_113 = arith.constant 0 : index
    %120 = vector.load %arg4[%c3_111, %c0_112, %c0_113] : memref<4x4x10xbf16, #tpu.memory_space<vmem>>, vector<1x4x10xbf16>
    %121 = vector.shape_cast %120 : vector<1x4x10xbf16> to vector<4x10xbf16>
    %cst_114 = arith.constant dense<0.000000e+00> : vector<4x128xf32>
    %122 = tpu.matmul %121, %95, %cst_114 {dimension_numbers = #tpu.dot_dimension_numbers<[1], [0], [0], [1], [0, 0, 1, 1], [], []>} : vector<4x10xbf16>, vector<10x128xbf16>, vector<4x128xf32> -> vector<4x128xf32>
    %123 = arith.truncf %122 : vector<4x128xf32> to vector<4x128xbf16>
    %c3_115 = arith.constant 3 : index
    %c0_116 = arith.constant 0 : index
    %c0_117 = arith.constant 0 : index
    %124 = vector.load %arg7[%c3_115, %c0_116, %c0_117] : memref<4x128x128xbf16, #tpu.memory_space<vmem>>, vector<1x128x128xbf16>
    %125 = vector.shape_cast %124 : vector<1x128x128xbf16> to vector<128x128xbf16>
    %cst_118 = arith.constant dense<0.000000e+00> : vector<4x128xf32>
    %126 = tpu.matmul %123, %125, %cst_118 {dimension_numbers = #tpu.dot_dimension_numbers<[1], [0], [0], [1], [0, 0, 1, 1], [], []>} : vector<4x128xbf16>, vector<128x128xbf16>, vector<4x128xf32> -> vector<4x128xf32>
    %127 = arith.addf %119, %126 : vector<4x128xf32>
    %c0_119 = arith.constant 0 : index
    %c0_120 = arith.constant 0 : index
    %128 = vector.load %arg12[%c0_119, %c0_120] : memref<1x128xf32, #tpu.memory_space<vmem>>, vector<1x128xf32>
    %129 = vector.broadcast %128 : vector<1x128xf32> to vector<4x128xf32>
    %130 = arith.addf %127, %129 : vector<4x128xf32>
    %cst_121 = arith.constant 0.000000e+00 : f32
    %131 = vector.broadcast %cst_121 : f32 to vector<4x128xf32>
    %132 = arith.cmpf oge, %130, %131 : vector<4x128xf32>
    %cst_122 = arith.constant 0.00999999977 : f32
    %133 = vector.broadcast %cst_122 : f32 to vector<4x128xf32>
    %134 = arith.mulf %133, %130 : vector<4x128xf32>
    %135 = arith.select %132, %130, %134 : vector<4x128xi1>, vector<4x128xf32>
    %cst_123 = arith.constant 0.000000e+00 : f32
    %136 = vector.broadcast %cst_123 : f32 to vector<6x128xf32>
    %c0_124 = arith.constant 0 : index
    %c0_125 = arith.constant 0 : index
    %137 = vector.load %arg17[%c0_124, %c0_125] : memref<6x128xf32, #tpu.memory_space<vmem>>, vector<6x128xf32>
    tpu.vector_store %arg17[%c0_124, %c0_125], %136 {strides = array<i32>} : memref<6x128xf32, #tpu.memory_space<vmem>>, vector<6x128xf32>,
    %c1_126 = arith.constant 1 : index
    %c0_127 = arith.constant 0 : index
    %138 = vector.load %arg17[%c1_126, %c0_127] : memref<6x128xf32, #tpu.memory_space<vmem>>, vector<4x128xf32>
    tpu.vector_store %arg17[%c1_126, %c0_127], %135 {strides = array<i32>} : memref<6x128xf32, #tpu.memory_space<vmem>>, vector<4x128xf32>,
    %cst_128 = arith.constant 0.000000e+00 : f32
    %139 = vector.broadcast %cst_128 : f32 to vector<3x256xf32>
    %c0_129 = arith.constant 0 : index
    %c0_130 = arith.constant 0 : index
    %140 = vector.load %arg17[%c0_129, %c0_130] : memref<6x128xf32, #tpu.memory_space<vmem>>, vector<3x128xf32>
    %141 = arith.truncf %140 : vector<3x128xf32> to vector<3x128xbf16>
    %c0_131 = arith.constant 0 : index
    %c0_132 = arith.constant 0 : index
    %c0_133 = arith.constant 0 : index
    %142 = vector.load %arg8[%c0_131, %c0_132, %c0_133] : memref<4x128x256xbf16, #tpu.memory_space<vmem>>, vector<1x128x256xbf16>
    %143 = vector.shape_cast %142 : vector<1x128x256xbf16> to vector<128x256xbf16>
    %cst_134 = arith.constant dense<0.000000e+00> : vector<3x256xf32>
    %144 = tpu.matmul %141, %143, %cst_134 {dimension_numbers = #tpu.dot_dimension_numbers<[1], [0], [0], [1], [0, 0, 1, 1], [], []>} : vector<3x128xbf16>, vector<128x256xbf16>, vector<3x256xf32> -> vector<3x256xf32>
    %145 = arith.addf %139, %144 : vector<3x256xf32>
    %c1_135 = arith.constant 1 : index
    %c0_136 = arith.constant 0 : index
    %146 = vector.load %arg17[%c1_135, %c0_136] : memref<6x128xf32, #tpu.memory_space<vmem>>, vector<3x128xf32>
    %147 = arith.truncf %146 : vector<3x128xf32> to vector<3x128xbf16>
    %c1_137 = arith.constant 1 : index
    %c0_138 = arith.constant 0 : index
    %c0_139 = arith.constant 0 : index
    %148 = vector.load %arg8[%c1_137, %c0_138, %c0_139] : memref<4x128x256xbf16, #tpu.memory_space<vmem>>, vector<1x128x256xbf16>
    %149 = vector.shape_cast %148 : vector<1x128x256xbf16> to vector<128x256xbf16>
    %cst_140 = arith.constant dense<0.000000e+00> : vector<3x256xf32>
    %150 = tpu.matmul %147, %149, %cst_140 {dimension_numbers = #tpu.dot_dimension_numbers<[1], [0], [0], [1], [0, 0, 1, 1], [], []>} : vector<3x128xbf16>, vector<128x256xbf16>, vector<3x256xf32> -> vector<3x256xf32>
    %151 = arith.addf %145, %150 : vector<3x256xf32>
    %c2_141 = arith.constant 2 : index
    %c0_142 = arith.constant 0 : index
    %152 = vector.load %arg17[%c2_141, %c0_142] : memref<6x128xf32, #tpu.memory_space<vmem>>, vector<3x128xf32>
    %153 = arith.truncf %152 : vector<3x128xf32> to vector<3x128xbf16>
    %c2_143 = arith.constant 2 : index
    %c0_144 = arith.constant 0 : index
    %c0_145 = arith.constant 0 : index
    %154 = vector.load %arg8[%c2_143, %c0_144, %c0_145] : memref<4x128x256xbf16, #tpu.memory_space<vmem>>, vector<1x128x256xbf16>
    %155 = vector.shape_cast %154 : vector<1x128x256xbf16> to vector<128x256xbf16>
    %cst_146 = arith.constant dense<0.000000e+00> : vector<3x256xf32>
    %156 = tpu.matmul %153, %155, %cst_146 {dimension_numbers = #tpu.dot_dimension_numbers<[1], [0], [0], [1], [0, 0, 1, 1], [], []>} : vector<3x128xbf16>, vector<128x256xbf16>, vector<3x256xf32> -> vector<3x256xf32>
    %157 = arith.addf %151, %156 : vector<3x256xf32>
    %c3_147 = arith.constant 3 : index
    %c0_148 = arith.constant 0 : index
    %158 = vector.load %arg17[%c3_147, %c0_148] : memref<6x128xf32, #tpu.memory_space<vmem>>, vector<3x128xf32>
    %159 = arith.truncf %158 : vector<3x128xf32> to vector<3x128xbf16>
    %c3_149 = arith.constant 3 : index
    %c0_150 = arith.constant 0 : index
    %c0_151 = arith.constant 0 : index
    %160 = vector.load %arg8[%c3_149, %c0_150, %c0_151] : memref<4x128x256xbf16, #tpu.memory_space<vmem>>, vector<1x128x256xbf16>
    %161 = vector.shape_cast %160 : vector<1x128x256xbf16> to vector<128x256xbf16>
    %cst_152 = arith.constant dense<0.000000e+00> : vector<3x256xf32>
    %162 = tpu.matmul %159, %161, %cst_152 {dimension_numbers = #tpu.dot_dimension_numbers<[1], [0], [0], [1], [0, 0, 1, 1], [], []>} : vector<3x128xbf16>, vector<128x256xbf16>, vector<3x256xf32> -> vector<3x256xf32>
    %163 = arith.addf %157, %162 : vector<3x256xf32>
    %c0_153 = arith.constant 0 : index
    %c0_154 = arith.constant 0 : index
    %164 = vector.load %arg13[%c0_153, %c0_154] : memref<1x256xf32, #tpu.memory_space<vmem>>, vector<1x256xf32>
    %165 = vector.broadcast %164 : vector<1x256xf32> to vector<3x256xf32>
    %166 = arith.addf %163, %165 : vector<3x256xf32>
    %cst_155 = arith.constant 0.000000e+00 : f32
    %167 = vector.broadcast %cst_155 : f32 to vector<3x256xf32>
    %168 = arith.cmpf oge, %166, %167 : vector<3x256xf32>
    %cst_156 = arith.constant 0.00999999977 : f32
    %169 = vector.broadcast %cst_156 : f32 to vector<3x256xf32>
    %170 = arith.mulf %169, %166 : vector<3x256xf32>
    %171 = arith.select %168, %166, %170 : vector<3x256xi1>, vector<3x256xf32>
    %cst_157 = arith.constant 0.000000e+00 : f32
    %172 = vector.broadcast %cst_157 : f32 to vector<5x256xf32>
    %c0_158 = arith.constant 0 : index
    %c0_159 = arith.constant 0 : index
    %173 = vector.load %arg18[%c0_158, %c0_159] : memref<5x256xf32, #tpu.memory_space<vmem>>, vector<5x256xf32>
    tpu.vector_store %arg18[%c0_158, %c0_159], %172 {strides = array<i32>} : memref<5x256xf32, #tpu.memory_space<vmem>>, vector<5x256xf32>,
    %c1_160 = arith.constant 1 : index
    %c0_161 = arith.constant 0 : index
    %174 = vector.load %arg18[%c1_160, %c0_161] : memref<5x256xf32, #tpu.memory_space<vmem>>, vector<3x256xf32>
    tpu.vector_store %arg18[%c1_160, %c0_161], %171 {strides = array<i32>} : memref<5x256xf32, #tpu.memory_space<vmem>>, vector<3x256xf32>,
    %cst_162 = arith.constant 0.000000e+00 : f32
    %175 = vector.broadcast %cst_162 : f32 to vector<2x128xf32>
    %c0_163 = arith.constant 0 : index
    %c0_164 = arith.constant 0 : index
    %176 = vector.load %arg18[%c0_163, %c0_164] : memref<5x256xf32, #tpu.memory_space<vmem>>, vector<2x256xf32>
    %177 = arith.truncf %176 : vector<2x256xf32> to vector<2x256xbf16>
    %c0_165 = arith.constant 0 : index
    %c0_166 = arith.constant 0 : index
    %c0_167 = arith.constant 0 : index
    %178 = vector.load %arg9[%c0_165, %c0_166, %c0_167] : memref<4x256x128xbf16, #tpu.memory_space<vmem>>, vector<1x256x128xbf16>
    %179 = vector.shape_cast %178 : vector<1x256x128xbf16> to vector<256x128xbf16>
    %cst_168 = arith.constant dense<0.000000e+00> : vector<2x128xf32>
    %180 = tpu.matmul %177, %179, %cst_168 {dimension_numbers = #tpu.dot_dimension_numbers<[1], [0], [0], [1], [0, 0, 1, 1], [], []>} : vector<2x256xbf16>, vector<256x128xbf16>, vector<2x128xf32> -> vector<2x128xf32>
    %181 = arith.addf %175, %180 : vector<2x128xf32>
    %c1_169 = arith.constant 1 : index
    %c0_170 = arith.constant 0 : index
    %182 = vector.load %arg18[%c1_169, %c0_170] : memref<5x256xf32, #tpu.memory_space<vmem>>, vector<2x256xf32>
    %183 = arith.truncf %182 : vector<2x256xf32> to vector<2x256xbf16>
    %c1_171 = arith.constant 1 : index
    %c0_172 = arith.constant 0 : index
    %c0_173 = arith.constant 0 : index
    %184 = vector.load %arg9[%c1_171, %c0_172, %c0_173] : memref<4x256x128xbf16, #tpu.memory_space<vmem>>, vector<1x256x128xbf16>
    %185 = vector.shape_cast %184 : vector<1x256x128xbf16> to vector<256x128xbf16>
    %cst_174 = arith.constant dense<0.000000e+00> : vector<2x128xf32>
    %186 = tpu.matmul %183, %185, %cst_174 {dimension_numbers = #tpu.dot_dimension_numbers<[1], [0], [0], [1], [0, 0, 1, 1], [], []>} : vector<2x256xbf16>, vector<256x128xbf16>, vector<2x128xf32> -> vector<2x128xf32>
    %187 = arith.addf %181, %186 : vector<2x128xf32>
    %c2_175 = arith.constant 2 : index
    %c0_176 = arith.constant 0 : index
    %188 = vector.load %arg18[%c2_175, %c0_176] : memref<5x256xf32, #tpu.memory_space<vmem>>, vector<2x256xf32>
    %189 = arith.truncf %188 : vector<2x256xf32> to vector<2x256xbf16>
    %c2_177 = arith.constant 2 : index
    %c0_178 = arith.constant 0 : index
    %c0_179 = arith.constant 0 : index
    %190 = vector.load %arg9[%c2_177, %c0_178, %c0_179] : memref<4x256x128xbf16, #tpu.memory_space<vmem>>, vector<1x256x128xbf16>
    %191 = vector.shape_cast %190 : vector<1x256x128xbf16> to vector<256x128xbf16>
    %cst_180 = arith.constant dense<0.000000e+00> : vector<2x128xf32>
    %192 = tpu.matmul %189, %191, %cst_180 {dimension_numbers = #tpu.dot_dimension_numbers<[1], [0], [0], [1], [0, 0, 1, 1], [], []>} : vector<2x256xbf16>, vector<256x128xbf16>, vector<2x128xf32> -> vector<2x128xf32>
    %193 = arith.addf %187, %192 : vector<2x128xf32>
    %c3_181 = arith.constant 3 : index
    %c0_182 = arith.constant 0 : index
    %194 = vector.load %arg18[%c3_181, %c0_182] : memref<5x256xf32, #tpu.memory_space<vmem>>, vector<2x256xf32>
    %195 = arith.truncf %194 : vector<2x256xf32> to vector<2x256xbf16>
    %c3_183 = arith.constant 3 : index
    %c0_184 = arith.constant 0 : index
    %c0_185 = arith.constant 0 : index
    %196 = vector.load %arg9[%c3_183, %c0_184, %c0_185] : memref<4x256x128xbf16, #tpu.memory_space<vmem>>, vector<1x256x128xbf16>
    %197 = vector.shape_cast %196 : vector<1x256x128xbf16> to vector<256x128xbf16>
    %cst_186 = arith.constant dense<0.000000e+00> : vector<2x128xf32>
    %198 = tpu.matmul %195, %197, %cst_186 {dimension_numbers = #tpu.dot_dimension_numbers<[1], [0], [0], [1], [0, 0, 1, 1], [], []>} : vector<2x256xbf16>, vector<256x128xbf16>, vector<2x128xf32> -> vector<2x128xf32>
    %199 = arith.addf %193, %198 : vector<2x128xf32>
    %c0_187 = arith.constant 0 : index
    %c0_188 = arith.constant 0 : index
    %c0_189 = arith.constant 0 : index
    %200 = vector.load %arg14[%c0_187, %c0_188, %c0_189] : memref<1x2x128xf32, #tpu.memory_space<vmem>>, vector<1x2x128xf32>
    %201 = vector.shape_cast %200 : vector<1x2x128xf32> to vector<2x128xf32>
    %202 = vector.shape_cast %199 : vector<2x128xf32> to vector<1x2x128xf32>
    tpu.vector_store %arg14[%c0_187, %c0_188, %c0_189], %202 {strides = array<i32>} : memref<1x2x128xf32, #tpu.memory_space<vmem>>, vector<1x2x128xf32>,
    return
  }
  func.func @transform_0(%arg0: i32) -> (i32, i32, i32) {
    %c0_i32 = arith.constant 0 : i32
    %c0_i32_0 = arith.constant 0 : i32
    %c0_i32_1 = arith.constant 0 : i32
    return %arg0, %c0_i32, %c0_i32_0 : i32, i32, i32
  }
  func.func @transform_1(%arg0: i32) -> (i32, i32, i32) {
    %c0_i32 = arith.constant 0 : i32
    %c0_i32_0 = arith.constant 0 : i32
    %c0_i32_1 = arith.constant 0 : i32
    %c0_i32_2 = arith.constant 0 : i32
    return %c0_i32, %c0_i32_0, %c0_i32_1 : i32, i32, i32
  }
  func.func @transform_2(%arg0: i32) -> (i32, i32, i32) {
    %c0_i32 = arith.constant 0 : i32
    %c0_i32_0 = arith.constant 0 : i32
    %c0_i32_1 = arith.constant 0 : i32
    %c0_i32_2 = arith.constant 0 : i32
    return %c0_i32, %c0_i32_0, %c0_i32_1 : i32, i32, i32
  }
  func.func @transform_3(%arg0: i32) -> (i32, i32, i32) {
    %c0_i32 = arith.constant 0 : i32
    %c0_i32_0 = arith.constant 0 : i32
    %c0_i32_1 = arith.constant 0 : i32
    %c0_i32_2 = arith.constant 0 : i32
    return %c0_i32, %c0_i32_0, %c0_i32_1 : i32, i32, i32
  }
  func.func @transform_4(%arg0: i32) -> (i32, i32, i32) {
    %c0_i32 = arith.constant 0 : i32
    %c0_i32_0 = arith.constant 0 : i32
    %c0_i32_1 = arith.constant 0 : i32
    %c0_i32_2 = arith.constant 0 : i32
    return %c0_i32, %c0_i32_0, %c0_i32_1 : i32, i32, i32
  }
  func.func @transform_5(%arg0: i32) -> (i32, i32, i32) {
    %c0_i32 = arith.constant 0 : i32
    %c0_i32_0 = arith.constant 0 : i32
    %c0_i32_1 = arith.constant 0 : i32
    %c0_i32_2 = arith.constant 0 : i32
    return %c0_i32, %c0_i32_0, %c0_i32_1 : i32, i32, i32
  }
  func.func @transform_6(%arg0: i32) -> (i32, i32, i32) {
    %c0_i32 = arith.constant 0 : i32
    %c0_i32_0 = arith.constant 0 : i32
    %c0_i32_1 = arith.constant 0 : i32
    %c0_i32_2 = arith.constant 0 : i32
    return %c0_i32, %c0_i32_0, %c0_i32_1 : i32, i32, i32
  }
  func.func @transform_7(%arg0: i32) -> (i32, i32, i32) {
    %c0_i32 = arith.constant 0 : i32
    %c0_i32_0 = arith.constant 0 : i32
    %c0_i32_1 = arith.constant 0 : i32
    %c0_i32_2 = arith.constant 0 : i32
    return %c0_i32, %c0_i32_0, %c0_i32_1 : i32, i32, i32
  }
  func.func @transform_8(%arg0: i32) -> (i32, i32, i32) {
    %c0_i32 = arith.constant 0 : i32
    %c0_i32_0 = arith.constant 0 : i32
    %c0_i32_1 = arith.constant 0 : i32
    %c0_i32_2 = arith.constant 0 : i32
    return %c0_i32, %c0_i32_0, %c0_i32_1 : i32, i32, i32
  }
  func.func @transform_9(%arg0: i32) -> (i32, i32) {
    %c0_i32 = arith.constant 0 : i32
    %c0_i32_0 = arith.constant 0 : i32
    %c0_i32_1 = arith.constant 0 : i32
    return %c0_i32, %c0_i32_0 : i32, i32
  }
  func.func @transform_10(%arg0: i32) -> (i32, i32) {
    %c0_i32 = arith.constant 0 : i32
    %c0_i32_0 = arith.constant 0 : i32
    %c0_i32_1 = arith.constant 0 : i32
    return %c0_i32, %c0_i32_0 : i32, i32
  }
  func.func @transform_11(%arg0: i32) -> (i32, i32) {
    %c0_i32 = arith.constant 0 : i32
    %c0_i32_0 = arith.constant 0 : i32
    %c0_i32_1 = arith.constant 0 : i32
    return %c0_i32, %c0_i32_0 : i32, i32
  }
  func.func @transform_12(%arg0: i32) -> (i32, i32) {
    %c0_i32 = arith.constant 0 : i32
    %c0_i32_0 = arith.constant 0 : i32
    %c0_i32_1 = arith.constant 0 : i32
    return %c0_i32, %c0_i32_0 : i32, i32
  }
  func.func @transform_13(%arg0: i32) -> (i32, i32, i32) {
    %c0_i32 = arith.constant 0 : i32
    %c0_i32_0 = arith.constant 0 : i32
    %c0_i32_1 = arith.constant 0 : i32
    return %arg0, %c0_i32, %c0_i32_0 : i32, i32, i32
  }
}

</mosaic_0001>

<llo_original>
// kernel: forward.1
$region0: #{forward.1}
  #allocation0 [shape = 'u32[]', space=smem, size = 0x4, offset = 0x4, fixed_abs, tag = 'smem constant byte address 0x4 - core index']
  #allocation1 [shape = 'u32[144,128]{1,0:T(1,128)}', space=vmem, size = 0x12000, scoped, tag = 'internal scratch']
  #allocation2 [shape = 'f32[18,128]{1,0:T(8,128)}', space=vmem, size = 0x3000, scoped, tag = 'scratch operand']
  #allocation3 [shape = 'f32[10,128]{1,0:T(8,128)}', space=vmem, size = 0x2000, scoped, tag = 'scratch operand']
  #allocation4 [shape = 'f32[6,128]{1,0:T(8,128)}', space=vmem, size = 0x1000, scoped, tag = 'scratch operand']
  #allocation5 [shape = 'f32[5,256]{1,0:T(8,128)}', space=vmem, size = 0x2000, scoped, tag = 'scratch operand']
  %s0 = inlined_call_operand.vmem [shape: f32[2,34,128], index: 0, kind: input, shape index: {}]
  %s1 = inlined_call_operand.vmem [shape: bf16[4,16,34], index: 1, kind: input, shape index: {}]
  %s2 = inlined_call_operand.vmem [shape: bf16[4,8,18], index: 2, kind: input, shape index: {}]
  %s3 = inlined_call_operand.vmem [shape: bf16[4,4,10], index: 3, kind: input, shape index: {}]
  %s4 = inlined_call_operand.vmem [shape: bf16[4,128,128], index: 4, kind: input, shape index: {}]
  %s5 = inlined_call_operand.hbm [shape: bf16[4,128,128], index: 5, kind: input, shape index: {}]
  %s6 = inlined_call_operand.hbm [shape: bf16[4,128,128], index: 6, kind: input, shape index: {}]
  %s7 = inlined_call_operand.vmem [shape: bf16[4,128,256], index: 7, kind: input, shape index: {}]
  %s8 = inlined_call_operand.hbm [shape: bf16[4,256,128], index: 8, kind: input, shape index: {}]
  %s9 = inlined_call_operand.vmem [shape: f32[1,128], index: 9, kind: input, shape index: {}]
  %s10 = inlined_call_operand.vmem [shape: f32[1,128], index: 10, kind: input, shape index: {}]
  %s11 = inlined_call_operand.vmem [shape: f32[1,128], index: 11, kind: input, shape index: {}]
  %s12 = inlined_call_operand.vmem [shape: f32[1,256], index: 12, kind: input, shape index: {}]
  %s13 = inlined_call_operand.hbm [shape: f32[2,2,128], index: 13, kind: output, shape index: {}]
  %s14 = sld [smem:[#allocation0]]
  $region97: #{forward.1} parent=0
    _
  %s16 = ssub.s32 1, %s14
  %s17 = scalar_select 0, %s16, %s14
  $region1: #{forward.1} parent=0
    #allocation6 [shape = 'u8[131072]{0}', space=vmem, size = 0x20000, scoped, tag = 'input window, operand 5, single buffered']
    #allocation7 [shape = 's32[2]{0}', space=sflag, size = 0x8, scoped, tag = 'scoped memory for forward.1']
    #allocation8 [shape = 's32[2]{0}', space=sflag, size = 0x8, scoped, tag = 'scoped memory for forward.1']
    #allocation9 [shape = 'u8[131072]{0}', space=vmem, size = 0x20000, scoped, tag = 'input window, operand 6, single buffered']
    #allocation10 [shape = 's32[1]{0}', space=sflag, size = 0x4, scoped, tag = 'scoped memory for forward.1']
    #allocation11 [shape = 'u8[262144]{0}', space=vmem, size = 0x40000, scoped, tag = 'input window, operand 8, single buffered']
    #allocation12 [shape = 'u8[2048]{0}', space=vmem, size = 0x800, scoped, tag = 'output window, operand 0']
    %18 = vsyncpa [#allocation7], 0
    %19 = vsyncpa [#allocation10], 0
    %20 = vsyncpa [#allocation8], 0
    %s21 = scalar_lea.sflag [#allocation8], 1
    %22 = vsyncpa %s21, 0
    loop: start=0, step=1, limit=4
    $region2: #{forward.1} parent=1 // loop_pre_header
      _
    $region3: #{forward.1} parent=1 // loop_header
      %s24 = sphi 0, %s28
      %p25 = scmp.ge.s32.totalorder %s24, 4
      %s34 = sphi 0, %s36
      %s37 = sphi 0, %s34
      %s38 = sphi 0, %s37
      %s54 = sphi 0, %s38
      %s58 = sphi 0, %s58
      %s60 = sphi 0, %s58
      %s61 = sphi 0, %s60
      %s75 = sphi 0, %s61
      %s79 = sphi 0, %s79
      %s81 = sphi 0, %s79
      %s82 = sphi 0, %s81
      %s96 = sphi 0, %s82
      %s100 = sphi 0, %s100
      %s102 = sphi 0, %s100
      %s103 = sphi 0, %s102
      %s117 = sphi 0, %s103
      %s121 = sphi 0, %s121
      %s123 = sphi 0, %s121
      %s124 = sphi 0, %s123
      %s138 = sphi 0, %s124
      %s142 = sphi 0, %s142
      %s144 = sphi 0, %s142
      %s145 = sphi 0, %s144
      %s159 = sphi 0, %s145
      %s163 = sphi 0, %s163
      %s165 = sphi 0, %s163
      %s166 = sphi 0, %s165
      %s180 = sphi 0, %s166
      %s184 = sphi 0, %s184
      %s186 = sphi 0, %s184
      %s187 = sphi 0, %s186
      %s201 = sphi 0, %s187
      %s205 = sphi 0, %s205
      %s207 = sphi 0, %s205
      %s208 = sphi 0, %s207
      %s222 = sphi 0, %s208
      %s226 = sphi 0, %s226
      %s228 = sphi 0, %s226
      %s229 = sphi 0, %s228
      %s243 = sphi 0, %s229
      %s247 = sphi 0, %s247
      %s249 = sphi 0, %s247
      %s250 = sphi 0, %s249
      %s264 = sphi 0, %s250
      %s268 = sphi 0, %s268
      %s270 = sphi 0, %s268
      %s271 = sphi 0, %s270
      %s285 = sphi 0, %s271
      %s289 = sphi 0, %s289
      %s291 = sphi 0, %s289
      %s292 = sphi 0, %s291
      %s306 = sphi 0, %s292
      %s312 = sphi 0, %s314
      %s315 = sphi 0, %s312
      %s316 = sphi 0, %s315
      %s332 = sphi 0, %s316
    $region4: #{forward.1} parent=1 // loop_header_branch
      %27 = sbr.rel (%p25) target = $region8
    $region5: #{forward.1} parent=1 // loop_body
      %s29 = ssub.s32 %s24, 1
      %s30 = ssub.s32 %s24, 2
      %s31 = sadd.s32 %s24, 1
      %s32 = ssub.s32 %s24, %s31
      %p33 = scmp.eq.s32.totalorder %s32, 0
      %s35 = sadd.s32 %s34, 1
      %s36 = scalar_select %p33, %s34, %s35
      %p39 = pneg %p33
      %p40 = scmp.eq.s32.totalorder %s24, 1
      %p41 = por %p39, %p40
      %p42 = scmp.ne.s32.totalorder %s34, %s37
      %p43 = scmp.eq.s32.totalorder %s24, 0
      %p44 = por %p42, %p43
      %p45 = scmp.ne.s32.totalorder %s34, %s37
      %p46 = scmp.eq.s32.totalorder %s29, 1
      %p47 = por %p45, %p46
      %p48 = scmp.ne.s32.totalorder %s37, %s38
      %p49 = scmp.eq.s32.totalorder %s29, 0
      %p50 = por %p48, %p49
      %p51 = scmp.ne.s32.totalorder %s37, %s38
      %p52 = scmp.eq.s32.totalorder %s30, 1
      %p53 = por %p51, %p52
      %p55 = scmp.ne.s32.totalorder %s38, %s54
      %p56 = scmp.eq.s32.totalorder %s30, 0
      %p57 = por %p55, %p56
      %s59 = sadd.s32 %s58, 1
      %p62 = scmp.eq.s32.totalorder %s24, 1
      %p63 = scmp.ne.s32.totalorder %s58, %s60
      %p64 = scmp.eq.s32.totalorder %s24, 0
      %p65 = por %p63, %p64
      %p66 = scmp.ne.s32.totalorder %s58, %s60
      %p67 = scmp.eq.s32.totalorder %s29, 1
      %p68 = por %p66, %p67
      %p69 = scmp.ne.s32.totalorder %s60, %s61
      %p70 = scmp.eq.s32.totalorder %s29, 0
      %p71 = por %p69, %p70
      %p72 = scmp.ne.s32.totalorder %s60, %s61
      %p73 = scmp.eq.s32.totalorder %s30, 1
      %p74 = por %p72, %p73
      %p76 = scmp.ne.s32.totalorder %s61, %s75
      %p77 = scmp.eq.s32.totalorder %s30, 0
      %p78 = por %p76, %p77
      %s80 = sadd.s32 %s79, 1
      %p83 = scmp.eq.s32.totalorder %s24, 1
      %p84 = scmp.ne.s32.totalorder %s79, %s81
      %p85 = scmp.eq.s32.totalorder %s24, 0
      %p86 = por %p84, %p85
      %p87 = scmp.ne.s32.totalorder %s79, %s81
      %p88 = scmp.eq.s32.totalorder %s29, 1
      %p89 = por %p87, %p88
      %p90 = scmp.ne.s32.totalorder %s81, %s82
      %p91 = scmp.eq.s32.totalorder %s29, 0
      %p92 = por %p90, %p91
      %p93 = scmp.ne.s32.totalorder %s81, %s82
      %p94 = scmp.eq.s32.totalorder %s30, 1
      %p95 = por %p93, %p94
      %p97 = scmp.ne.s32.totalorder %s82, %s96
      %p98 = scmp.eq.s32.totalorder %s30, 0
      %p99 = por %p97, %p98
      %s101 = sadd.s32 %s100, 1
      %p104 = scmp.eq.s32.totalorder %s24, 1
      %p105 = scmp.ne.s32.totalorder %s100, %s102
      %p106 = scmp.eq.s32.totalorder %s24, 0
      %p107 = por %p105, %p106
      %p108 = scmp.ne.s32.totalorder %s100, %s102
      %p109 = scmp.eq.s32.totalorder %s29, 1
      %p110 = por %p108, %p109
      %p111 = scmp.ne.s32.totalorder %s102, %s103
      %p112 = scmp.eq.s32.totalorder %s29, 0
      %p113 = por %p111, %p112
      %p114 = scmp.ne.s32.totalorder %s102, %s103
      %p115 = scmp.eq.s32.totalorder %s30, 1
      %p116 = por %p114, %p115
      %p118 = scmp.ne.s32.totalorder %s103, %s117
      %p119 = scmp.eq.s32.totalorder %s30, 0
      %p120 = por %p118, %p119
      %s122 = sadd.s32 %s121, 1
      %p125 = scmp.eq.s32.totalorder %s24, 1
      %p126 = scmp.ne.s32.totalorder %s121, %s123
      %p127 = scmp.eq.s32.totalorder %s24, 0
      %p128 = por %p126, %p127
      %p129 = scmp.ne.s32.totalorder %s121, %s123
      %p130 = scmp.eq.s32.totalorder %s29, 1
      %p131 = por %p129, %p130
      %p132 = scmp.ne.s32.totalorder %s123, %s124
      %p133 = scmp.eq.s32.totalorder %s29, 0
      %p134 = por %p132, %p133
      %p135 = scmp.ne.s32.totalorder %s123, %s124
      %p136 = scmp.eq.s32.totalorder %s30, 1
      %p137 = por %p135, %p136
      %p139 = scmp.ne.s32.totalorder %s124, %s138
      %p140 = scmp.eq.s32.totalorder %s30, 0
      %p141 = por %p139, %p140
      %s143 = sadd.s32 %s142, 1
      %p146 = scmp.eq.s32.totalorder %s24, 1
      %p147 = scmp.ne.s32.totalorder %s142, %s144
      %p148 = scmp.eq.s32.totalorder %s24, 0
      %p149 = por %p147, %p148
      %p150 = scmp.ne.s32.totalorder %s142, %s144
      %p151 = scmp.eq.s32.totalorder %s29, 1
      %p152 = por %p150, %p151
      %p153 = scmp.ne.s32.totalorder %s144, %s145
      %p154 = scmp.eq.s32.totalorder %s29, 0
      %p155 = por %p153, %p154
      %p156 = scmp.ne.s32.totalorder %s144, %s145
      %p157 = scmp.eq.s32.totalorder %s30, 1
      %p158 = por %p156, %p157
      %p160 = scmp.ne.s32.totalorder %s145, %s159
      %p161 = scmp.eq.s32.totalorder %s30, 0
      %p162 = por %p160, %p161
      %s164 = sadd.s32 %s163, 1
      %p167 = scmp.eq.s32.totalorder %s24, 1
      %p168 = scmp.ne.s32.totalorder %s163, %s165
      %p169 = scmp.eq.s32.totalorder %s24, 0
      %p170 = por %p168, %p169
      %p171 = scmp.ne.s32.totalorder %s163, %s165
      %p172 = scmp.eq.s32.totalorder %s29, 1
      %p173 = por %p171, %p172
      %p174 = scmp.ne.s32.totalorder %s165, %s166
      %p175 = scmp.eq.s32.totalorder %s29, 0
      %p176 = por %p174, %p175
      %p177 = scmp.ne.s32.totalorder %s165, %s166
      %p178 = scmp.eq.s32.totalorder %s30, 1
      %p179 = por %p177, %p178
      %p181 = scmp.ne.s32.totalorder %s166, %s180
      %p182 = scmp.eq.s32.totalorder %s30, 0
      %p183 = por %p181, %p182
      %s185 = sadd.s32 %s184, 1
      %p188 = scmp.eq.s32.totalorder %s24, 1
      %p189 = scmp.ne.s32.totalorder %s184, %s186
      %p190 = scmp.eq.s32.totalorder %s24, 0
      %p191 = por %p189, %p190
      %p192 = scmp.ne.s32.totalorder %s184, %s186
      %p193 = scmp.eq.s32.totalorder %s29, 1
      %p194 = por %p192, %p193
      %p195 = scmp.ne.s32.totalorder %s186, %s187
      %p196 = scmp.eq.s32.totalorder %s29, 0
      %p197 = por %p195, %p196
      %p198 = scmp.ne.s32.totalorder %s186, %s187
      %p199 = scmp.eq.s32.totalorder %s30, 1
      %p200 = por %p198, %p199
      %p202 = scmp.ne.s32.totalorder %s187, %s201
      %p203 = scmp.eq.s32.totalorder %s30, 0
      %p204 = por %p202, %p203
      %s206 = sadd.s32 %s205, 1
      %p209 = scmp.eq.s32.totalorder %s24, 1
      %p210 = scmp.ne.s32.totalorder %s205, %s207
      %p211 = scmp.eq.s32.totalorder %s24, 0
      %p212 = por %p210, %p211
      %p213 = scmp.ne.s32.totalorder %s205, %s207
      %p214 = scmp.eq.s32.totalorder %s29, 1
      %p215 = por %p213, %p214
      %p216 = scmp.ne.s32.totalorder %s207, %s208
      %p217 = scmp.eq.s32.totalorder %s29, 0
      %p218 = por %p216, %p217
      %p219 = scmp.ne.s32.totalorder %s207, %s208
      %p220 = scmp.eq.s32.totalorder %s30, 1
      %p221 = por %p219, %p220
      %p223 = scmp.ne.s32.totalorder %s208, %s222
      %p224 = scmp.eq.s32.totalorder %s30, 0
      %p225 = por %p223, %p224
      %s227 = sadd.s32 %s226, 1
      %p230 = scmp.eq.s32.totalorder %s24, 1
      %p231 = scmp.ne.s32.totalorder %s226, %s228
      %p232 = scmp.eq.s32.totalorder %s24, 0
      %p233 = por %p231, %p232
      %p234 = scmp.ne.s32.totalorder %s226, %s228
      %p235 = scmp.eq.s32.totalorder %s29, 1
      %p236 = por %p234, %p235
      %p237 = scmp.ne.s32.totalorder %s228, %s229
      %p238 = scmp.eq.s32.totalorder %s29, 0
      %p239 = por %p237, %p238
      %p240 = scmp.ne.s32.totalorder %s228, %s229
      %p241 = scmp.eq.s32.totalorder %s30, 1
      %p242 = por %p240, %p241
      %p244 = scmp.ne.s32.totalorder %s229, %s243
      %p245 = scmp.eq.s32.totalorder %s30, 0
      %p246 = por %p244, %p245
      %s248 = sadd.s32 %s247, 1
      %p251 = scmp.eq.s32.totalorder %s24, 1
      %p252 = scmp.ne.s32.totalorder %s247, %s249
      %p253 = scmp.eq.s32.totalorder %s24, 0
      %p254 = por %p252, %p253
      %p255 = scmp.ne.s32.totalorder %s247, %s249
      %p256 = scmp.eq.s32.totalorder %s29, 1
      %p257 = por %p255, %p256
      %p258 = scmp.ne.s32.totalorder %s249, %s250
      %p259 = scmp.eq.s32.totalorder %s29, 0
      %p260 = por %p258, %p259
      %p261 = scmp.ne.s32.totalorder %s249, %s250
      %p262 = scmp.eq.s32.totalorder %s30, 1
      %p263 = por %p261, %p262
      %p265 = scmp.ne.s32.totalorder %s250, %s264
      %p266 = scmp.eq.s32.totalorder %s30, 0
      %p267 = por %p265, %p266
      %s269 = sadd.s32 %s268, 1
      %p272 = scmp.eq.s32.totalorder %s24, 1
      %p273 = scmp.ne.s32.totalorder %s268, %s270
      %p274 = scmp.eq.s32.totalorder %s24, 0
      %p275 = por %p273, %p274
      %p276 = scmp.ne.s32.totalorder %s268, %s270
      %p277 = scmp.eq.s32.totalorder %s29, 1
      %p278 = por %p276, %p277
      %p279 = scmp.ne.s32.totalorder %s270, %s271
      %p280 = scmp.eq.s32.totalorder %s29, 0
      %p281 = por %p279, %p280
      %p282 = scmp.ne.s32.totalorder %s270, %s271
      %p283 = scmp.eq.s32.totalorder %s30, 1
      %p284 = por %p282, %p283
      %p286 = scmp.ne.s32.totalorder %s271, %s285
      %p287 = scmp.eq.s32.totalorder %s30, 0
      %p288 = por %p286, %p287
      %s290 = sadd.s32 %s289, 1
      %p293 = scmp.eq.s32.totalorder %s24, 1
      %p294 = scmp.ne.s32.totalorder %s289, %s291
      %p295 = scmp.eq.s32.totalorder %s24, 0
      %p296 = por %p294, %p295
      %p297 = scmp.ne.s32.totalorder %s289, %s291
      %p298 = scmp.eq.s32.totalorder %s29, 1
      %p299 = por %p297, %p298
      %p300 = scmp.ne.s32.totalorder %s291, %s292
      %p301 = scmp.eq.s32.totalorder %s29, 0
      %p302 = por %p300, %p301
      %p303 = scmp.ne.s32.totalorder %s291, %s292
      %p304 = scmp.eq.s32.totalorder %s30, 1
      %p305 = por %p303, %p304
      %p307 = scmp.ne.s32.totalorder %s292, %s306
      %p308 = scmp.eq.s32.totalorder %s30, 0
      %p309 = por %p307, %p308
      %s310 = ssub.s32 %s24, %s31
      %p311 = scmp.eq.s32.totalorder %s310, 0
      %s313 = sadd.s32 %s312, 1
      %s314 = scalar_select %p311, %s312, %s313
      %p317 = pneg %p311
      %p318 = scmp.eq.s32.totalorder %s24, 1
      %p319 = por %p317, %p318
      %p320 = scmp.ne.s32.totalorder %s312, %s315
      %p321 = scmp.eq.s32.totalorder %s24, 0
      %p322 = por %p320, %p321
      %p323 = scmp.ne.s32.totalorder %s312, %s315
      %p324 = scmp.eq.s32.totalorder %s29, 1
      %p325 = por %p323, %p324
      %p326 = scmp.ne.s32.totalorder %s315, %s316
      %p327 = scmp.eq.s32.totalorder %s29, 0
      %p328 = por %p326, %p327
      %p329 = scmp.ne.s32.totalorder %s315, %s316
      %p330 = scmp.eq.s32.totalorder %s30, 1
      %p331 = por %p329, %p330
      %p333 = scmp.ne.s32.totalorder %s316, %s332
      %p334 = scmp.eq.s32.totalorder %s30, 0
      %p335 = por %p333, %p334
      %p336 = scmp.le.s32.totalorder 1, %s24
      %p337 = scmp.lt.s32.totalorder %s24, 3
      %p338 = pnand %p336, %p337
      %p339 = pneg %p338
      // Predicated region
      $region9: #{forward.1} parent=5 // pred_check
        _
      $region10: #{forward.1} parent=5 // pred_check_branch
        %341 = sbr.rel (%p338) target = $region12
      $region11: #{forward.1} parent=5 // pred_region
        %s342 = ssub.s32 %s24, 1
        // Predicated region
        $region13: #{forward.1} parent=11 // pred_check
          %p343 = pneg %p71
        $region14: #{forward.1} parent=11 // pred_check_branch
          %345 = sbr.rel (%p343) target = $region16
        $region15: #{forward.1} parent=11 // pred_region
          _
        $region16: #{forward.1} parent=11 // pred_fallthru
          _
        // Predicated region
        $region17: #{forward.1} parent=11 // pred_check
          %p346 = pneg %p92
        $region18: #{forward.1} parent=11 // pred_check_branch
          %348 = sbr.rel (%p346) target = $region20
        $region19: #{forward.1} parent=11 // pred_region
          _
        $region20: #{forward.1} parent=11 // pred_fallthru
          _
        // Predicated region
        $region21: #{forward.1} parent=11 // pred_check
          %p349 = pneg %p113
        $region22: #{forward.1} parent=11 // pred_check_branch
          %351 = sbr.rel (%p349) target = $region24
        $region23: #{forward.1} parent=11 // pred_region
          _
        $region24: #{forward.1} parent=11 // pred_fallthru
          _
        // Predicated region
        $region25: #{forward.1} parent=11 // pred_check
          %p352 = pneg %p134
        $region26: #{forward.1} parent=11 // pred_check_branch
          %354 = sbr.rel (%p352) target = $region28
        $region27: #{forward.1} parent=11 // pred_region
          _
        $region28: #{forward.1} parent=11 // pred_fallthru
          _
        // Predicated region
        $region29: #{forward.1} parent=11 // pred_check
          %p355 = pneg %p155
        $region30: #{forward.1} parent=11 // pred_check_branch
          %357 = sbr.rel (%p355) target = $region32
        $region31: #{forward.1} parent=11 // pred_region
          %s359 = ssub.s32 4096, 4096
          %360 = vsyncadd [#allocation7], %s359
          %s361 = sshll.u32 [#allocation6], 4
          %s362 = int_to_ptr.vmem [resolvable:$true] %s361
          %367 = dma.hbm_to_vmem [thread:$0]  %s5, 4096, %s362, [#allocation7], 64, 64, 4
        $region32: #{forward.1} parent=11 // pred_fallthru
          _
        // Predicated region
        $region33: #{forward.1} parent=11 // pred_check
          %p368 = pneg %p176
        $region34: #{forward.1} parent=11 // pred_check_branch
          %370 = sbr.rel (%p368) target = $region36
        $region35: #{forward.1} parent=11 // pred_region
          %s372 = ssub.s32 4096, 4096
          %373 = vsyncadd [#allocation10], %s372
          %s374 = sshll.u32 [#allocation9], 4
          %s375 = int_to_ptr.vmem [resolvable:$true] %s374
          %380 = dma.hbm_to_vmem [thread:$0]  %s6, 4096, %s375, [#allocation10], 64, 64, 4
        $region36: #{forward.1} parent=11 // pred_fallthru
          _
        // Predicated region
        $region37: #{forward.1} parent=11 // pred_check
          %p381 = pneg %p197
        $region38: #{forward.1} parent=11 // pred_check_branch
          %383 = sbr.rel (%p381) target = $region40
        $region39: #{forward.1} parent=11 // pred_region
          _
        $region40: #{forward.1} parent=11 // pred_fallthru
          _
        // Predicated region
        $region41: #{forward.1} parent=11 // pred_check
          %p384 = pneg %p218
        $region42: #{forward.1} parent=11 // pred_check_branch
          %386 = sbr.rel (%p384) target = $region44
        $region43: #{forward.1} parent=11 // pred_region
          %s388 = ssub.s32 8192, 8192
          %389 = vsyncadd [#allocation10], %s388
          %s390 = sshll.u32 [#allocation11], 4
          %s391 = int_to_ptr.vmem [resolvable:$true] %s390
          %396 = dma.hbm_to_vmem [thread:$0]  %s8, 8192, %s391, [#allocation10], 64, 64, 4
        $region44: #{forward.1} parent=11 // pred_fallthru
          _
        // Predicated region
        $region45: #{forward.1} parent=11 // pred_check
          %p397 = pneg %p239
        $region46: #{forward.1} parent=11 // pred_check_branch
          %399 = sbr.rel (%p397) target = $region48
        $region47: #{forward.1} parent=11 // pred_region
          _
        $region48: #{forward.1} parent=11 // pred_fallthru
          _
        // Predicated region
        $region49: #{forward.1} parent=11 // pred_check
          %p400 = pneg %p260
        $region50: #{forward.1} parent=11 // pred_check_branch
          %402 = sbr.rel (%p400) target = $region52
        $region51: #{forward.1} parent=11 // pred_region
          _
        $region52: #{forward.1} parent=11 // pred_fallthru
          _
        // Predicated region
        $region53: #{forward.1} parent=11 // pred_check
          %p403 = pneg %p281
        $region54: #{forward.1} parent=11 // pred_check_branch
          %405 = sbr.rel (%p403) target = $region56
        $region55: #{forward.1} parent=11 // pred_region
          _
        $region56: #{forward.1} parent=11 // pred_fallthru
          _
        // Predicated region
        $region57: #{forward.1} parent=11 // pred_check
          %p406 = pneg %p302
        $region58: #{forward.1} parent=11 // pred_check_branch
          %408 = sbr.rel (%p406) target = $region60
        $region59: #{forward.1} parent=11 // pred_region
          _
        $region60: #{forward.1} parent=11 // pred_fallthru
          _
      $region12: #{forward.1} parent=5 // pred_fallthru
        _
      %p409 = scmp.lt.s32.totalorder %s24, 2
      // Predicated region
      $region61: #{forward.1} parent=5 // pred_check
        %p410 = pneg %p409
      $region62: #{forward.1} parent=5 // pred_check_branch
        %412 = sbr.rel (%p410) target = $region64
      $region63: #{forward.1} parent=5 // pred_region
        // Predicated region
        $region65: #{forward.1} parent=63 // pred_check
          %p413 = pneg %p44
        $region66: #{forward.1} parent=63 // pred_check_branch
          %415 = sbr.rel (%p413) target = $region68
        $region67: #{forward.1} parent=63 // pred_region
          %p416 = scmp.lt.s32.totalorder %s24, 1
          %s417 = scalar_select %p416, %s24, 1
          %s418 = smul.addr %s417, 5
          %s419 = smul.addr %s418, 8
          %s420 = scalar_lea.vmem %s0, %s419
        $region68: #{forward.1} parent=63 // pred_fallthru
          _
      $region64: #{forward.1} parent=5 // pred_fallthru
        _
      %p421 = scmp.le.s32.totalorder 1, %s24
      %p422 = scmp.lt.s32.totalorder %s24, 3
      %p423 = pnand %p421, %p422
      %p424 = pneg %p423
      // Predicated region
      $region69: #{forward.1} parent=5 // pred_check
        _
      $region70: #{forward.1} parent=5 // pred_check_branch
        %426 = sbr.rel (%p423) target = $region72
      $region71: #{forward.1} parent=5 // pred_region
        %s427 = ssub.s32 %s24, 1
        // Predicated region
        $region73: #{forward.1} parent=71 // pred_check
          %p428 = pneg %p155
        $region74: #{forward.1} parent=71 // pred_check_branch
          %430 = sbr.rel (%p428) target = $region76
        $region75: #{forward.1} parent=71 // pred_region
          %431 = dma.done [#allocation7], 4096
        $region76: #{forward.1} parent=71 // pred_fallthru
          _
        // Predicated region
        $region77: #{forward.1} parent=71 // pred_check
          %p432 = pneg %p176
        $region78: #{forward.1} parent=71 // pred_check_branch
          %434 = sbr.rel (%p432) target = $region80
        $region79: #{forward.1} parent=71 // pred_region
          %435 = dma.done [#allocation10], 4096
        $region80: #{forward.1} parent=71 // pred_fallthru
          _
        // Predicated region
        $region81: #{forward.1} parent=71 // pred_check
          %p436 = pneg %p218
        $region82: #{forward.1} parent=71 // pred_check_branch
          %438 = sbr.rel (%p436) target = $region84
        $region83: #{forward.1} parent=71 // pred_region
          %439 = dma.done [#allocation10], 8192
        $region84: #{forward.1} parent=71 // pred_fallthru
          _
        %p440 = scmp.lt.s32.totalorder %s29, 1
        %s441 = scalar_select %p440, %s29, 1
        %s442 = smul.addr %s441, 5
        %s443 = smul.addr %s442, 8
        %s444 = scalar_lea.vmem %s0, %s443
        %p445 = pneg %p50
        %p446 = pneg %p47
        %p447 = pneg %p71
        %p448 = pneg %p68
        %p449 = pneg %p92
        %p450 = pneg %p89
        %p451 = pneg %p113
        %p452 = pneg %p110
        %p453 = pneg %p134
        %p454 = pneg %p131
        %p455 = pneg %p155
        %p456 = pneg %p152
        %p457 = pneg %p176
        %p458 = pneg %p173
        %p459 = pneg %p197
        %p460 = pneg %p194
        %p461 = pneg %p218
        %p462 = pneg %p215
        %p463 = pneg %p239
        %p464 = pneg %p236
        %p465 = pneg %p260
        %p466 = pneg %p257
        %p467 = pneg %p281
        %p468 = pneg %p278
        %p469 = pneg %p302
        %p470 = pneg %p299
        %p471 = pneg %p328
        %p472 = pneg %p325
        %s473 = sand.u32 %s315, 1
        %s474 = scalar_lea.sflag [#allocation8], %s473
        %s475 = sand.u32 %s315, 1
        %s476 = smul.addr %s475, 2
        %s477 = scalar_lea.vmem [#allocation12], %s476
        %p478 = scmp.lt.s32.totalorder %s29, 1
        %s479 = scalar_select %p478, %s29, 1
        %s480 = smul.addr %s479, 5
        %s481 = smul.addr %s480, 8
        %s482 = scalar_lea.vmem %s0, %s481
        %v484 = vld [vmem:[%s482] sm:$0xff]
        %v485 = vld [vmem:[%s482 + $0x8] sm:$0xff]
        %v486 = vld [vmem:[%s482 + $0x10] sm:$0xff]
        %v487 = vld [vmem:[%s482 + $0x18] sm:$0xff]
        %v488 = vld [vmem:[%s482 + $0x20] sm:$0x3]
        %v489 = vpack.c.bf16 %v485, %v484
        %v490 = vpack.c.bf16 %v487, %v486
        %v491 = vpack.c.bf16 %v488, %v488
        %v492 = vld [vmem:[%s1] sm:$0xf]
        %v493 = vld [vmem:[%s1 + $0x4] sm:$0xf]
        %v496 = vunpack.c.l.b16 %v492
        %v497 = vunpack.c.l.b16 %v493
        %v498 = vpack.c.b16 %v497, %v496
        %vm499 = vcmask 277504
        %v501 = vsel %vm499, %v498, 0
        %vm503 = vcmask 1040384
        %v505 = vsel %vm503, %v491, 0
        %507 = vmatprep.subr.bf16.mxu0 0
        %508 = vmatpush1.bf16.msra.mxu0 %v489
        %509 = vmatprep.subr.bf16.mxu0 0
        %510 = vmatpush1.bf16.msra.mxu0 %v490
        %511 = vmatprep.subr.bf16.mxu0 0
        %512 = vmatpush1.bf16.msra.mxu0 %v505
        %513 = vmatprep.subr.bf16.mxu0 0
        %514 = vmatpush1.bf16.msra.mxu0 0
        %515 = vmatprep.subr.bf16.mxu0 0
        %516 = vmatpush1.bf16.msra.mxu0 0
        %517 = vmatprep.subr.bf16.mxu0 0
        %518 = vmatpush1.bf16.msra.mxu0 0
        %519 = vmatprep.subr.bf16.mxu0 0
        %520 = vmatpush1.bf16.msra.mxu0 0
        %521 = vmatprep.subr.bf16.mxu0 0
        %522 = vmatpush1.bf16.msra.mxu0 0
        %523 = vmatprep.subr.bf16.mxu0 0
        %524 = vmatpush1.bf16.msra.mxu0 0
        %525 = vmatprep.subr.bf16.mxu0 0
        %526 = vmatpush1.bf16.msra.mxu0 0
        %527 = vmatprep.subr.bf16.mxu0 0
        %528 = vmatpush1.bf16.msra.mxu0 0
        %529 = vmatprep.subr.bf16.mxu0 0
        %530 = vmatpush1.bf16.msra.mxu0 0
        %531 = vmatprep.subr.bf16.mxu0 0
        %532 = vmatpush1.bf16.msra.mxu0 0
        %533 = vmatprep.subr.bf16.mxu0 0
        %534 = vmatpush1.bf16.msra.mxu0 0
        %535 = vmatprep.subr.bf16.mxu0 0
        %536 = vmatpush1.bf16.msra.mxu0 0
        %537 = vmatprep.subr.bf16.mxu0 0
        %538 = vmatpush1.bf16.msra.mxu0 0
        %539 = vmatprep.mubr.bf16.mxu0 0
        %540 = vmatmul.mubr.bf16.gmra.mrb[0].mxu0 %v501
        %v541 = vpop.f32.mrb[0].mxu0
        %v542 = vadd.f32 0.0, %v541
        %v543 = vpop.f32.mrb[0].mxu0
        %v544 = vpop.f32.mrb[0].mxu0
        %v545 = vadd.f32 0.0, %v544
        %v546 = vpop.f32.mrb[0].mxu0
        %547 = vdwg.mxu0
        %v548 = vpack.c.bf16 %v545, %v542
        %v549 = vld [vmem:[%s4] sm:$0xf]
        %v550 = vld [vmem:[%s4 + $0x4] sm:$0xf]
        %v551 = vld [vmem:[%s4 + $0x8] sm:$0xf]
        %v552 = vld [vmem:[%s4 + $0xc] sm:$0xf]
        %v553 = vld [vmem:[%s4 + $0x10] sm:$0xf]
        %v554 = vld [vmem:[%s4 + $0x14] sm:$0xf]
        %v555 = vld [vmem:[%s4 + $0x18] sm:$0xf]
        %v556 = vld [vmem:[%s4 + $0x1c] sm:$0xf]
        %v557 = vld [vmem:[%s4 + $0x20] sm:$0xf]
        %v558 = vld [vmem:[%s4 + $0x24] sm:$0xf]
        %v559 = vld [vmem:[%s4 + $0x28] sm:$0xf]
        %v560 = vld [vmem:[%s4 + $0x2c] sm:$0xf]
        %v561 = vld [vmem:[%s4 + $0x30] sm:$0xf]
        %v562 = vld [vmem:[%s4 + $0x34] sm:$0xf]
        %v563 = vld [vmem:[%s4 + $0x38] sm:$0xf]
        %v564 = vld [vmem:[%s4 + $0x3c] sm:$0xf]
        %s565 = scalar_lea.vmem %s1, 8
        %v566 = vld [vmem:[%s565] sm:$0xf]
        %v567 = vld [vmem:[%s565 + $0x4] sm:$0xf]
        %v570 = vunpack.c.l.b16 %v566
        %v571 = vunpack.c.l.b16 %v567
        %v572 = vpack.c.b16 %v571, %v570
        %v574 = vsel %vm499, %v572, 0
        %576 = vmatprep.subr.bf16.mxu0 0
        %577 = vmatpush1.bf16.msra.mxu0 %v489
        %578 = vmatprep.subr.bf16.mxu0 0
        %579 = vmatpush1.bf16.msra.mxu0 %v490
        %580 = vmatprep.subr.bf16.mxu0 0
        %581 = vmatpush1.bf16.msra.mxu0 %v505
        %582 = vmatprep.subr.bf16.mxu0 0
        %583 = vmatpush1.bf16.msra.mxu0 0
        %584 = vmatprep.subr.bf16.mxu0 0
        %585 = vmatpush1.bf16.msra.mxu0 0
        %586 = vmatprep.subr.bf16.mxu0 0
        %587 = vmatpush1.bf16.msra.mxu0 0
        %588 = vmatprep.subr.bf16.mxu0 0
        %589 = vmatpush1.bf16.msra.mxu0 0
        %590 = vmatprep.subr.bf16.mxu0 0
        %591 = vmatpush1.bf16.msra.mxu0 0
        %592 = vmatprep.subr.bf16.mxu0 0
        %593 = vmatpush1.bf16.msra.mxu0 0
        %594 = vmatprep.subr.bf16.mxu0 0
        %595 = vmatpush1.bf16.msra.mxu0 0
        %596 = vmatprep.subr.bf16.mxu0 0
        %597 = vmatpush1.bf16.msra.mxu0 0
        %598 = vmatprep.subr.bf16.mxu0 0
        %599 = vmatpush1.bf16.msra.mxu0 0
        %600 = vmatprep.subr.bf16.mxu0 0
        %601 = vmatpush1.bf16.msra.mxu0 0
        %602 = vmatprep.subr.bf16.mxu0 0
        %603 = vmatpush1.bf16.msra.mxu0 0
        %604 = vmatprep.subr.bf16.mxu0 0
        %605 = vmatpush1.bf16.msra.mxu0 0
        %606 = vmatprep.subr.bf16.mxu0 0
        %607 = vmatpush1.bf16.msra.mxu0 0
        %608 = vmatprep.mubr.bf16.mxu0 0
        %609 = vmatmul.mubr.bf16.gmra.mrb[0].mxu0 %v574
        %v610 = vpop.f32.mrb[0].mxu0
        %v611 = vadd.f32 0.0, %v610
        %v612 = vpop.f32.mrb[0].mxu0
        %v613 = vpop.f32.mrb[0].mxu0
        %v614 = vadd.f32 0.0, %v613
        %v615 = vpop.f32.mrb[0].mxu0
        %616 = vdwg.mxu0
        %v617 = vpack.c.bf16 %v614, %v611
        %s618 = scalar_lea.vmem %s4, 64
        %v619 = vld [vmem:[%s618] sm:$0xf]
        %v620 = vld [vmem:[%s618 + $0x4] sm:$0xf]
        %v621 = vld [vmem:[%s618 + $0x8] sm:$0xf]
        %v622 = vld [vmem:[%s618 + $0xc] sm:$0xf]
        %v623 = vld [vmem:[%s618 + $0x10] sm:$0xf]
        %v624 = vld [vmem:[%s618 + $0x14] sm:$0xf]
        %v625 = vld [vmem:[%s618 + $0x18] sm:$0xf]
        %v626 = vld [vmem:[%s618 + $0x1c] sm:$0xf]
        %v627 = vld [vmem:[%s618 + $0x20] sm:$0xf]
        %v628 = vld [vmem:[%s618 + $0x24] sm:$0xf]
        %v629 = vld [vmem:[%s618 + $0x28] sm:$0xf]
        %v630 = vld [vmem:[%s618 + $0x2c] sm:$0xf]
        %v631 = vld [vmem:[%s618 + $0x30] sm:$0xf]
        %v632 = vld [vmem:[%s618 + $0x34] sm:$0xf]
        %v633 = vld [vmem:[%s618 + $0x38] sm:$0xf]
        %v634 = vld [vmem:[%s618 + $0x3c] sm:$0xf]
        %v651 = vunpack.c.l.b16 %v619
        %v652 = vunpack.c.l.b16 %v620
        %v653 = vunpack.c.l.b16 %v621
        %v654 = vunpack.c.l.b16 %v622
        %v655 = vunpack.c.l.b16 %v623
        %v656 = vunpack.c.l.b16 %v624
        %v657 = vunpack.c.l.b16 %v625
        %v658 = vunpack.c.l.b16 %v626
        %v659 = vunpack.c.l.b16 %v627
        %v660 = vunpack.c.l.b16 %v628
        %v661 = vunpack.c.l.b16 %v629
        %v662 = vunpack.c.l.b16 %v630
        %v663 = vunpack.c.l.b16 %v631
        %v664 = vunpack.c.l.b16 %v632
        %v665 = vunpack.c.l.b16 %v633
        %v666 = vunpack.c.l.b16 %v634
        %v667 = vpack.c.b16 %v652, %v651
        %v668 = vpack.c.b16 %v654, %v653
        %v669 = vpack.c.b16 %v656, %v655
        %v670 = vpack.c.b16 %v658, %v657
        %v671 = vpack.c.b16 %v660, %v659
        %v672 = vpack.c.b16 %v662, %v661
        %v673 = vpack.c.b16 %v664, %v663
        %v674 = vpack.c.b16 %v666, %v665
        %683 = vmatprep.subr.bf16.mxu0 0
        %684 = vmatpush1.bf16.msra.mxu0 %v667
        %685 = vmatprep.subr.bf16.mxu0 0
        %686 = vmatpush1.bf16.msra.mxu0 %v668
        %687 = vmatprep.subr.bf16.mxu0 0
        %688 = vmatpush1.bf16.msra.mxu0 %v669
        %689 = vmatprep.subr.bf16.mxu0 0
        %690 = vmatpush1.bf16.msra.mxu0 %v670
        %691 = vmatprep.subr.bf16.mxu0 0
        %692 = vmatpush1.bf16.msra.mxu0 %v671
        %693 = vmatprep.subr.bf16.mxu0 0
        %694 = vmatpush1.bf16.msra.mxu0 %v672
        %695 = vmatprep.subr.bf16.mxu0 0
        %696 = vmatpush1.bf16.msra.mxu0 %v673
        %697 = vmatprep.subr.bf16.mxu0 0
        %698 = vmatpush1.bf16.msra.mxu0 %v674
        %699 = vmatprep.subr.bf16.mxu0 0
        %700 = vmatpush1.bf16.msra.mxu0 0
        %701 = vmatprep.subr.bf16.mxu0 0
        %702 = vmatpush1.bf16.msra.mxu0 0
        %703 = vmatprep.subr.bf16.mxu0 0
        %704 = vmatpush1.bf16.msra.mxu0 0
        %705 = vmatprep.subr.bf16.mxu0 0
        %706 = vmatpush1.bf16.msra.mxu0 0
        %707 = vmatprep.subr.bf16.mxu0 0
        %708 = vmatpush1.bf16.msra.mxu0 0
        %709 = vmatprep.subr.bf16.mxu0 0
        %710 = vmatpush1.bf16.msra.mxu0 0
        %711 = vmatprep.subr.bf16.mxu0 0
        %712 = vmatpush1.bf16.msra.mxu0 0
        %713 = vmatprep.subr.bf16.mxu0 0
        %714 = vmatpush1.bf16.msra.mxu0 0
        %715 = vmatprep.mubr.bf16.mxu0 0
        %716 = vmatmul.mubr.bf16.gmra.mrb[0].mxu0 %v617
        %v717 = vpop.f32.mrb[0].mxu0
        %v718 = vadd.f32 0.0, %v717
        %v719 = vpop.f32.mrb[0].mxu0
        %v720 = vpop.f32.mrb[0].mxu0
        %v721 = vadd.f32 0.0, %v720
        %v722 = vpop.f32.mrb[0].mxu0
        %723 = vdwg.mxu0
        %v740 = vunpack.c.l.b16 %v549
        %v741 = vunpack.c.l.b16 %v550
        %v742 = vunpack.c.l.b16 %v551
        %v743 = vunpack.c.l.b16 %v552
        %v744 = vunpack.c.l.b16 %v553
        %v745 = vunpack.c.l.b16 %v554
        %v746 = vunpack.c.l.b16 %v555
        %v747 = vunpack.c.l.b16 %v556
        %v748 = vunpack.c.l.b16 %v557
        %v749 = vunpack.c.l.b16 %v558
        %v750 = vunpack.c.l.b16 %v559
        %v751 = vunpack.c.l.b16 %v560
        %v752 = vunpack.c.l.b16 %v561
        %v753 = vunpack.c.l.b16 %v562
        %v754 = vunpack.c.l.b16 %v563
        %v755 = vunpack.c.l.b16 %v564
        %v756 = vpack.c.b16 %v741, %v740
        %v757 = vpack.c.b16 %v743, %v742
        %v758 = vpack.c.b16 %v745, %v744
        %v759 = vpack.c.b16 %v747, %v746
        %v760 = vpack.c.b16 %v749, %v748
        %v761 = vpack.c.b16 %v751, %v750
        %v762 = vpack.c.b16 %v753, %v752
        %v763 = vpack.c.b16 %v755, %v754
        %772 = vmatprep.subr.bf16.mxu0 0
        %773 = vmatpush1.bf16.msra.mxu0 %v756
        %774 = vmatprep.subr.bf16.mxu0 0
        %775 = vmatpush1.bf16.msra.mxu0 %v757
        %776 = vmatprep.subr.bf16.mxu0 0
        %777 = vmatpush1.bf16.msra.mxu0 %v758
        %778 = vmatprep.subr.bf16.mxu0 0
        %779 = vmatpush1.bf16.msra.mxu0 %v759
        %780 = vmatprep.subr.bf16.mxu0 0
        %781 = vmatpush1.bf16.msra.mxu0 %v760
        %782 = vmatprep.subr.bf16.mxu0 0
        %783 = vmatpush1.bf16.msra.mxu0 %v761
        %784 = vmatprep.subr.bf16.mxu0 0
        %785 = vmatpush1.bf16.msra.mxu0 %v762
        %786 = vmatprep.subr.bf16.mxu0 0
        %787 = vmatpush1.bf16.msra.mxu0 %v763
        %788 = vmatprep.subr.bf16.mxu0 0
        %789 = vmatpush1.bf16.msra.mxu0 0
        %790 = vmatprep.subr.bf16.mxu0 0
        %791 = vmatpush1.bf16.msra.mxu0 0
        %792 = vmatprep.subr.bf16.mxu0 0
        %793 = vmatpush1.bf16.msra.mxu0 0
        %794 = vmatprep.subr.bf16.mxu0 0
        %795 = vmatpush1.bf16.msra.mxu0 0
        %796 = vmatprep.subr.bf16.mxu0 0
        %797 = vmatpush1.bf16.msra.mxu0 0
        %798 = vmatprep.subr.bf16.mxu0 0
        %799 = vmatpush1.bf16.msra.mxu0 0
        %800 = vmatprep.subr.bf16.mxu0 0
        %801 = vmatpush1.bf16.msra.mxu0 0
        %802 = vmatprep.subr.bf16.mxu0 0
        %803 = vmatpush1.bf16.msra.mxu0 0
        %804 = vmatprep.mubr.bf16.mxu0 0
        %805 = vmatmul.mubr.bf16.gmra.mrb[0].mxu0 %v548
        %v806 = vpop.f32.mrb[0].mxu0
        %v807 = vadd.f32 %v718, %v806
        %v808 = vpop.f32.mrb[0].mxu0
        %v809 = vpop.f32.mrb[0].mxu0
        %v810 = vadd.f32 %v721, %v809
        %v811 = vpop.f32.mrb[0].mxu0
        %812 = vdwg.mxu0
        %s813 = scalar_lea.vmem %s1, 16
        %v814 = vld [vmem:[%s813] sm:$0xf]
        %v815 = vld [vmem:[%s813 + $0x4] sm:$0xf]
        %v818 = vunpack.c.l.b16 %v814
        %v819 = vunpack.c.l.b16 %v815
        %v820 = vpack.c.b16 %v819, %v818
        %v822 = vsel %vm499, %v820, 0
        %824 = vmatprep.subr.bf16.mxu0 0
        %825 = vmatpush1.bf16.msra.mxu0 %v489
        %826 = vmatprep.subr.bf16.mxu0 0
        %827 = vmatpush1.bf16.msra.mxu0 %v490
        %828 = vmatprep.subr.bf16.mxu0 0
        %829 = vmatpush1.bf16.msra.mxu0 %v505
        %830 = vmatprep.subr.bf16.mxu0 0
        %831 = vmatpush1.bf16.msra.mxu0 0
        %832 = vmatprep.subr.bf16.mxu0 0
        %833 = vmatpush1.bf16.msra.mxu0 0
        %834 = vmatprep.subr.bf16.mxu0 0
        %835 = vmatpush1.bf16.msra.mxu0 0
        %836 = vmatprep.subr.bf16.mxu0 0
        %837 = vmatpush1.bf16.msra.mxu0 0
        %838 = vmatprep.subr.bf16.mxu0 0
        %839 = vmatpush1.bf16.msra.mxu0 0
        %840 = vmatprep.subr.bf16.mxu0 0
        %841 = vmatpush1.bf16.msra.mxu0 0
        %842 = vmatprep.subr.bf16.mxu0 0
        %843 = vmatpush1.bf16.msra.mxu0 0
        %844 = vmatprep.subr.bf16.mxu0 0
        %845 = vmatpush1.bf16.msra.mxu0 0
        %846 = vmatprep.subr.bf16.mxu0 0
        %847 = vmatpush1.bf16.msra.mxu0 0
        %848 = vmatprep.subr.bf16.mxu0 0
        %849 = vmatpush1.bf16.msra.mxu0 0
        %850 = vmatprep.subr.bf16.mxu0 0
        %851 = vmatpush1.bf16.msra.mxu0 0
        %852 = vmatprep.subr.bf16.mxu0 0
        %853 = vmatpush1.bf16.msra.mxu0 0
        %854 = vmatprep.subr.bf16.mxu0 0
        %855 = vmatpush1.bf16.msra.mxu0 0
        %856 = vmatprep.mubr.bf16.mxu0 0
        %857 = vmatmul.mubr.bf16.gmra.mrb[0].mxu0 %v822
        %v858 = vpop.f32.mrb[0].mxu0
        %v859 = vadd.f32 0.0, %v858
        %v860 = vpop.f32.mrb[0].mxu0
        %v861 = vpop.f32.mrb[0].mxu0
        %v862 = vadd.f32 0.0, %v861
        %v863 = vpop.f32.mrb[0].mxu0
        %864 = vdwg.mxu0
        %v865 = vpack.c.bf16 %v862, %v859
        %s866 = scalar_lea.vmem %s4, 128
        %v867 = vld [vmem:[%s866] sm:$0xf]
        %v868 = vld [vmem:[%s866 + $0x4] sm:$0xf]
        %v869 = vld [vmem:[%s866 + $0x8] sm:$0xf]
        %v870 = vld [vmem:[%s866 + $0xc] sm:$0xf]
        %v871 = vld [vmem:[%s866 + $0x10] sm:$0xf]
        %v872 = vld [vmem:[%s866 + $0x14] sm:$0xf]
        %v873 = vld [vmem:[%s866 + $0x18] sm:$0xf]
        %v874 = vld [vmem:[%s866 + $0x1c] sm:$0xf]
        %v875 = vld [vmem:[%s866 + $0x20] sm:$0xf]
        %v876 = vld [vmem:[%s866 + $0x24] sm:$0xf]
        %v877 = vld [vmem:[%s866 + $0x28] sm:$0xf]
        %v878 = vld [vmem:[%s866 + $0x2c] sm:$0xf]
        %v879 = vld [vmem:[%s866 + $0x30] sm:$0xf]
        %v880 = vld [vmem:[%s866 + $0x34] sm:$0xf]
        %v881 = vld [vmem:[%s866 + $0x38] sm:$0xf]
        %v882 = vld [vmem:[%s866 + $0x3c] sm:$0xf]
        %v899 = vunpack.c.l.b16 %v867
        %v900 = vunpack.c.l.b16 %v868
        %v901 = vunpack.c.l.b16 %v869
        %v902 = vunpack.c.l.b16 %v870
        %v903 = vunpack.c.l.b16 %v871
        %v904 = vunpack.c.l.b16 %v872
        %v905 = vunpack.c.l.b16 %v873
        %v906 = vunpack.c.l.b16 %v874
        %v907 = vunpack.c.l.b16 %v875
        %v908 = vunpack.c.l.b16 %v876
        %v909 = vunpack.c.l.b16 %v877
        %v910 = vunpack.c.l.b16 %v878
        %v911 = vunpack.c.l.b16 %v879
        %v912 = vunpack.c.l.b16 %v880
        %v913 = vunpack.c.l.b16 %v881
        %v914 = vunpack.c.l.b16 %v882
        %v915 = vpack.c.b16 %v900, %v899
        %v916 = vpack.c.b16 %v902, %v901
        %v917 = vpack.c.b16 %v904, %v903
        %v918 = vpack.c.b16 %v906, %v905
        %v919 = vpack.c.b16 %v908, %v907
        %v920 = vpack.c.b16 %v910, %v909
        %v921 = vpack.c.b16 %v912, %v911
        %v922 = vpack.c.b16 %v914, %v913
        %931 = vmatprep.subr.bf16.mxu0 0
        %932 = vmatpush1.bf16.msra.mxu0 %v915
        %933 = vmatprep.subr.bf16.mxu0 0
        %934 = vmatpush1.bf16.msra.mxu0 %v916
        %935 = vmatprep.subr.bf16.mxu0 0
        %936 = vmatpush1.bf16.msra.mxu0 %v917
        %937 = vmatprep.subr.bf16.mxu0 0
        %938 = vmatpush1.bf16.msra.mxu0 %v918
        %939 = vmatprep.subr.bf16.mxu0 0
        %940 = vmatpush1.bf16.msra.mxu0 %v919
        %941 = vmatprep.subr.bf16.mxu0 0
        %942 = vmatpush1.bf16.msra.mxu0 %v920
        %943 = vmatprep.subr.bf16.mxu0 0
        %944 = vmatpush1.bf16.msra.mxu0 %v921
        %945 = vmatprep.subr.bf16.mxu0 0
        %946 = vmatpush1.bf16.msra.mxu0 %v922
        %947 = vmatprep.subr.bf16.mxu0 0
        %948 = vmatpush1.bf16.msra.mxu0 0
        %949 = vmatprep.subr.bf16.mxu0 0
        %950 = vmatpush1.bf16.msra.mxu0 0
        %951 = vmatprep.subr.bf16.mxu0 0
        %952 = vmatpush1.bf16.msra.mxu0 0
        %953 = vmatprep.subr.bf16.mxu0 0
        %954 = vmatpush1.bf16.msra.mxu0 0
        %955 = vmatprep.subr.bf16.mxu0 0
        %956 = vmatpush1.bf16.msra.mxu0 0
        %957 = vmatprep.subr.bf16.mxu0 0
        %958 = vmatpush1.bf16.msra.mxu0 0
        %959 = vmatprep.subr.bf16.mxu0 0
        %960 = vmatpush1.bf16.msra.mxu0 0
        %961 = vmatprep.subr.bf16.mxu0 0
        %962 = vmatpush1.bf16.msra.mxu0 0
        %963 = vmatprep.mubr.bf16.mxu0 0
        %964 = vmatmul.mubr.bf16.gmra.mrb[0].mxu0 %v865
        %v965 = vpop.f32.mrb[0].mxu0
        %v966 = vadd.f32 0.0, %v965
        %v967 = vpop.f32.mrb[0].mxu0
        %v968 = vpop.f32.mrb[0].mxu0
        %v969 = vadd.f32 0.0, %v968
        %v970 = vpop.f32.mrb[0].mxu0
        %971 = vdwg.mxu0
        %v972 = vadd.f32 %v807, %v966
        %v973 = vadd.f32 %v810, %v969
        %s974 = scalar_lea.vmem %s1, 24
        %v975 = vld [vmem:[%s974] sm:$0xf]
        %v976 = vld [vmem:[%s974 + $0x4] sm:$0xf]
        %v979 = vunpack.c.l.b16 %v975
        %v980 = vunpack.c.l.b16 %v976
        %v981 = vpack.c.b16 %v980, %v979
        %v983 = vsel %vm499, %v981, 0
        %985 = vmatprep.subr.bf16.mxu0 0
        %986 = vmatpush1.bf16.msra.mxu0 %v489
        %987 = vmatprep.subr.bf16.mxu0 0
        %988 = vmatpush1.bf16.msra.mxu0 %v490
        %989 = vmatprep.subr.bf16.mxu0 0
        %990 = vmatpush1.bf16.msra.mxu0 %v505
        %991 = vmatprep.subr.bf16.mxu0 0
        %992 = vmatpush1.bf16.msra.mxu0 0
        %993 = vmatprep.subr.bf16.mxu0 0
        %994 = vmatpush1.bf16.msra.mxu0 0
        %995 = vmatprep.subr.bf16.mxu0 0
        %996 = vmatpush1.bf16.msra.mxu0 0
        %997 = vmatprep.subr.bf16.mxu0 0
        %998 = vmatpush1.bf16.msra.mxu0 0
        %999 = vmatprep.subr.bf16.mxu0 0
        %1000 = vmatpush1.bf16.msra.mxu0 0
        %1001 = vmatprep.subr.bf16.mxu0 0
        %1002 = vmatpush1.bf16.msra.mxu0 0
        %1003 = vmatprep.subr.bf16.mxu0 0
        %1004 = vmatpush1.bf16.msra.mxu0 0
        %1005 = vmatprep.subr.bf16.mxu0 0
        %1006 = vmatpush1.bf16.msra.mxu0 0
        %1007 = vmatprep.subr.bf16.mxu0 0
        %1008 = vmatpush1.bf16.msra.mxu0 0
        %1009 = vmatprep.subr.bf16.mxu0 0
        %1010 = vmatpush1.bf16.msra.mxu0 0
        %1011 = vmatprep.subr.bf16.mxu0 0
        %1012 = vmatpush1.bf16.msra.mxu0 0
        %1013 = vmatprep.subr.bf16.mxu0 0
        %1014 = vmatpush1.bf16.msra.mxu0 0
        %1015 = vmatprep.subr.bf16.mxu0 0
        %1016 = vmatpush1.bf16.msra.mxu0 0
        %1017 = vmatprep.mubr.bf16.mxu0 0
        %1018 = vmatmul.mubr.bf16.gmra.mrb[0].mxu0 %v983
        %v1019 = vpop.f32.mrb[0].mxu0
        %v1020 = vadd.f32 0.0, %v1019
        %v1021 = vpop.f32.mrb[0].mxu0
        %v1022 = vpop.f32.mrb[0].mxu0
        %v1023 = vadd.f32 0.0, %v1022
        %v1024 = vpop.f32.mrb[0].mxu0
        %1025 = vdwg.mxu0
        %v1026 = vpack.c.bf16 %v1023, %v1020
        %s1027 = scalar_lea.vmem %s4, 192
        %v1028 = vld [vmem:[%s1027] sm:$0xf]
        %v1029 = vld [vmem:[%s1027 + $0x4] sm:$0xf]
        %v1030 = vld [vmem:[%s1027 + $0x8] sm:$0xf]
        %v1031 = vld [vmem:[%s1027 + $0xc] sm:$0xf]
        %v1032 = vld [vmem:[%s1027 + $0x10] sm:$0xf]
        %v1033 = vld [vmem:[%s1027 + $0x14] sm:$0xf]
        %v1034 = vld [vmem:[%s1027 + $0x18] sm:$0xf]
        %v1035 = vld [vmem:[%s1027 + $0x1c] sm:$0xf]
        %v1036 = vld [vmem:[%s1027 + $0x20] sm:$0xf]
        %v1037 = vld [vmem:[%s1027 + $0x24] sm:$0xf]
        %v1038 = vld [vmem:[%s1027 + $0x28] sm:$0xf]
        %v1039 = vld [vmem:[%s1027 + $0x2c] sm:$0xf]
        %v1040 = vld [vmem:[%s1027 + $0x30] sm:$0xf]
        %v1041 = vld [vmem:[%s1027 + $0x34] sm:$0xf]
        %v1042 = vld [vmem:[%s1027 + $0x38] sm:$0xf]
        %v1043 = vld [vmem:[%s1027 + $0x3c] sm:$0xf]
        %v1060 = vunpack.c.l.b16 %v1028
        %v1061 = vunpack.c.l.b16 %v1029
        %v1062 = vunpack.c.l.b16 %v1030
        %v1063 = vunpack.c.l.b16 %v1031
        %v1064 = vunpack.c.l.b16 %v1032
        %v1065 = vunpack.c.l.b16 %v1033
        %v1066 = vunpack.c.l.b16 %v1034
        %v1067 = vunpack.c.l.b16 %v1035
        %v1068 = vunpack.c.l.b16 %v1036
        %v1069 = vunpack.c.l.b16 %v1037
        %v1070 = vunpack.c.l.b16 %v1038
        %v1071 = vunpack.c.l.b16 %v1039
        %v1072 = vunpack.c.l.b16 %v1040
        %v1073 = vunpack.c.l.b16 %v1041
        %v1074 = vunpack.c.l.b16 %v1042
        %v1075 = vunpack.c.l.b16 %v1043
        %v1076 = vpack.c.b16 %v1061, %v1060
        %v1077 = vpack.c.b16 %v1063, %v1062
        %v1078 = vpack.c.b16 %v1065, %v1064
        %v1079 = vpack.c.b16 %v1067, %v1066
        %v1080 = vpack.c.b16 %v1069, %v1068
        %v1081 = vpack.c.b16 %v1071, %v1070
        %v1082 = vpack.c.b16 %v1073, %v1072
        %v1083 = vpack.c.b16 %v1075, %v1074
        %1092 = vmatprep.subr.bf16.mxu0 0
        %1093 = vmatpush1.bf16.msra.mxu0 %v1076
        %1094 = vmatprep.subr.bf16.mxu0 0
        %1095 = vmatpush1.bf16.msra.mxu0 %v1077
        %1096 = vmatprep.subr.bf16.mxu0 0
        %1097 = vmatpush1.bf16.msra.mxu0 %v1078
        %1098 = vmatprep.subr.bf16.mxu0 0
        %1099 = vmatpush1.bf16.msra.mxu0 %v1079
        %1100 = vmatprep.subr.bf16.mxu0 0
        %1101 = vmatpush1.bf16.msra.mxu0 %v1080
        %1102 = vmatprep.subr.bf16.mxu0 0
        %1103 = vmatpush1.bf16.msra.mxu0 %v1081
        %1104 = vmatprep.subr.bf16.mxu0 0
        %1105 = vmatpush1.bf16.msra.mxu0 %v1082
        %1106 = vmatprep.subr.bf16.mxu0 0
        %1107 = vmatpush1.bf16.msra.mxu0 %v1083
        %1108 = vmatprep.subr.bf16.mxu0 0
        %1109 = vmatpush1.bf16.msra.mxu0 0
        %1110 = vmatprep.subr.bf16.mxu0 0
        %1111 = vmatpush1.bf16.msra.mxu0 0
        %1112 = vmatprep.subr.bf16.mxu0 0
        %1113 = vmatpush1.bf16.msra.mxu0 0
        %1114 = vmatprep.subr.bf16.mxu0 0
        %1115 = vmatpush1.bf16.msra.mxu0 0
        %1116 = vmatprep.subr.bf16.mxu0 0
        %1117 = vmatpush1.bf16.msra.mxu0 0
        %1118 = vmatprep.subr.bf16.mxu0 0
        %1119 = vmatpush1.bf16.msra.mxu0 0
        %1120 = vmatprep.subr.bf16.mxu0 0
        %1121 = vmatpush1.bf16.msra.mxu0 0
        %1122 = vmatprep.subr.bf16.mxu0 0
        %1123 = vmatpush1.bf16.msra.mxu0 0
        %1124 = vmatprep.mubr.bf16.mxu0 0
        %1125 = vmatmul.mubr.bf16.gmra.mrb[0].mxu0 %v1026
        %v1126 = vpop.f32.mrb[0].mxu0
        %v1127 = vadd.f32 0.0, %v1126
        %v1128 = vpop.f32.mrb[0].mxu0
        %v1129 = vpop.f32.mrb[0].mxu0
        %v1130 = vadd.f32 0.0, %v1129
        %v1131 = vpop.f32.mrb[0].mxu0
        %1132 = vdwg.mxu0
        %v1133 = vadd.f32 %v972, %v1127
        %v1134 = vadd.f32 %v973, %v1130
        %v1135 = vld [vmem:[%s9] sm:$0x1]
        %v1137 = vlaneseq
        %v1138 = vshrl.u32 %v1137, 7
        %v1139 = vsub.s32 0, %v1138
        %v1140 = vrot.slane %v1135, %v1139
        %v1142 = vadd.f32 %v1133, %v1140
        %v1143 = vadd.f32 %v1134, %v1140
        %vm1144 = vcmp.ge.f32.partialorder %v1142, 0.0
        %vm1145 = vcmp.ge.f32.partialorder %v1143, 0.0
        %v1146 = vmul.f32 %v1142, 0.01
        %v1147 = vmul.f32 %v1143, 0.01
        %v1148 = vsel %vm1144, %v1142, %v1146
        %v1149 = vsel %vm1145, %v1143, %v1147
        %1150 = vst [vmem:[#allocation2] sm:$0xff] 0.0
        %1151 = vst [vmem:[#allocation2 + $0x8] sm:$0xff] 0.0
        %1152 = vst [vmem:[#allocation2 + $0x10] sm:$0x3] 0.0
        %1153 = vst [vmem:[#allocation2 + $0x1] sm:$0xff] %v1148
        %1154 = vst [vmem:[#allocation2 + $0x9] sm:$0xff] %v1149
        %v1155 = vld [vmem:[#allocation2] sm:$0xff]
        %v1156 = vld [vmem:[#allocation2 + $0x8] sm:$0xff]
        %v1157 = vld [vmem:[#allocation2 + $0x10] sm:$0x3]
        %v1158 = vpack.c.bf16 %v1156, %v1155
        %v1159 = vpack.c.bf16 %v1157, %v1157
        %v1160 = vld [vmem:[%s2] sm:$0xf]
        %vm1161 = vcmask 146432
        %v1163 = vsel %vm1161, %v1160, 0
        %v1166 = vsel %vm503, %v1159, 0
        %1168 = vmatprep.subr.bf16.mxu0 0
        %1169 = vmatpush1.bf16.msra.mxu0 %v1158
        %1170 = vmatprep.subr.bf16.mxu0 0
        %1171 = vmatpush1.bf16.msra.mxu0 %v1166
        %1172 = vmatprep.subr.bf16.mxu0 0
        %1173 = vmatpush1.bf16.msra.mxu0 0
        %1174 = vmatprep.subr.bf16.mxu0 0
        %1175 = vmatpush1.bf16.msra.mxu0 0
        %1176 = vmatprep.subr.bf16.mxu0 0
        %1177 = vmatpush1.bf16.msra.mxu0 0
        %1178 = vmatprep.subr.bf16.mxu0 0
        %1179 = vmatpush1.bf16.msra.mxu0 0
        %1180 = vmatprep.subr.bf16.mxu0 0
        %1181 = vmatpush1.bf16.msra.mxu0 0
        %1182 = vmatprep.subr.bf16.mxu0 0
        %1183 = vmatpush1.bf16.msra.mxu0 0
        %1184 = vmatprep.subr.bf16.mxu0 0
        %1185 = vmatpush1.bf16.msra.mxu0 0
        %1186 = vmatprep.subr.bf16.mxu0 0
        %1187 = vmatpush1.bf16.msra.mxu0 0
        %1188 = vmatprep.subr.bf16.mxu0 0
        %1189 = vmatpush1.bf16.msra.mxu0 0
        %1190 = vmatprep.subr.bf16.mxu0 0
        %1191 = vmatpush1.bf16.msra.mxu0 0
        %1192 = vmatprep.subr.bf16.mxu0 0
        %1193 = vmatpush1.bf16.msra.mxu0 0
        %1194 = vmatprep.subr.bf16.mxu0 0
        %1195 = vmatpush1.bf16.msra.mxu0 0
        %1196 = vmatprep.subr.bf16.mxu0 0
        %1197 = vmatpush1.bf16.msra.mxu0 0
        %1198 = vmatprep.subr.bf16.mxu0 0
        %1199 = vmatpush1.bf16.msra.mxu0 0
        %1200 = vmatprep.mubr.bf16.mxu0 0
        %1201 = vmatmul.mubr.bf16.gmra.mrb[0].mxu0 %v1163
        %v1202 = vpop.f32.mrb[0].mxu0
        %v1203 = vadd.f32 0.0, %v1202
        %v1204 = vpop.f32.mrb[0].mxu0
        %v1205 = vpop.f32.mrb[0].mxu0
        %v1206 = vpop.f32.mrb[0].mxu0
        %1207 = vdwg.mxu0
        %v1208 = vpack.c.bf16 %v1203, %v1203
        %v1209 = vld [vmem:[#allocation6] sm:$0xf]
        %v1210 = vld [vmem:[#allocation6 + $0x4] sm:$0xf]
        %v1211 = vld [vmem:[#allocation6 + $0x8] sm:$0xf]
        %v1212 = vld [vmem:[#allocation6 + $0xc] sm:$0xf]
        %v1213 = vld [vmem:[#allocation6 + $0x10] sm:$0xf]
        %v1214 = vld [vmem:[#allocation6 + $0x14] sm:$0xf]
        %v1215 = vld [vmem:[#allocation6 + $0x18] sm:$0xf]
        %v1216 = vld [vmem:[#allocation6 + $0x1c] sm:$0xf]
        %v1217 = vld [vmem:[#allocation6 + $0x20] sm:$0xf]
        %v1218 = vld [vmem:[#allocation6 + $0x24] sm:$0xf]
        %v1219 = vld [vmem:[#allocation6 + $0x28] sm:$0xf]
        %v1220 = vld [vmem:[#allocation6 + $0x2c] sm:$0xf]
        %v1221 = vld [vmem:[#allocation6 + $0x30] sm:$0xf]
        %v1222 = vld [vmem:[#allocation6 + $0x34] sm:$0xf]
        %v1223 = vld [vmem:[#allocation6 + $0x38] sm:$0xf]
        %v1224 = vld [vmem:[#allocation6 + $0x3c] sm:$0xf]
        %s1225 = scalar_lea.vmem %s2, 4
        %v1226 = vld [vmem:[%s1225] sm:$0xf]
        %v1228 = vsel %vm1161, %v1226, 0
        %1230 = vmatprep.subr.bf16.mxu0 0
        %1231 = vmatpush1.bf16.msra.mxu0 %v1158
        %1232 = vmatprep.subr.bf16.mxu0 0
        %1233 = vmatpush1.bf16.msra.mxu0 %v1166
        %1234 = vmatprep.subr.bf16.mxu0 0
        %1235 = vmatpush1.bf16.msra.mxu0 0
        %1236 = vmatprep.subr.bf16.mxu0 0
        %1237 = vmatpush1.bf16.msra.mxu0 0
        %1238 = vmatprep.subr.bf16.mxu0 0
        %1239 = vmatpush1.bf16.msra.mxu0 0
        %1240 = vmatprep.subr.bf16.mxu0 0
        %1241 = vmatpush1.bf16.msra.mxu0 0
        %1242 = vmatprep.subr.bf16.mxu0 0
        %1243 = vmatpush1.bf16.msra.mxu0 0
        %1244 = vmatprep.subr.bf16.mxu0 0
        %1245 = vmatpush1.bf16.msra.mxu0 0
        %1246 = vmatprep.subr.bf16.mxu0 0
        %1247 = vmatpush1.bf16.msra.mxu0 0
        %1248 = vmatprep.subr.bf16.mxu0 0
        %1249 = vmatpush1.bf16.msra.mxu0 0
        %1250 = vmatprep.subr.bf16.mxu0 0
        %1251 = vmatpush1.bf16.msra.mxu0 0
        %1252 = vmatprep.subr.bf16.mxu0 0
        %1253 = vmatpush1.bf16.msra.mxu0 0
        %1254 = vmatprep.subr.bf16.mxu0 0
        %1255 = vmatpush1.bf16.msra.mxu0 0
        %1256 = vmatprep.subr.bf16.mxu0 0
        %1257 = vmatpush1.bf16.msra.mxu0 0
        %1258 = vmatprep.subr.bf16.mxu0 0
        %1259 = vmatpush1.bf16.msra.mxu0 0
        %1260 = vmatprep.subr.bf16.mxu0 0
        %1261 = vmatpush1.bf16.msra.mxu0 0
        %1262 = vmatprep.mubr.bf16.mxu0 0
        %1263 = vmatmul.mubr.bf16.gmra.mrb[0].mxu0 %v1228
        %v1264 = vpop.f32.mrb[0].mxu0
        %v1265 = vadd.f32 0.0, %v1264
        %v1266 = vpop.f32.mrb[0].mxu0
        %v1267 = vpop.f32.mrb[0].mxu0
        %v1268 = vpop.f32.mrb[0].mxu0
        %1269 = vdwg.mxu0
        %v1270 = vpack.c.bf16 %v1265, %v1265
        %s1271 = scalar_lea.vmem [#allocation6], 64
        %v1272 = vld [vmem:[%s1271] sm:$0xf]
        %v1273 = vld [vmem:[%s1271 + $0x4] sm:$0xf]
        %v1274 = vld [vmem:[%s1271 + $0x8] sm:$0xf]
        %v1275 = vld [vmem:[%s1271 + $0xc] sm:$0xf]
        %v1276 = vld [vmem:[%s1271 + $0x10] sm:$0xf]
        %v1277 = vld [vmem:[%s1271 + $0x14] sm:$0xf]
        %v1278 = vld [vmem:[%s1271 + $0x18] sm:$0xf]
        %v1279 = vld [vmem:[%s1271 + $0x1c] sm:$0xf]
        %v1280 = vld [vmem:[%s1271 + $0x20] sm:$0xf]
        %v1281 = vld [vmem:[%s1271 + $0x24] sm:$0xf]
        %v1282 = vld [vmem:[%s1271 + $0x28] sm:$0xf]
        %v1283 = vld [vmem:[%s1271 + $0x2c] sm:$0xf]
        %v1284 = vld [vmem:[%s1271 + $0x30] sm:$0xf]
        %v1285 = vld [vmem:[%s1271 + $0x34] sm:$0xf]
        %v1286 = vld [vmem:[%s1271 + $0x38] sm:$0xf]
        %v1287 = vld [vmem:[%s1271 + $0x3c] sm:$0xf]
        %v1304 = vunpack.c.l.b16 %v1272
        %v1305 = vunpack.c.l.b16 %v1273
        %v1306 = vunpack.c.l.b16 %v1274
        %v1307 = vunpack.c.l.b16 %v1275
        %v1308 = vunpack.c.l.b16 %v1276
        %v1309 = vunpack.c.l.b16 %v1277
        %v1310 = vunpack.c.l.b16 %v1278
        %v1311 = vunpack.c.l.b16 %v1279
        %v1312 = vunpack.c.l.b16 %v1280
        %v1313 = vunpack.c.l.b16 %v1281
        %v1314 = vunpack.c.l.b16 %v1282
        %v1315 = vunpack.c.l.b16 %v1283
        %v1316 = vunpack.c.l.b16 %v1284
        %v1317 = vunpack.c.l.b16 %v1285
        %v1318 = vunpack.c.l.b16 %v1286
        %v1319 = vunpack.c.l.b16 %v1287
        %v1320 = vpack.c.b16 %v1305, %v1304
        %v1321 = vpack.c.b16 %v1307, %v1306
        %v1322 = vpack.c.b16 %v1309, %v1308
        %v1323 = vpack.c.b16 %v1311, %v1310
        %v1324 = vpack.c.b16 %v1313, %v1312
        %v1325 = vpack.c.b16 %v1315, %v1314
        %v1326 = vpack.c.b16 %v1317, %v1316
        %v1327 = vpack.c.b16 %v1319, %v1318
        %1336 = vmatprep.subr.bf16.mxu0 0
        %1337 = vmatpush1.bf16.msra.mxu0 %v1320
        %1338 = vmatprep.subr.bf16.mxu0 0
        %1339 = vmatpush1.bf16.msra.mxu0 %v1321
        %1340 = vmatprep.subr.bf16.mxu0 0
        %1341 = vmatpush1.bf16.msra.mxu0 %v1322
        %1342 = vmatprep.subr.bf16.mxu0 0
        %1343 = vmatpush1.bf16.msra.mxu0 %v1323
        %1344 = vmatprep.subr.bf16.mxu0 0
        %1345 = vmatpush1.bf16.msra.mxu0 %v1324
        %1346 = vmatprep.subr.bf16.mxu0 0
        %1347 = vmatpush1.bf16.msra.mxu0 %v1325
        %1348 = vmatprep.subr.bf16.mxu0 0
        %1349 = vmatpush1.bf16.msra.mxu0 %v1326
        %1350 = vmatprep.subr.bf16.mxu0 0
        %1351 = vmatpush1.bf16.msra.mxu0 %v1327
        %1352 = vmatprep.subr.bf16.mxu0 0
        %1353 = vmatpush1.bf16.msra.mxu0 0
        %1354 = vmatprep.subr.bf16.mxu0 0
        %1355 = vmatpush1.bf16.msra.mxu0 0
        %1356 = vmatprep.subr.bf16.mxu0 0
        %1357 = vmatpush1.bf16.msra.mxu0 0
        %1358 = vmatprep.subr.bf16.mxu0 0
        %1359 = vmatpush1.bf16.msra.mxu0 0
        %1360 = vmatprep.subr.bf16.mxu0 0
        %1361 = vmatpush1.bf16.msra.mxu0 0
        %1362 = vmatprep.subr.bf16.mxu0 0
        %1363 = vmatpush1.bf16.msra.mxu0 0
        %1364 = vmatprep.subr.bf16.mxu0 0
        %1365 = vmatpush1.bf16.msra.mxu0 0
        %1366 = vmatprep.subr.bf16.mxu0 0
        %1367 = vmatpush1.bf16.msra.mxu0 0
        %1368 = vmatprep.mubr.bf16.mxu0 0
        %1369 = vmatmul.mubr.bf16.gmra.mrb[0].mxu0 %v1270
        %v1370 = vpop.f32.mrb[0].mxu0
        %v1371 = vadd.f32 0.0, %v1370
        %v1372 = vpop.f32.mrb[0].mxu0
        %v1373 = vpop.f32.mrb[0].mxu0
        %v1374 = vpop.f32.mrb[0].mxu0
        %1375 = vdwg.mxu0
        %v1392 = vunpack.c.l.b16 %v1209
        %v1393 = vunpack.c.l.b16 %v1210
        %v1394 = vunpack.c.l.b16 %v1211
        %v1395 = vunpack.c.l.b16 %v1212
        %v1396 = vunpack.c.l.b16 %v1213
        %v1397 = vunpack.c.l.b16 %v1214
        %v1398 = vunpack.c.l.b16 %v1215
        %v1399 = vunpack.c.l.b16 %v1216
        %v1400 = vunpack.c.l.b16 %v1217
        %v1401 = vunpack.c.l.b16 %v1218
        %v1402 = vunpack.c.l.b16 %v1219
        %v1403 = vunpack.c.l.b16 %v1220
        %v1404 = vunpack.c.l.b16 %v1221
        %v1405 = vunpack.c.l.b16 %v1222
        %v1406 = vunpack.c.l.b16 %v1223
        %v1407 = vunpack.c.l.b16 %v1224
        %v1408 = vpack.c.b16 %v1393, %v1392
        %v1409 = vpack.c.b16 %v1395, %v1394
        %v1410 = vpack.c.b16 %v1397, %v1396
        %v1411 = vpack.c.b16 %v1399, %v1398
        %v1412 = vpack.c.b16 %v1401, %v1400
        %v1413 = vpack.c.b16 %v1403, %v1402
        %v1414 = vpack.c.b16 %v1405, %v1404
        %v1415 = vpack.c.b16 %v1407, %v1406
        %1424 = vmatprep.subr.bf16.mxu0 0
        %1425 = vmatpush1.bf16.msra.mxu0 %v1408
        %1426 = vmatprep.subr.bf16.mxu0 0
        %1427 = vmatpush1.bf16.msra.mxu0 %v1409
        %1428 = vmatprep.subr.bf16.mxu0 0
        %1429 = vmatpush1.bf16.msra.mxu0 %v1410
        %1430 = vmatprep.subr.bf16.mxu0 0
        %1431 = vmatpush1.bf16.msra.mxu0 %v1411
        %1432 = vmatprep.subr.bf16.mxu0 0
        %1433 = vmatpush1.bf16.msra.mxu0 %v1412
        %1434 = vmatprep.subr.bf16.mxu0 0
        %1435 = vmatpush1.bf16.msra.mxu0 %v1413
        %1436 = vmatprep.subr.bf16.mxu0 0
        %1437 = vmatpush1.bf16.msra.mxu0 %v1414
        %1438 = vmatprep.subr.bf16.mxu0 0
        %1439 = vmatpush1.bf16.msra.mxu0 %v1415
        %1440 = vmatprep.subr.bf16.mxu0 0
        %1441 = vmatpush1.bf16.msra.mxu0 0
        %1442 = vmatprep.subr.bf16.mxu0 0
        %1443 = vmatpush1.bf16.msra.mxu0 0
        %1444 = vmatprep.subr.bf16.mxu0 0
        %1445 = vmatpush1.bf16.msra.mxu0 0
        %1446 = vmatprep.subr.bf16.mxu0 0
        %1447 = vmatpush1.bf16.msra.mxu0 0
        %1448 = vmatprep.subr.bf16.mxu0 0
        %1449 = vmatpush1.bf16.msra.mxu0 0
        %1450 = vmatprep.subr.bf16.mxu0 0
        %1451 = vmatpush1.bf16.msra.mxu0 0
        %1452 = vmatprep.subr.bf16.mxu0 0
        %1453 = vmatpush1.bf16.msra.mxu0 0
        %1454 = vmatprep.subr.bf16.mxu0 0
        %1455 = vmatpush1.bf16.msra.mxu0 0
        %1456 = vmatprep.mubr.bf16.mxu0 0
        %1457 = vmatmul.mubr.bf16.gmra.mrb[0].mxu0 %v1208
        %v1458 = vpop.f32.mrb[0].mxu0
        %v1459 = vadd.f32 %v1371, %v1458
        %v1460 = vpop.f32.mrb[0].mxu0
        %v1461 = vpop.f32.mrb[0].mxu0
        %v1462 = vpop.f32.mrb[0].mxu0
        %1463 = vdwg.mxu0
        %s1464 = scalar_lea.vmem %s2, 8
        %v1465 = vld [vmem:[%s1464] sm:$0xf]
        %v1467 = vsel %vm1161, %v1465, 0
        %1469 = vmatprep.subr.bf16.mxu0 0
        %1470 = vmatpush1.bf16.msra.mxu0 %v1158
        %1471 = vmatprep.subr.bf16.mxu0 0
        %1472 = vmatpush1.bf16.msra.mxu0 %v1166
        %1473 = vmatprep.subr.bf16.mxu0 0
        %1474 = vmatpush1.bf16.msra.mxu0 0
        %1475 = vmatprep.subr.bf16.mxu0 0
        %1476 = vmatpush1.bf16.msra.mxu0 0
        %1477 = vmatprep.subr.bf16.mxu0 0
        %1478 = vmatpush1.bf16.msra.mxu0 0
        %1479 = vmatprep.subr.bf16.mxu0 0
        %1480 = vmatpush1.bf16.msra.mxu0 0
        %1481 = vmatprep.subr.bf16.mxu0 0
        %1482 = vmatpush1.bf16.msra.mxu0 0
        %1483 = vmatprep.subr.bf16.mxu0 0
        %1484 = vmatpush1.bf16.msra.mxu0 0
        %1485 = vmatprep.subr.bf16.mxu0 0
        %1486 = vmatpush1.bf16.msra.mxu0 0
        %1487 = vmatprep.subr.bf16.mxu0 0
        %1488 = vmatpush1.bf16.msra.mxu0 0
        %1489 = vmatprep.subr.bf16.mxu0 0
        %1490 = vmatpush1.bf16.msra.mxu0 0
        %1491 = vmatprep.subr.bf16.mxu0 0
        %1492 = vmatpush1.bf16.msra.mxu0 0
        %1493 = vmatprep.subr.bf16.mxu0 0
        %1494 = vmatpush1.bf16.msra.mxu0 0
        %1495 = vmatprep.subr.bf16.mxu0 0
        %1496 = vmatpush1.bf16.msra.mxu0 0
        %1497 = vmatprep.subr.bf16.mxu0 0
        %1498 = vmatpush1.bf16.msra.mxu0 0
        %1499 = vmatprep.subr.bf16.mxu0 0
        %1500 = vmatpush1.bf16.msra.mxu0 0
        %1501 = vmatprep.mubr.bf16.mxu0 0
        %1502 = vmatmul.mubr.bf16.gmra.mrb[0].mxu0 %v1467
        %v1503 = vpop.f32.mrb[0].mxu0
        %v1504 = vadd.f32 0.0, %v1503
        %v1505 = vpop.f32.mrb[0].mxu0
        %v1506 = vpop.f32.mrb[0].mxu0
        %v1507 = vpop.f32.mrb[0].mxu0
        %1508 = vdwg.mxu0
        %v1509 = vpack.c.bf16 %v1504, %v1504
        %s1510 = scalar_lea.vmem [#allocation6], 128
        %v1511 = vld [vmem:[%s1510] sm:$0xf]
        %v1512 = vld [vmem:[%s1510 + $0x4] sm:$0xf]
        %v1513 = vld [vmem:[%s1510 + $0x8] sm:$0xf]
        %v1514 = vld [vmem:[%s1510 + $0xc] sm:$0xf]
        %v1515 = vld [vmem:[%s1510 + $0x10] sm:$0xf]
        %v1516 = vld [vmem:[%s1510 + $0x14] sm:$0xf]
        %v1517 = vld [vmem:[%s1510 + $0x18] sm:$0xf]
        %v1518 = vld [vmem:[%s1510 + $0x1c] sm:$0xf]
        %v1519 = vld [vmem:[%s1510 + $0x20] sm:$0xf]
        %v1520 = vld [vmem:[%s1510 + $0x24] sm:$0xf]
        %v1521 = vld [vmem:[%s1510 + $0x28] sm:$0xf]
        %v1522 = vld [vmem:[%s1510 + $0x2c] sm:$0xf]
        %v1523 = vld [vmem:[%s1510 + $0x30] sm:$0xf]
        %v1524 = vld [vmem:[%s1510 + $0x34] sm:$0xf]
        %v1525 = vld [vmem:[%s1510 + $0x38] sm:$0xf]
        %v1526 = vld [vmem:[%s1510 + $0x3c] sm:$0xf]
        %v1543 = vunpack.c.l.b16 %v1511
        %v1544 = vunpack.c.l.b16 %v1512
        %v1545 = vunpack.c.l.b16 %v1513
        %v1546 = vunpack.c.l.b16 %v1514
        %v1547 = vunpack.c.l.b16 %v1515
        %v1548 = vunpack.c.l.b16 %v1516
        %v1549 = vunpack.c.l.b16 %v1517
        %v1550 = vunpack.c.l.b16 %v1518
        %v1551 = vunpack.c.l.b16 %v1519
        %v1552 = vunpack.c.l.b16 %v1520
        %v1553 = vunpack.c.l.b16 %v1521
        %v1554 = vunpack.c.l.b16 %v1522
        %v1555 = vunpack.c.l.b16 %v1523
        %v1556 = vunpack.c.l.b16 %v1524
        %v1557 = vunpack.c.l.b16 %v1525
        %v1558 = vunpack.c.l.b16 %v1526
        %v1559 = vpack.c.b16 %v1544, %v1543
        %v1560 = vpack.c.b16 %v1546, %v1545
        %v1561 = vpack.c.b16 %v1548, %v1547
        %v1562 = vpack.c.b16 %v1550, %v1549
        %v1563 = vpack.c.b16 %v1552, %v1551
        %v1564 = vpack.c.b16 %v1554, %v1553
        %v1565 = vpack.c.b16 %v1556, %v1555
        %v1566 = vpack.c.b16 %v1558, %v1557
        %1575 = vmatprep.subr.bf16.mxu0 0
        %1576 = vmatpush1.bf16.msra.mxu0 %v1559
        %1577 = vmatprep.subr.bf16.mxu0 0
        %1578 = vmatpush1.bf16.msra.mxu0 %v1560
        %1579 = vmatprep.subr.bf16.mxu0 0
        %1580 = vmatpush1.bf16.msra.mxu0 %v1561
        %1581 = vmatprep.subr.bf16.mxu0 0
        %1582 = vmatpush1.bf16.msra.mxu0 %v1562
        %1583 = vmatprep.subr.bf16.mxu0 0
        %1584 = vmatpush1.bf16.msra.mxu0 %v1563
        %1585 = vmatprep.subr.bf16.mxu0 0
        %1586 = vmatpush1.bf16.msra.mxu0 %v1564
        %1587 = vmatprep.subr.bf16.mxu0 0
        %1588 = vmatpush1.bf16.msra.mxu0 %v1565
        %1589 = vmatprep.subr.bf16.mxu0 0
        %1590 = vmatpush1.bf16.msra.mxu0 %v1566
        %1591 = vmatprep.subr.bf16.mxu0 0
        %1592 = vmatpush1.bf16.msra.mxu0 0
        %1593 = vmatprep.subr.bf16.mxu0 0
        %1594 = vmatpush1.bf16.msra.mxu0 0
        %1595 = vmatprep.subr.bf16.mxu0 0
        %1596 = vmatpush1.bf16.msra.mxu0 0
        %1597 = vmatprep.subr.bf16.mxu0 0
        %1598 = vmatpush1.bf16.msra.mxu0 0
        %1599 = vmatprep.subr.bf16.mxu0 0
        %1600 = vmatpush1.bf16.msra.mxu0 0
        %1601 = vmatprep.subr.bf16.mxu0 0
        %1602 = vmatpush1.bf16.msra.mxu0 0
        %1603 = vmatprep.subr.bf16.mxu0 0
        %1604 = vmatpush1.bf16.msra.mxu0 0
        %1605 = vmatprep.subr.bf16.mxu0 0
        %1606 = vmatpush1.bf16.msra.mxu0 0
        %1607 = vmatprep.mubr.bf16.mxu0 0
        %1608 = vmatmul.mubr.bf16.gmra.mrb[0].mxu0 %v1509
        %v1609 = vpop.f32.mrb[0].mxu0
        %v1610 = vadd.f32 0.0, %v1609
        %v1611 = vpop.f32.mrb[0].mxu0
        %v1612 = vpop.f32.mrb[0].mxu0
        %v1613 = vpop.f32.mrb[0].mxu0
        %1614 = vdwg.mxu0
        %v1615 = vadd.f32 %v1459, %v1610
        %s1616 = scalar_lea.vmem %s2, 12
        %v1617 = vld [vmem:[%s1616] sm:$0xf]
        %v1619 = vsel %vm1161, %v1617, 0
        %1621 = vmatprep.subr.bf16.mxu0 0
        %1622 = vmatpush1.bf16.msra.mxu0 %v1158
        %1623 = vmatprep.subr.bf16.mxu0 0
        %1624 = vmatpush1.bf16.msra.mxu0 %v1166
        %1625 = vmatprep.subr.bf16.mxu0 0
        %1626 = vmatpush1.bf16.msra.mxu0 0
        %1627 = vmatprep.subr.bf16.mxu0 0
        %1628 = vmatpush1.bf16.msra.mxu0 0
        %1629 = vmatprep.subr.bf16.mxu0 0
        %1630 = vmatpush1.bf16.msra.mxu0 0
        %1631 = vmatprep.subr.bf16.mxu0 0
        %1632 = vmatpush1.bf16.msra.mxu0 0
        %1633 = vmatprep.subr.bf16.mxu0 0
        %1634 = vmatpush1.bf16.msra.mxu0 0
        %1635 = vmatprep.subr.bf16.mxu0 0
        %1636 = vmatpush1.bf16.msra.mxu0 0
        %1637 = vmatprep.subr.bf16.mxu0 0
        %1638 = vmatpush1.bf16.msra.mxu0 0
        %1639 = vmatprep.subr.bf16.mxu0 0
        %1640 = vmatpush1.bf16.msra.mxu0 0
        %1641 = vmatprep.subr.bf16.mxu0 0
        %1642 = vmatpush1.bf16.msra.mxu0 0
        %1643 = vmatprep.subr.bf16.mxu0 0
        %1644 = vmatpush1.bf16.msra.mxu0 0
        %1645 = vmatprep.subr.bf16.mxu0 0
        %1646 = vmatpush1.bf16.msra.mxu0 0
        %1647 = vmatprep.subr.bf16.mxu0 0
        %1648 = vmatpush1.bf16.msra.mxu0 0
        %1649 = vmatprep.subr.bf16.mxu0 0
        %1650 = vmatpush1.bf16.msra.mxu0 0
        %1651 = vmatprep.subr.bf16.mxu0 0
        %1652 = vmatpush1.bf16.msra.mxu0 0
        %1653 = vmatprep.mubr.bf16.mxu0 0
        %1654 = vmatmul.mubr.bf16.gmra.mrb[0].mxu0 %v1619
        %v1655 = vpop.f32.mrb[0].mxu0
        %v1656 = vadd.f32 0.0, %v1655
        %v1657 = vpop.f32.mrb[0].mxu0
        %v1658 = vpop.f32.mrb[0].mxu0
        %v1659 = vpop.f32.mrb[0].mxu0
        %1660 = vdwg.mxu0
        %v1661 = vpack.c.bf16 %v1656, %v1656
        %s1662 = scalar_lea.vmem [#allocation6], 192
        %v1663 = vld [vmem:[%s1662] sm:$0xf]
        %v1664 = vld [vmem:[%s1662 + $0x4] sm:$0xf]
        %v1665 = vld [vmem:[%s1662 + $0x8] sm:$0xf]
        %v1666 = vld [vmem:[%s1662 + $0xc] sm:$0xf]
        %v1667 = vld [vmem:[%s1662 + $0x10] sm:$0xf]
        %v1668 = vld [vmem:[%s1662 + $0x14] sm:$0xf]
        %v1669 = vld [vmem:[%s1662 + $0x18] sm:$0xf]
        %v1670 = vld [vmem:[%s1662 + $0x1c] sm:$0xf]
        %v1671 = vld [vmem:[%s1662 + $0x20] sm:$0xf]
        %v1672 = vld [vmem:[%s1662 + $0x24] sm:$0xf]
        %v1673 = vld [vmem:[%s1662 + $0x28] sm:$0xf]
        %v1674 = vld [vmem:[%s1662 + $0x2c] sm:$0xf]
        %v1675 = vld [vmem:[%s1662 + $0x30] sm:$0xf]
        %v1676 = vld [vmem:[%s1662 + $0x34] sm:$0xf]
        %v1677 = vld [vmem:[%s1662 + $0x38] sm:$0xf]
        %v1678 = vld [vmem:[%s1662 + $0x3c] sm:$0xf]
        %v1695 = vunpack.c.l.b16 %v1663
        %v1696 = vunpack.c.l.b16 %v1664
        %v1697 = vunpack.c.l.b16 %v1665
        %v1698 = vunpack.c.l.b16 %v1666
        %v1699 = vunpack.c.l.b16 %v1667
        %v1700 = vunpack.c.l.b16 %v1668
        %v1701 = vunpack.c.l.b16 %v1669
        %v1702 = vunpack.c.l.b16 %v1670
        %v1703 = vunpack.c.l.b16 %v1671
        %v1704 = vunpack.c.l.b16 %v1672
        %v1705 = vunpack.c.l.b16 %v1673
        %v1706 = vunpack.c.l.b16 %v1674
        %v1707 = vunpack.c.l.b16 %v1675
        %v1708 = vunpack.c.l.b16 %v1676
        %v1709 = vunpack.c.l.b16 %v1677
        %v1710 = vunpack.c.l.b16 %v1678
        %v1711 = vpack.c.b16 %v1696, %v1695
        %v1712 = vpack.c.b16 %v1698, %v1697
        %v1713 = vpack.c.b16 %v1700, %v1699
        %v1714 = vpack.c.b16 %v1702, %v1701
        %v1715 = vpack.c.b16 %v1704, %v1703
        %v1716 = vpack.c.b16 %v1706, %v1705
        %v1717 = vpack.c.b16 %v1708, %v1707
        %v1718 = vpack.c.b16 %v1710, %v1709
        %1727 = vmatprep.subr.bf16.mxu0 0
        %1728 = vmatpush1.bf16.msra.mxu0 %v1711
        %1729 = vmatprep.subr.bf16.mxu0 0
        %1730 = vmatpush1.bf16.msra.mxu0 %v1712
        %1731 = vmatprep.subr.bf16.mxu0 0
        %1732 = vmatpush1.bf16.msra.mxu0 %v1713
        %1733 = vmatprep.subr.bf16.mxu0 0
        %1734 = vmatpush1.bf16.msra.mxu0 %v1714
        %1735 = vmatprep.subr.bf16.mxu0 0
        %1736 = vmatpush1.bf16.msra.mxu0 %v1715
        %1737 = vmatprep.subr.bf16.mxu0 0
        %1738 = vmatpush1.bf16.msra.mxu0 %v1716
        %1739 = vmatprep.subr.bf16.mxu0 0
        %1740 = vmatpush1.bf16.msra.mxu0 %v1717
        %1741 = vmatprep.subr.bf16.mxu0 0
        %1742 = vmatpush1.bf16.msra.mxu0 %v1718
        %1743 = vmatprep.subr.bf16.mxu0 0
        %1744 = vmatpush1.bf16.msra.mxu0 0
        %1745 = vmatprep.subr.bf16.mxu0 0
        %1746 = vmatpush1.bf16.msra.mxu0 0
        %1747 = vmatprep.subr.bf16.mxu0 0
        %1748 = vmatpush1.bf16.msra.mxu0 0
        %1749 = vmatprep.subr.bf16.mxu0 0
        %1750 = vmatpush1.bf16.msra.mxu0 0
        %1751 = vmatprep.subr.bf16.mxu0 0
        %1752 = vmatpush1.bf16.msra.mxu0 0
        %1753 = vmatprep.subr.bf16.mxu0 0
        %1754 = vmatpush1.bf16.msra.mxu0 0
        %1755 = vmatprep.subr.bf16.mxu0 0
        %1756 = vmatpush1.bf16.msra.mxu0 0
        %1757 = vmatprep.subr.bf16.mxu0 0
        %1758 = vmatpush1.bf16.msra.mxu0 0
        %1759 = vmatprep.mubr.bf16.mxu0 0
        %1760 = vmatmul.mubr.bf16.gmra.mrb[0].mxu0 %v1661
        %v1761 = vpop.f32.mrb[0].mxu0
        %v1762 = vadd.f32 0.0, %v1761
        %v1763 = vpop.f32.mrb[0].mxu0
        %v1764 = vpop.f32.mrb[0].mxu0
        %v1765 = vpop.f32.mrb[0].mxu0
        %1766 = vdwg.mxu0
        %v1767 = vadd.f32 %v1615, %v1762
        %v1768 = vld [vmem:[%s10] sm:$0x1]
        %v1770 = vlaneseq
        %v1771 = vshrl.u32 %v1770, 7
        %v1772 = vsub.s32 0, %v1771
        %v1773 = vrot.slane %v1768, %v1772
        %v1775 = vadd.f32 %v1767, %v1773
        %vm1776 = vcmp.ge.f32.partialorder %v1775, 0.0
        %v1777 = vmul.f32 %v1775, 0.01
        %v1778 = vsel %vm1776, %v1775, %v1777
        %1779 = vst [vmem:[#allocation3] sm:$0xff] 0.0
        %1780 = vst [vmem:[#allocation3 + $0x8] sm:$0x3] 0.0
        %1781 = vst [vmem:[#allocation3 + $0x1] sm:$0xff] %v1778
        %v1782 = vld [vmem:[#allocation3] sm:$0xff]
        %v1783 = vld [vmem:[#allocation3 + $0x8] sm:$0x3]
        %v1784 = vpack.c.bf16 %v1783, %v1782
        %v1785 = vld [vmem:[%s3] sm:$0x3]
        %vm1786 = vcmask 80896
        %v1788 = vsel %vm1786, %v1785, 0
        %vm1790 = vcmask 1044480
        %v1792 = vsel %vm1790, %v1784, 0
        %1794 = vmatprep.subr.bf16.mxu0 0
        %1795 = vmatpush1.bf16.msra.mxu0 %v1792
        %1796 = vmatprep.subr.bf16.mxu0 0
        %1797 = vmatpush1.bf16.msra.mxu0 0
        %1798 = vmatprep.subr.bf16.mxu0 0
        %1799 = vmatpush1.bf16.msra.mxu0 0
        %1800 = vmatprep.subr.bf16.mxu0 0
        %1801 = vmatpush1.bf16.msra.mxu0 0
        %1802 = vmatprep.subr.bf16.mxu0 0
        %1803 = vmatpush1.bf16.msra.mxu0 0
        %1804 = vmatprep.subr.bf16.mxu0 0
        %1805 = vmatpush1.bf16.msra.mxu0 0
        %1806 = vmatprep.subr.bf16.mxu0 0
        %1807 = vmatpush1.bf16.msra.mxu0 0
        %1808 = vmatprep.subr.bf16.mxu0 0
        %1809 = vmatpush1.bf16.msra.mxu0 0
        %1810 = vmatprep.subr.bf16.mxu0 0
        %1811 = vmatpush1.bf16.msra.mxu0 0
        %1812 = vmatprep.subr.bf16.mxu0 0
        %1813 = vmatpush1.bf16.msra.mxu0 0
        %1814 = vmatprep.subr.bf16.mxu0 0
        %1815 = vmatpush1.bf16.msra.mxu0 0
        %1816 = vmatprep.subr.bf16.mxu0 0
        %1817 = vmatpush1.bf16.msra.mxu0 0
        %1818 = vmatprep.subr.bf16.mxu0 0
        %1819 = vmatpush1.bf16.msra.mxu0 0
        %1820 = vmatprep.subr.bf16.mxu0 0
        %1821 = vmatpush1.bf16.msra.mxu0 0
        %1822 = vmatprep.subr.bf16.mxu0 0
        %1823 = vmatpush1.bf16.msra.mxu0 0
        %1824 = vmatprep.subr.bf16.mxu0 0
        %1825 = vmatpush1.bf16.msra.mxu0 0
        %1826 = vmatprep.mubr.bf16.mxu0 0
        %1827 = vmatmul.mubr.bf16.gmra.mrb[0].mxu0 %v1788
        %v1828 = vpop.f32.mrb[0].mxu0
        %v1829 = vadd.f32 0.0, %v1828
        %v1830 = vpop.f32.mrb[0].mxu0
        %v1831 = vpop.f32.mrb[0].mxu0
        %v1832 = vpop.f32.mrb[0].mxu0
        %1833 = vdwg.mxu0
        %v1834 = vpack.c.bf16 %v1829, %v1829
        %v1835 = vld [vmem:[#allocation9] sm:$0xf]
        %v1836 = vld [vmem:[#allocation9 + $0x4] sm:$0xf]
        %v1837 = vld [vmem:[#allocation9 + $0x8] sm:$0xf]
        %v1838 = vld [vmem:[#allocation9 + $0xc] sm:$0xf]
        %v1839 = vld [vmem:[#allocation9 + $0x10] sm:$0xf]
        %v1840 = vld [vmem:[#allocation9 + $0x14] sm:$0xf]
        %v1841 = vld [vmem:[#allocation9 + $0x18] sm:$0xf]
        %v1842 = vld [vmem:[#allocation9 + $0x1c] sm:$0xf]
        %v1843 = vld [vmem:[#allocation9 + $0x20] sm:$0xf]
        %v1844 = vld [vmem:[#allocation9 + $0x24] sm:$0xf]
        %v1845 = vld [vmem:[#allocation9 + $0x28] sm:$0xf]
        %v1846 = vld [vmem:[#allocation9 + $0x2c] sm:$0xf]
        %v1847 = vld [vmem:[#allocation9 + $0x30] sm:$0xf]
        %v1848 = vld [vmem:[#allocation9 + $0x34] sm:$0xf]
        %v1849 = vld [vmem:[#allocation9 + $0x38] sm:$0xf]
        %v1850 = vld [vmem:[#allocation9 + $0x3c] sm:$0xf]
        %s1851 = scalar_lea.vmem %s3, 2
        %v1852 = vld [vmem:[%s1851] sm:$0x3]
        %v1854 = vsel %vm1786, %v1852, 0
        %1856 = vmatprep.subr.bf16.mxu0 0
        %1857 = vmatpush1.bf16.msra.mxu0 %v1792
        %1858 = vmatprep.subr.bf16.mxu0 0
        %1859 = vmatpush1.bf16.msra.mxu0 0
        %1860 = vmatprep.subr.bf16.mxu0 0
        %1861 = vmatpush1.bf16.msra.mxu0 0
        %1862 = vmatprep.subr.bf16.mxu0 0
        %1863 = vmatpush1.bf16.msra.mxu0 0
        %1864 = vmatprep.subr.bf16.mxu0 0
        %1865 = vmatpush1.bf16.msra.mxu0 0
        %1866 = vmatprep.subr.bf16.mxu0 0
        %1867 = vmatpush1.bf16.msra.mxu0 0
        %1868 = vmatprep.subr.bf16.mxu0 0
        %1869 = vmatpush1.bf16.msra.mxu0 0
        %1870 = vmatprep.subr.bf16.mxu0 0
        %1871 = vmatpush1.bf16.msra.mxu0 0
        %1872 = vmatprep.subr.bf16.mxu0 0
        %1873 = vmatpush1.bf16.msra.mxu0 0
        %1874 = vmatprep.subr.bf16.mxu0 0
        %1875 = vmatpush1.bf16.msra.mxu0 0
        %1876 = vmatprep.subr.bf16.mxu0 0
        %1877 = vmatpush1.bf16.msra.mxu0 0
        %1878 = vmatprep.subr.bf16.mxu0 0
        %1879 = vmatpush1.bf16.msra.mxu0 0
        %1880 = vmatprep.subr.bf16.mxu0 0
        %1881 = vmatpush1.bf16.msra.mxu0 0
        %1882 = vmatprep.subr.bf16.mxu0 0
        %1883 = vmatpush1.bf16.msra.mxu0 0
        %1884 = vmatprep.subr.bf16.mxu0 0
        %1885 = vmatpush1.bf16.msra.mxu0 0
        %1886 = vmatprep.subr.bf16.mxu0 0
        %1887 = vmatpush1.bf16.msra.mxu0 0
        %1888 = vmatprep.mubr.bf16.mxu0 0
        %1889 = vmatmul.mubr.bf16.gmra.mrb[0].mxu0 %v1854
        %v1890 = vpop.f32.mrb[0].mxu0
        %v1891 = vadd.f32 0.0, %v1890
        %v1892 = vpop.f32.mrb[0].mxu0
        %v1893 = vpop.f32.mrb[0].mxu0
        %v1894 = vpop.f32.mrb[0].mxu0
        %1895 = vdwg.mxu0
        %v1896 = vpack.c.bf16 %v1891, %v1891
        %s1897 = scalar_lea.vmem [#allocation9], 64
        %v1898 = vld [vmem:[%s1897] sm:$0xf]
        %v1899 = vld [vmem:[%s1897 + $0x4] sm:$0xf]
        %v1900 = vld [vmem:[%s1897 + $0x8] sm:$0xf]
        %v1901 = vld [vmem:[%s1897 + $0xc] sm:$0xf]
        %v1902 = vld [vmem:[%s1897 + $0x10] sm:$0xf]
        %v1903 = vld [vmem:[%s1897 + $0x14] sm:$0xf]
        %v1904 = vld [vmem:[%s1897 + $0x18] sm:$0xf]
        %v1905 = vld [vmem:[%s1897 + $0x1c] sm:$0xf]
        %v1906 = vld [vmem:[%s1897 + $0x20] sm:$0xf]
        %v1907 = vld [vmem:[%s1897 + $0x24] sm:$0xf]
        %v1908 = vld [vmem:[%s1897 + $0x28] sm:$0xf]
        %v1909 = vld [vmem:[%s1897 + $0x2c] sm:$0xf]
        %v1910 = vld [vmem:[%s1897 + $0x30] sm:$0xf]
        %v1911 = vld [vmem:[%s1897 + $0x34] sm:$0xf]
        %v1912 = vld [vmem:[%s1897 + $0x38] sm:$0xf]
        %v1913 = vld [vmem:[%s1897 + $0x3c] sm:$0xf]
        %v1930 = vunpack.c.l.b16 %v1898
        %v1931 = vunpack.c.l.b16 %v1899
        %v1932 = vunpack.c.l.b16 %v1900
        %v1933 = vunpack.c.l.b16 %v1901
        %v1934 = vunpack.c.l.b16 %v1902
        %v1935 = vunpack.c.l.b16 %v1903
        %v1936 = vunpack.c.l.b16 %v1904
        %v1937 = vunpack.c.l.b16 %v1905
        %v1938 = vunpack.c.l.b16 %v1906
        %v1939 = vunpack.c.l.b16 %v1907
        %v1940 = vunpack.c.l.b16 %v1908
        %v1941 = vunpack.c.l.b16 %v1909
        %v1942 = vunpack.c.l.b16 %v1910
        %v1943 = vunpack.c.l.b16 %v1911
        %v1944 = vunpack.c.l.b16 %v1912
        %v1945 = vunpack.c.l.b16 %v1913
        %v1946 = vpack.c.b16 %v1931, %v1930
        %v1947 = vpack.c.b16 %v1933, %v1932
        %v1948 = vpack.c.b16 %v1935, %v1934
        %v1949 = vpack.c.b16 %v1937, %v1936
        %v1950 = vpack.c.b16 %v1939, %v1938
        %v1951 = vpack.c.b16 %v1941, %v1940
        %v1952 = vpack.c.b16 %v1943, %v1942
        %v1953 = vpack.c.b16 %v1945, %v1944
        %1962 = vmatprep.subr.bf16.mxu0 0
        %1963 = vmatpush1.bf16.msra.mxu0 %v1946
        %1964 = vmatprep.subr.bf16.mxu0 0
        %1965 = vmatpush1.bf16.msra.mxu0 %v1947
        %1966 = vmatprep.subr.bf16.mxu0 0
        %1967 = vmatpush1.bf16.msra.mxu0 %v1948
        %1968 = vmatprep.subr.bf16.mxu0 0
        %1969 = vmatpush1.bf16.msra.mxu0 %v1949
        %1970 = vmatprep.subr.bf16.mxu0 0
        %1971 = vmatpush1.bf16.msra.mxu0 %v1950
        %1972 = vmatprep.subr.bf16.mxu0 0
        %1973 = vmatpush1.bf16.msra.mxu0 %v1951
        %1974 = vmatprep.subr.bf16.mxu0 0
        %1975 = vmatpush1.bf16.msra.mxu0 %v1952
        %1976 = vmatprep.subr.bf16.mxu0 0
        %1977 = vmatpush1.bf16.msra.mxu0 %v1953
        %1978 = vmatprep.subr.bf16.mxu0 0
        %1979 = vmatpush1.bf16.msra.mxu0 0
        %1980 = vmatprep.subr.bf16.mxu0 0
        %1981 = vmatpush1.bf16.msra.mxu0 0
        %1982 = vmatprep.subr.bf16.mxu0 0
        %1983 = vmatpush1.bf16.msra.mxu0 0
        %1984 = vmatprep.subr.bf16.mxu0 0
        %1985 = vmatpush1.bf16.msra.mxu0 0
        %1986 = vmatprep.subr.bf16.mxu0 0
        %1987 = vmatpush1.bf16.msra.mxu0 0
        %1988 = vmatprep.subr.bf16.mxu0 0
        %1989 = vmatpush1.bf16.msra.mxu0 0
        %1990 = vmatprep.subr.bf16.mxu0 0
        %1991 = vmatpush1.bf16.msra.mxu0 0
        %1992 = vmatprep.subr.bf16.mxu0 0
        %1993 = vmatpush1.bf16.msra.mxu0 0
        %1994 = vmatprep.mubr.bf16.mxu0 0
        %1995 = vmatmul.mubr.bf16.gmra.mrb[0].mxu0 %v1896
        %v1996 = vpop.f32.mrb[0].mxu0
        %v1997 = vadd.f32 0.0, %v1996
        %v1998 = vpop.f32.mrb[0].mxu0
        %v1999 = vpop.f32.mrb[0].mxu0
        %v2000 = vpop.f32.mrb[0].mxu0
        %2001 = vdwg.mxu0
        %v2018 = vunpack.c.l.b16 %v1835
        %v2019 = vunpack.c.l.b16 %v1836
        %v2020 = vunpack.c.l.b16 %v1837
        %v2021 = vunpack.c.l.b16 %v1838
        %v2022 = vunpack.c.l.b16 %v1839
        %v2023 = vunpack.c.l.b16 %v1840
        %v2024 = vunpack.c.l.b16 %v1841
        %v2025 = vunpack.c.l.b16 %v1842
        %v2026 = vunpack.c.l.b16 %v1843
        %v2027 = vunpack.c.l.b16 %v1844
        %v2028 = vunpack.c.l.b16 %v1845
        %v2029 = vunpack.c.l.b16 %v1846
        %v2030 = vunpack.c.l.b16 %v1847
        %v2031 = vunpack.c.l.b16 %v1848
        %v2032 = vunpack.c.l.b16 %v1849
        %v2033 = vunpack.c.l.b16 %v1850
        %v2034 = vpack.c.b16 %v2019, %v2018
        %v2035 = vpack.c.b16 %v2021, %v2020
        %v2036 = vpack.c.b16 %v2023, %v2022
        %v2037 = vpack.c.b16 %v2025, %v2024
        %v2038 = vpack.c.b16 %v2027, %v2026
        %v2039 = vpack.c.b16 %v2029, %v2028
        %v2040 = vpack.c.b16 %v2031, %v2030
        %v2041 = vpack.c.b16 %v2033, %v2032
        %2050 = vmatprep.subr.bf16.mxu0 0
        %2051 = vmatpush1.bf16.msra.mxu0 %v2034
        %2052 = vmatprep.subr.bf16.mxu0 0
        %2053 = vmatpush1.bf16.msra.mxu0 %v2035
        %2054 = vmatprep.subr.bf16.mxu0 0
        %2055 = vmatpush1.bf16.msra.mxu0 %v2036
        %2056 = vmatprep.subr.bf16.mxu0 0
        %2057 = vmatpush1.bf16.msra.mxu0 %v2037
        %2058 = vmatprep.subr.bf16.mxu0 0
        %2059 = vmatpush1.bf16.msra.mxu0 %v2038
        %2060 = vmatprep.subr.bf16.mxu0 0
        %2061 = vmatpush1.bf16.msra.mxu0 %v2039
        %2062 = vmatprep.subr.bf16.mxu0 0
        %2063 = vmatpush1.bf16.msra.mxu0 %v2040
        %2064 = vmatprep.subr.bf16.mxu0 0
        %2065 = vmatpush1.bf16.msra.mxu0 %v2041
        %2066 = vmatprep.subr.bf16.mxu0 0
        %2067 = vmatpush1.bf16.msra.mxu0 0
        %2068 = vmatprep.subr.bf16.mxu0 0
        %2069 = vmatpush1.bf16.msra.mxu0 0
        %2070 = vmatprep.subr.bf16.mxu0 0
        %2071 = vmatpush1.bf16.msra.mxu0 0
        %2072 = vmatprep.subr.bf16.mxu0 0
        %2073 = vmatpush1.bf16.msra.mxu0 0
        %2074 = vmatprep.subr.bf16.mxu0 0
        %2075 = vmatpush1.bf16.msra.mxu0 0
        %2076 = vmatprep.subr.bf16.mxu0 0
        %2077 = vmatpush1.bf16.msra.mxu0 0
        %2078 = vmatprep.subr.bf16.mxu0 0
        %2079 = vmatpush1.bf16.msra.mxu0 0
        %2080 = vmatprep.subr.bf16.mxu0 0
        %2081 = vmatpush1.bf16.msra.mxu0 0
        %2082 = vmatprep.mubr.bf16.mxu0 0
        %2083 = vmatmul.mubr.bf16.gmra.mrb[0].mxu0 %v1834
        %v2084 = vpop.f32.mrb[0].mxu0
        %v2085 = vadd.f32 %v1997, %v2084
        %v2086 = vpop.f32.mrb[0].mxu0
        %v2087 = vpop.f32.mrb[0].mxu0
        %v2088 = vpop.f32.mrb[0].mxu0
        %2089 = vdwg.mxu0
        %s2090 = scalar_lea.vmem %s3, 4
        %v2091 = vld [vmem:[%s2090] sm:$0x3]
        %v2093 = vsel %vm1786, %v2091, 0
        %2095 = vmatprep.subr.bf16.mxu0 0
        %2096 = vmatpush1.bf16.msra.mxu0 %v1792
        %2097 = vmatprep.subr.bf16.mxu0 0
        %2098 = vmatpush1.bf16.msra.mxu0 0
        %2099 = vmatprep.subr.bf16.mxu0 0
        %2100 = vmatpush1.bf16.msra.mxu0 0
        %2101 = vmatprep.subr.bf16.mxu0 0
        %2102 = vmatpush1.bf16.msra.mxu0 0
        %2103 = vmatprep.subr.bf16.mxu0 0
        %2104 = vmatpush1.bf16.msra.mxu0 0
        %2105 = vmatprep.subr.bf16.mxu0 0
        %2106 = vmatpush1.bf16.msra.mxu0 0
        %2107 = vmatprep.subr.bf16.mxu0 0
        %2108 = vmatpush1.bf16.msra.mxu0 0
        %2109 = vmatprep.subr.bf16.mxu0 0
        %2110 = vmatpush1.bf16.msra.mxu0 0
        %2111 = vmatprep.subr.bf16.mxu0 0
        %2112 = vmatpush1.bf16.msra.mxu0 0
        %2113 = vmatprep.subr.bf16.mxu0 0
        %2114 = vmatpush1.bf16.msra.mxu0 0
        %2115 = vmatprep.subr.bf16.mxu0 0
        %2116 = vmatpush1.bf16.msra.mxu0 0
        %2117 = vmatprep.subr.bf16.mxu0 0
        %2118 = vmatpush1.bf16.msra.mxu0 0
        %2119 = vmatprep.subr.bf16.mxu0 0
        %2120 = vmatpush1.bf16.msra.mxu0 0
        %2121 = vmatprep.subr.bf16.mxu0 0
        %2122 = vmatpush1.bf16.msra.mxu0 0
        %2123 = vmatprep.subr.bf16.mxu0 0
        %2124 = vmatpush1.bf16.msra.mxu0 0
        %2125 = vmatprep.subr.bf16.mxu0 0
        %2126 = vmatpush1.bf16.msra.mxu0 0
        %2127 = vmatprep.mubr.bf16.mxu0 0
        %2128 = vmatmul.mubr.bf16.gmra.mrb[0].mxu0 %v2093
        %v2129 = vpop.f32.mrb[0].mxu0
        %v2130 = vadd.f32 0.0, %v2129
        %v2131 = vpop.f32.mrb[0].mxu0
        %v2132 = vpop.f32.mrb[0].mxu0
        %v2133 = vpop.f32.mrb[0].mxu0
        %2134 = vdwg.mxu0
        %v2135 = vpack.c.bf16 %v2130, %v2130
        %s2136 = scalar_lea.vmem [#allocation9], 128
        %v2137 = vld [vmem:[%s2136] sm:$0xf]
        %v2138 = vld [vmem:[%s2136 + $0x4] sm:$0xf]
        %v2139 = vld [vmem:[%s2136 + $0x8] sm:$0xf]
        %v2140 = vld [vmem:[%s2136 + $0xc] sm:$0xf]
        %v2141 = vld [vmem:[%s2136 + $0x10] sm:$0xf]
        %v2142 = vld [vmem:[%s2136 + $0x14] sm:$0xf]
        %v2143 = vld [vmem:[%s2136 + $0x18] sm:$0xf]
        %v2144 = vld [vmem:[%s2136 + $0x1c] sm:$0xf]
        %v2145 = vld [vmem:[%s2136 + $0x20] sm:$0xf]
        %v2146 = vld [vmem:[%s2136 + $0x24] sm:$0xf]
        %v2147 = vld [vmem:[%s2136 + $0x28] sm:$0xf]
        %v2148 = vld [vmem:[%s2136 + $0x2c] sm:$0xf]
        %v2149 = vld [vmem:[%s2136 + $0x30] sm:$0xf]
        %v2150 = vld [vmem:[%s2136 + $0x34] sm:$0xf]
        %v2151 = vld [vmem:[%s2136 + $0x38] sm:$0xf]
        %v2152 = vld [vmem:[%s2136 + $0x3c] sm:$0xf]
        %v2169 = vunpack.c.l.b16 %v2137
        %v2170 = vunpack.c.l.b16 %v2138
        %v2171 = vunpack.c.l.b16 %v2139
        %v2172 = vunpack.c.l.b16 %v2140
        %v2173 = vunpack.c.l.b16 %v2141
        %v2174 = vunpack.c.l.b16 %v2142
        %v2175 = vunpack.c.l.b16 %v2143
        %v2176 = vunpack.c.l.b16 %v2144
        %v2177 = vunpack.c.l.b16 %v2145
        %v2178 = vunpack.c.l.b16 %v2146
        %v2179 = vunpack.c.l.b16 %v2147
        %v2180 = vunpack.c.l.b16 %v2148
        %v2181 = vunpack.c.l.b16 %v2149
        %v2182 = vunpack.c.l.b16 %v2150
        %v2183 = vunpack.c.l.b16 %v2151
        %v2184 = vunpack.c.l.b16 %v2152
        %v2185 = vpack.c.b16 %v2170, %v2169
        %v2186 = vpack.c.b16 %v2172, %v2171
        %v2187 = vpack.c.b16 %v2174, %v2173
        %v2188 = vpack.c.b16 %v2176, %v2175
        %v2189 = vpack.c.b16 %v2178, %v2177
        %v2190 = vpack.c.b16 %v2180, %v2179
        %v2191 = vpack.c.b16 %v2182, %v2181
        %v2192 = vpack.c.b16 %v2184, %v2183
        %2201 = vmatprep.subr.bf16.mxu0 0
        %2202 = vmatpush1.bf16.msra.mxu0 %v2185
        %2203 = vmatprep.subr.bf16.mxu0 0
        %2204 = vmatpush1.bf16.msra.mxu0 %v2186
        %2205 = vmatprep.subr.bf16.mxu0 0
        %2206 = vmatpush1.bf16.msra.mxu0 %v2187
        %2207 = vmatprep.subr.bf16.mxu0 0
        %2208 = vmatpush1.bf16.msra.mxu0 %v2188
        %2209 = vmatprep.subr.bf16.mxu0 0
        %2210 = vmatpush1.bf16.msra.mxu0 %v2189
        %2211 = vmatprep.subr.bf16.mxu0 0
        %2212 = vmatpush1.bf16.msra.mxu0 %v2190
        %2213 = vmatprep.subr.bf16.mxu0 0
        %2214 = vmatpush1.bf16.msra.mxu0 %v2191
        %2215 = vmatprep.subr.bf16.mxu0 0
        %2216 = vmatpush1.bf16.msra.mxu0 %v2192
        %2217 = vmatprep.subr.bf16.mxu0 0
        %2218 = vmatpush1.bf16.msra.mxu0 0
        %2219 = vmatprep.subr.bf16.mxu0 0
        %2220 = vmatpush1.bf16.msra.mxu0 0
        %2221 = vmatprep.subr.bf16.mxu0 0
        %2222 = vmatpush1.bf16.msra.mxu0 0
        %2223 = vmatprep.subr.bf16.mxu0 0
        %2224 = vmatpush1.bf16.msra.mxu0 0
        %2225 = vmatprep.subr.bf16.mxu0 0
        %2226 = vmatpush1.bf16.msra.mxu0 0
        %2227 = vmatprep.subr.bf16.mxu0 0
        %2228 = vmatpush1.bf16.msra.mxu0 0
        %2229 = vmatprep.subr.bf16.mxu0 0
        %2230 = vmatpush1.bf16.msra.mxu0 0
        %2231 = vmatprep.subr.bf16.mxu0 0
        %2232 = vmatpush1.bf16.msra.mxu0 0
        %2233 = vmatprep.mubr.bf16.mxu0 0
        %2234 = vmatmul.mubr.bf16.gmra.mrb[0].mxu0 %v2135
        %v2235 = vpop.f32.mrb[0].mxu0
        %v2236 = vadd.f32 0.0, %v2235
        %v2237 = vpop.f32.mrb[0].mxu0
        %v2238 = vpop.f32.mrb[0].mxu0
        %v2239 = vpop.f32.mrb[0].mxu0
        %2240 = vdwg.mxu0
        %v2241 = vadd.f32 %v2085, %v2236
        %s2242 = scalar_lea.vmem %s3, 6
        %v2243 = vld [vmem:[%s2242] sm:$0x3]
        %v2245 = vsel %vm1786, %v2243, 0
        %2247 = vmatprep.subr.bf16.mxu0 0
        %2248 = vmatpush1.bf16.msra.mxu0 %v1792
        %2249 = vmatprep.subr.bf16.mxu0 0
        %2250 = vmatpush1.bf16.msra.mxu0 0
        %2251 = vmatprep.subr.bf16.mxu0 0
        %2252 = vmatpush1.bf16.msra.mxu0 0
        %2253 = vmatprep.subr.bf16.mxu0 0
        %2254 = vmatpush1.bf16.msra.mxu0 0
        %2255 = vmatprep.subr.bf16.mxu0 0
        %2256 = vmatpush1.bf16.msra.mxu0 0
        %2257 = vmatprep.subr.bf16.mxu0 0
        %2258 = vmatpush1.bf16.msra.mxu0 0
        %2259 = vmatprep.subr.bf16.mxu0 0
        %2260 = vmatpush1.bf16.msra.mxu0 0
        %2261 = vmatprep.subr.bf16.mxu0 0
        %2262 = vmatpush1.bf16.msra.mxu0 0
        %2263 = vmatprep.subr.bf16.mxu0 0
        %2264 = vmatpush1.bf16.msra.mxu0 0
        %2265 = vmatprep.subr.bf16.mxu0 0
        %2266 = vmatpush1.bf16.msra.mxu0 0
        %2267 = vmatprep.subr.bf16.mxu0 0
        %2268 = vmatpush1.bf16.msra.mxu0 0
        %2269 = vmatprep.subr.bf16.mxu0 0
        %2270 = vmatpush1.bf16.msra.mxu0 0
        %2271 = vmatprep.subr.bf16.mxu0 0
        %2272 = vmatpush1.bf16.msra.mxu0 0
        %2273 = vmatprep.subr.bf16.mxu0 0
        %2274 = vmatpush1.bf16.msra.mxu0 0
        %2275 = vmatprep.subr.bf16.mxu0 0
        %2276 = vmatpush1.bf16.msra.mxu0 0
        %2277 = vmatprep.subr.bf16.mxu0 0
        %2278 = vmatpush1.bf16.msra.mxu0 0
        %2279 = vmatprep.mubr.bf16.mxu0 0
        %2280 = vmatmul.mubr.bf16.gmra.mrb[0].mxu0 %v2245
        %v2281 = vpop.f32.mrb[0].mxu0
        %v2282 = vadd.f32 0.0, %v2281
        %v2283 = vpop.f32.mrb[0].mxu0
        %v2284 = vpop.f32.mrb[0].mxu0
        %v2285 = vpop.f32.mrb[0].mxu0
        %2286 = vdwg.mxu0
        %v2287 = vpack.c.bf16 %v2282, %v2282
        %s2288 = scalar_lea.vmem [#allocation9], 192
        %v2289 = vld [vmem:[%s2288] sm:$0xf]
        %v2290 = vld [vmem:[%s2288 + $0x4] sm:$0xf]
        %v2291 = vld [vmem:[%s2288 + $0x8] sm:$0xf]
        %v2292 = vld [vmem:[%s2288 + $0xc] sm:$0xf]
        %v2293 = vld [vmem:[%s2288 + $0x10] sm:$0xf]
        %v2294 = vld [vmem:[%s2288 + $0x14] sm:$0xf]
        %v2295 = vld [vmem:[%s2288 + $0x18] sm:$0xf]
        %v2296 = vld [vmem:[%s2288 + $0x1c] sm:$0xf]
        %v2297 = vld [vmem:[%s2288 + $0x20] sm:$0xf]
        %v2298 = vld [vmem:[%s2288 + $0x24] sm:$0xf]
        %v2299 = vld [vmem:[%s2288 + $0x28] sm:$0xf]
        %v2300 = vld [vmem:[%s2288 + $0x2c] sm:$0xf]
        %v2301 = vld [vmem:[%s2288 + $0x30] sm:$0xf]
        %v2302 = vld [vmem:[%s2288 + $0x34] sm:$0xf]
        %v2303 = vld [vmem:[%s2288 + $0x38] sm:$0xf]
        %v2304 = vld [vmem:[%s2288 + $0x3c] sm:$0xf]
        %v2321 = vunpack.c.l.b16 %v2289
        %v2322 = vunpack.c.l.b16 %v2290
        %v2323 = vunpack.c.l.b16 %v2291
        %v2324 = vunpack.c.l.b16 %v2292
        %v2325 = vunpack.c.l.b16 %v2293
        %v2326 = vunpack.c.l.b16 %v2294
        %v2327 = vunpack.c.l.b16 %v2295
        %v2328 = vunpack.c.l.b16 %v2296
        %v2329 = vunpack.c.l.b16 %v2297
        %v2330 = vunpack.c.l.b16 %v2298
        %v2331 = vunpack.c.l.b16 %v2299
        %v2332 = vunpack.c.l.b16 %v2300
        %v2333 = vunpack.c.l.b16 %v2301
        %v2334 = vunpack.c.l.b16 %v2302
        %v2335 = vunpack.c.l.b16 %v2303
        %v2336 = vunpack.c.l.b16 %v2304
        %v2337 = vpack.c.b16 %v2322, %v2321
        %v2338 = vpack.c.b16 %v2324, %v2323
        %v2339 = vpack.c.b16 %v2326, %v2325
        %v2340 = vpack.c.b16 %v2328, %v2327
        %v2341 = vpack.c.b16 %v2330, %v2329
        %v2342 = vpack.c.b16 %v2332, %v2331
        %v2343 = vpack.c.b16 %v2334, %v2333
        %v2344 = vpack.c.b16 %v2336, %v2335
        %2353 = vmatprep.subr.bf16.mxu0 0
        %2354 = vmatpush1.bf16.msra.mxu0 %v2337
        %2355 = vmatprep.subr.bf16.mxu0 0
        %2356 = vmatpush1.bf16.msra.mxu0 %v2338
        %2357 = vmatprep.subr.bf16.mxu0 0
        %2358 = vmatpush1.bf16.msra.mxu0 %v2339
        %2359 = vmatprep.subr.bf16.mxu0 0
        %2360 = vmatpush1.bf16.msra.mxu0 %v2340
        %2361 = vmatprep.subr.bf16.mxu0 0
        %2362 = vmatpush1.bf16.msra.mxu0 %v2341
        %2363 = vmatprep.subr.bf16.mxu0 0
        %2364 = vmatpush1.bf16.msra.mxu0 %v2342
        %2365 = vmatprep.subr.bf16.mxu0 0
        %2366 = vmatpush1.bf16.msra.mxu0 %v2343
        %2367 = vmatprep.subr.bf16.mxu0 0
        %2368 = vmatpush1.bf16.msra.mxu0 %v2344
        %2369 = vmatprep.subr.bf16.mxu0 0
        %2370 = vmatpush1.bf16.msra.mxu0 0
        %2371 = vmatprep.subr.bf16.mxu0 0
        %2372 = vmatpush1.bf16.msra.mxu0 0
        %2373 = vmatprep.subr.bf16.mxu0 0
        %2374 = vmatpush1.bf16.msra.mxu0 0
        %2375 = vmatprep.subr.bf16.mxu0 0
        %2376 = vmatpush1.bf16.msra.mxu0 0
        %2377 = vmatprep.subr.bf16.mxu0 0
        %2378 = vmatpush1.bf16.msra.mxu0 0
        %2379 = vmatprep.subr.bf16.mxu0 0
        %2380 = vmatpush1.bf16.msra.mxu0 0
        %2381 = vmatprep.subr.bf16.mxu0 0
        %2382 = vmatpush1.bf16.msra.mxu0 0
        %2383 = vmatprep.subr.bf16.mxu0 0
        %2384 = vmatpush1.bf16.msra.mxu0 0
        %2385 = vmatprep.mubr.bf16.mxu0 0
        %2386 = vmatmul.mubr.bf16.gmra.mrb[0].mxu0 %v2287
        %v2387 = vpop.f32.mrb[0].mxu0
        %v2388 = vadd.f32 0.0, %v2387
        %v2389 = vpop.f32.mrb[0].mxu0
        %v2390 = vpop.f32.mrb[0].mxu0
        %v2391 = vpop.f32.mrb[0].mxu0
        %2392 = vdwg.mxu0
        %v2393 = vadd.f32 %v2241, %v2388
        %v2394 = vld [vmem:[%s11] sm:$0x1]
        %v2396 = vlaneseq
        %v2397 = vshrl.u32 %v2396, 7
        %v2398 = vsub.s32 0, %v2397
        %v2399 = vrot.slane %v2394, %v2398
        %v2401 = vadd.f32 %v2393, %v2399
        %vm2402 = vcmp.ge.f32.partialorder %v2401, 0.0
        %v2403 = vmul.f32 %v2401, 0.01
        %v2404 = vsel %vm2402, %v2401, %v2403
        %2405 = vst [vmem:[#allocation4] sm:$0x3f] 0.0
        %2406 = vst [vmem:[#allocation4 + $0x1] sm:$0xf] %v2404
        %v2407 = vld [vmem:[#allocation4] sm:$0x7]
        %v2408 = vpack.c.bf16 %v2407, %v2407
        %v2409 = vld [vmem:[%s7] sm:$0xff]
        %v2410 = vld [vmem:[%s7 + $0x8] sm:$0xff]
        %v2411 = vld [vmem:[%s7 + $0x10] sm:$0xff]
        %v2412 = vld [vmem:[%s7 + $0x18] sm:$0xff]
        %v2413 = vld [vmem:[%s7 + $0x20] sm:$0xff]
        %v2414 = vld [vmem:[%s7 + $0x28] sm:$0xff]
        %v2415 = vld [vmem:[%s7 + $0x30] sm:$0xff]
        %v2416 = vld [vmem:[%s7 + $0x38] sm:$0xff]
        %v2417 = vld [vmem:[%s7 + $0x40] sm:$0xff]
        %v2418 = vld [vmem:[%s7 + $0x48] sm:$0xff]
        %v2419 = vld [vmem:[%s7 + $0x50] sm:$0xff]
        %v2420 = vld [vmem:[%s7 + $0x58] sm:$0xff]
        %v2421 = vld [vmem:[%s7 + $0x60] sm:$0xff]
        %v2422 = vld [vmem:[%s7 + $0x68] sm:$0xff]
        %v2423 = vld [vmem:[%s7 + $0x70] sm:$0xff]
        %v2424 = vld [vmem:[%s7 + $0x78] sm:$0xff]
        %v2425 = vld [vmem:[#allocation4 + $0x1] sm:$0x7]
        %v2426 = vpack.c.bf16 %v2425, %v2425
        %s2427 = scalar_lea.vmem %s7, 128
        %v2428 = vld [vmem:[%s2427] sm:$0xff]
        %v2429 = vld [vmem:[%s2427 + $0x8] sm:$0xff]
        %v2430 = vld [vmem:[%s2427 + $0x10] sm:$0xff]
        %v2431 = vld [vmem:[%s2427 + $0x18] sm:$0xff]
        %v2432 = vld [vmem:[%s2427 + $0x20] sm:$0xff]
        %v2433 = vld [vmem:[%s2427 + $0x28] sm:$0xff]
        %v2434 = vld [vmem:[%s2427 + $0x30] sm:$0xff]
        %v2435 = vld [vmem:[%s2427 + $0x38] sm:$0xff]
        %v2436 = vld [vmem:[%s2427 + $0x40] sm:$0xff]
        %v2437 = vld [vmem:[%s2427 + $0x48] sm:$0xff]
        %v2438 = vld [vmem:[%s2427 + $0x50] sm:$0xff]
        %v2439 = vld [vmem:[%s2427 + $0x58] sm:$0xff]
        %v2440 = vld [vmem:[%s2427 + $0x60] sm:$0xff]
        %v2441 = vld [vmem:[%s2427 + $0x68] sm:$0xff]
        %v2442 = vld [vmem:[%s2427 + $0x70] sm:$0xff]
        %v2443 = vld [vmem:[%s2427 + $0x78] sm:$0xff]
        %v2460 = vunpack.c.l.b16 %v2428
        %v2461 = vunpack.c.h.b16 %v2428
        %v2462 = vunpack.c.l.b16 %v2429
        %v2463 = vunpack.c.h.b16 %v2429
        %v2464 = vunpack.c.l.b16 %v2430
        %v2465 = vunpack.c.h.b16 %v2430
        %v2466 = vunpack.c.l.b16 %v2431
        %v2467 = vunpack.c.h.b16 %v2431
        %v2468 = vunpack.c.l.b16 %v2432
        %v2469 = vunpack.c.h.b16 %v2432
        %v2470 = vunpack.c.l.b16 %v2433
        %v2471 = vunpack.c.h.b16 %v2433
        %v2472 = vunpack.c.l.b16 %v2434
        %v2473 = vunpack.c.h.b16 %v2434
        %v2474 = vunpack.c.l.b16 %v2435
        %v2475 = vunpack.c.h.b16 %v2435
        %v2476 = vunpack.c.l.b16 %v2436
        %v2477 = vunpack.c.h.b16 %v2436
        %v2478 = vunpack.c.l.b16 %v2437
        %v2479 = vunpack.c.h.b16 %v2437
        %v2480 = vunpack.c.l.b16 %v2438
        %v2481 = vunpack.c.h.b16 %v2438
        %v2482 = vunpack.c.l.b16 %v2439
        %v2483 = vunpack.c.h.b16 %v2439
        %v2484 = vunpack.c.l.b16 %v2440
        %v2485 = vunpack.c.h.b16 %v2440
        %v2486 = vunpack.c.l.b16 %v2441
        %v2487 = vunpack.c.h.b16 %v2441
        %v2488 = vunpack.c.l.b16 %v2442
        %v2489 = vunpack.c.h.b16 %v2442
        %v2490 = vunpack.c.l.b16 %v2443
        %v2491 = vunpack.c.h.b16 %v2443
        %v2492 = vpack.c.b16 %v2462, %v2460
        %v2493 = vpack.c.b16 %v2463, %v2461
        %v2494 = vpack.c.b16 %v2466, %v2464
        %v2495 = vpack.c.b16 %v2467, %v2465
        %v2496 = vpack.c.b16 %v2470, %v2468
        %v2497 = vpack.c.b16 %v2471, %v2469
        %v2498 = vpack.c.b16 %v2474, %v2472
        %v2499 = vpack.c.b16 %v2475, %v2473
        %v2500 = vpack.c.b16 %v2478, %v2476
        %v2501 = vpack.c.b16 %v2479, %v2477
        %v2502 = vpack.c.b16 %v2482, %v2480
        %v2503 = vpack.c.b16 %v2483, %v2481
        %v2504 = vpack.c.b16 %v2486, %v2484
        %v2505 = vpack.c.b16 %v2487, %v2485
        %v2506 = vpack.c.b16 %v2490, %v2488
        %v2507 = vpack.c.b16 %v2491, %v2489
        %2524 = vmatprep.subr.bf16.mxu0 %v2493
        %2525 = vmatpush1.bf16.msra.mxu0 %v2492
        %2526 = vmatprep.subr.bf16.mxu0 %v2495
        %2527 = vmatpush1.bf16.msra.mxu0 %v2494
        %2528 = vmatprep.subr.bf16.mxu0 %v2497
        %2529 = vmatpush1.bf16.msra.mxu0 %v2496
        %2530 = vmatprep.subr.bf16.mxu0 %v2499
        %2531 = vmatpush1.bf16.msra.mxu0 %v2498
        %2532 = vmatprep.subr.bf16.mxu0 %v2501
        %2533 = vmatpush1.bf16.msra.mxu0 %v2500
        %2534 = vmatprep.subr.bf16.mxu0 %v2503
        %2535 = vmatpush1.bf16.msra.mxu0 %v2502
        %2536 = vmatprep.subr.bf16.mxu0 %v2505
        %2537 = vmatpush1.bf16.msra.mxu0 %v2504
        %2538 = vmatprep.subr.bf16.mxu0 %v2507
        %2539 = vmatpush1.bf16.msra.mxu0 %v2506
        %2540 = vmatprep.subr.bf16.mxu0 0
        %2541 = vmatpush1.bf16.msra.mxu0 0
        %2542 = vmatprep.subr.bf16.mxu0 0
        %2543 = vmatpush1.bf16.msra.mxu0 0
        %2544 = vmatprep.subr.bf16.mxu0 0
        %2545 = vmatpush1.bf16.msra.mxu0 0
        %2546 = vmatprep.subr.bf16.mxu0 0
        %2547 = vmatpush1.bf16.msra.mxu0 0
        %2548 = vmatprep.subr.bf16.mxu0 0
        %2549 = vmatpush1.bf16.msra.mxu0 0
        %2550 = vmatprep.subr.bf16.mxu0 0
        %2551 = vmatpush1.bf16.msra.mxu0 0
        %2552 = vmatprep.subr.bf16.mxu0 0
        %2553 = vmatpush1.bf16.msra.mxu0 0
        %2554 = vmatprep.subr.bf16.mxu0 0
        %2555 = vmatpush1.bf16.msra.mxu0 0
        %2556 = vmatprep.mubr.bf16.mxu0 0
        %2557 = vmatmul.mubr.bf16.gmra.mrb[0].mxu0 %v2426
        %v2558 = vpop.f32.mrb[0].mxu0
        %v2559 = vadd.f32 0.0, %v2558
        %v2560 = vpop.f32.mrb[0].mxu0
        %v2561 = vadd.f32 0.0, %v2560
        %v2562 = vpop.f32.mrb[0].mxu0
        %v2563 = vpop.f32.mrb[0].mxu0
        %2564 = vdwg.mxu0
        %v2581 = vunpack.c.l.b16 %v2409
        %v2582 = vunpack.c.h.b16 %v2409
        %v2583 = vunpack.c.l.b16 %v2410
        %v2584 = vunpack.c.h.b16 %v2410
        %v2585 = vunpack.c.l.b16 %v2411
        %v2586 = vunpack.c.h.b16 %v2411
        %v2587 = vunpack.c.l.b16 %v2412
        %v2588 = vunpack.c.h.b16 %v2412
        %v2589 = vunpack.c.l.b16 %v2413
        %v2590 = vunpack.c.h.b16 %v2413
        %v2591 = vunpack.c.l.b16 %v2414
        %v2592 = vunpack.c.h.b16 %v2414
        %v2593 = vunpack.c.l.b16 %v2415
        %v2594 = vunpack.c.h.b16 %v2415
        %v2595 = vunpack.c.l.b16 %v2416
        %v2596 = vunpack.c.h.b16 %v2416
        %v2597 = vunpack.c.l.b16 %v2417
        %v2598 = vunpack.c.h.b16 %v2417
        %v2599 = vunpack.c.l.b16 %v2418
        %v2600 = vunpack.c.h.b16 %v2418
        %v2601 = vunpack.c.l.b16 %v2419
        %v2602 = vunpack.c.h.b16 %v2419
        %v2603 = vunpack.c.l.b16 %v2420
        %v2604 = vunpack.c.h.b16 %v2420
        %v2605 = vunpack.c.l.b16 %v2421
        %v2606 = vunpack.c.h.b16 %v2421
        %v2607 = vunpack.c.l.b16 %v2422
        %v2608 = vunpack.c.h.b16 %v2422
        %v2609 = vunpack.c.l.b16 %v2423
        %v2610 = vunpack.c.h.b16 %v2423
        %v2611 = vunpack.c.l.b16 %v2424
        %v2612 = vunpack.c.h.b16 %v2424
        %v2613 = vpack.c.b16 %v2583, %v2581
        %v2614 = vpack.c.b16 %v2584, %v2582
        %v2615 = vpack.c.b16 %v2587, %v2585
        %v2616 = vpack.c.b16 %v2588, %v2586
        %v2617 = vpack.c.b16 %v2591, %v2589
        %v2618 = vpack.c.b16 %v2592, %v2590
        %v2619 = vpack.c.b16 %v2595, %v2593
        %v2620 = vpack.c.b16 %v2596, %v2594
        %v2621 = vpack.c.b16 %v2599, %v2597
        %v2622 = vpack.c.b16 %v2600, %v2598
        %v2623 = vpack.c.b16 %v2603, %v2601
        %v2624 = vpack.c.b16 %v2604, %v2602
        %v2625 = vpack.c.b16 %v2607, %v2605
        %v2626 = vpack.c.b16 %v2608, %v2606
        %v2627 = vpack.c.b16 %v2611, %v2609
        %v2628 = vpack.c.b16 %v2612, %v2610
        %2645 = vmatprep.subr.bf16.mxu0 %v2614
        %2646 = vmatpush1.bf16.msra.mxu0 %v2613
        %2647 = vmatprep.subr.bf16.mxu0 %v2616
        %2648 = vmatpush1.bf16.msra.mxu0 %v2615
        %2649 = vmatprep.subr.bf16.mxu0 %v2618
        %2650 = vmatpush1.bf16.msra.mxu0 %v2617
        %2651 = vmatprep.subr.bf16.mxu0 %v2620
        %2652 = vmatpush1.bf16.msra.mxu0 %v2619
        %2653 = vmatprep.subr.bf16.mxu0 %v2622
        %2654 = vmatpush1.bf16.msra.mxu0 %v2621
        %2655 = vmatprep.subr.bf16.mxu0 %v2624
        %2656 = vmatpush1.bf16.msra.mxu0 %v2623
        %2657 = vmatprep.subr.bf16.mxu0 %v2626
        %2658 = vmatpush1.bf16.msra.mxu0 %v2625
        %2659 = vmatprep.subr.bf16.mxu0 %v2628
        %2660 = vmatpush1.bf16.msra.mxu0 %v2627
        %2661 = vmatprep.subr.bf16.mxu0 0
        %2662 = vmatpush1.bf16.msra.mxu0 0
        %2663 = vmatprep.subr.bf16.mxu0 0
        %2664 = vmatpush1.bf16.msra.mxu0 0
        %2665 = vmatprep.subr.bf16.mxu0 0
        %2666 = vmatpush1.bf16.msra.mxu0 0
        %2667 = vmatprep.subr.bf16.mxu0 0
        %2668 = vmatpush1.bf16.msra.mxu0 0
        %2669 = vmatprep.subr.bf16.mxu0 0
        %2670 = vmatpush1.bf16.msra.mxu0 0
        %2671 = vmatprep.subr.bf16.mxu0 0
        %2672 = vmatpush1.bf16.msra.mxu0 0
        %2673 = vmatprep.subr.bf16.mxu0 0
        %2674 = vmatpush1.bf16.msra.mxu0 0
        %2675 = vmatprep.subr.bf16.mxu0 0
        %2676 = vmatpush1.bf16.msra.mxu0 0
        %2677 = vmatprep.mubr.bf16.mxu0 0
        %2678 = vmatmul.mubr.bf16.gmra.mrb[0].mxu0 %v2408
        %v2679 = vpop.f32.mrb[0].mxu0
        %v2680 = vadd.f32 %v2559, %v2679
        %v2681 = vpop.f32.mrb[0].mxu0
        %v2682 = vadd.f32 %v2561, %v2681
        %v2683 = vpop.f32.mrb[0].mxu0
        %v2684 = vpop.f32.mrb[0].mxu0
        %2685 = vdwg.mxu0
        %v2686 = vld [vmem:[#allocation4 + $0x2] sm:$0x7]
        %v2687 = vpack.c.bf16 %v2686, %v2686
        %s2688 = scalar_lea.vmem %s7, 256
        %v2689 = vld [vmem:[%s2688] sm:$0xff]
        %v2690 = vld [vmem:[%s2688 + $0x8] sm:$0xff]
        %v2691 = vld [vmem:[%s2688 + $0x10] sm:$0xff]
        %v2692 = vld [vmem:[%s2688 + $0x18] sm:$0xff]
        %v2693 = vld [vmem:[%s2688 + $0x20] sm:$0xff]
        %v2694 = vld [vmem:[%s2688 + $0x28] sm:$0xff]
        %v2695 = vld [vmem:[%s2688 + $0x30] sm:$0xff]
        %v2696 = vld [vmem:[%s2688 + $0x38] sm:$0xff]
        %v2697 = vld [vmem:[%s2688 + $0x40] sm:$0xff]
        %v2698 = vld [vmem:[%s2688 + $0x48] sm:$0xff]
        %v2699 = vld [vmem:[%s2688 + $0x50] sm:$0xff]
        %v2700 = vld [vmem:[%s2688 + $0x58] sm:$0xff]
        %v2701 = vld [vmem:[%s2688 + $0x60] sm:$0xff]
        %v2702 = vld [vmem:[%s2688 + $0x68] sm:$0xff]
        %v2703 = vld [vmem:[%s2688 + $0x70] sm:$0xff]
        %v2704 = vld [vmem:[%s2688 + $0x78] sm:$0xff]
        %v2721 = vunpack.c.l.b16 %v2689
        %v2722 = vunpack.c.h.b16 %v2689
        %v2723 = vunpack.c.l.b16 %v2690
        %v2724 = vunpack.c.h.b16 %v2690
        %v2725 = vunpack.c.l.b16 %v2691
        %v2726 = vunpack.c.h.b16 %v2691
        %v2727 = vunpack.c.l.b16 %v2692
        %v2728 = vunpack.c.h.b16 %v2692
        %v2729 = vunpack.c.l.b16 %v2693
        %v2730 = vunpack.c.h.b16 %v2693
        %v2731 = vunpack.c.l.b16 %v2694
        %v2732 = vunpack.c.h.b16 %v2694
        %v2733 = vunpack.c.l.b16 %v2695
        %v2734 = vunpack.c.h.b16 %v2695
        %v2735 = vunpack.c.l.b16 %v2696
        %v2736 = vunpack.c.h.b16 %v2696
        %v2737 = vunpack.c.l.b16 %v2697
        %v2738 = vunpack.c.h.b16 %v2697
        %v2739 = vunpack.c.l.b16 %v2698
        %v2740 = vunpack.c.h.b16 %v2698
        %v2741 = vunpack.c.l.b16 %v2699
        %v2742 = vunpack.c.h.b16 %v2699
        %v2743 = vunpack.c.l.b16 %v2700
        %v2744 = vunpack.c.h.b16 %v2700
        %v2745 = vunpack.c.l.b16 %v2701
        %v2746 = vunpack.c.h.b16 %v2701
        %v2747 = vunpack.c.l.b16 %v2702
        %v2748 = vunpack.c.h.b16 %v2702
        %v2749 = vunpack.c.l.b16 %v2703
        %v2750 = vunpack.c.h.b16 %v2703
        %v2751 = vunpack.c.l.b16 %v2704
        %v2752 = vunpack.c.h.b16 %v2704
        %v2753 = vpack.c.b16 %v2723, %v2721
        %v2754 = vpack.c.b16 %v2724, %v2722
        %v2755 = vpack.c.b16 %v2727, %v2725
        %v2756 = vpack.c.b16 %v2728, %v2726
        %v2757 = vpack.c.b16 %v2731, %v2729
        %v2758 = vpack.c.b16 %v2732, %v2730
        %v2759 = vpack.c.b16 %v2735, %v2733
        %v2760 = vpack.c.b16 %v2736, %v2734
        %v2761 = vpack.c.b16 %v2739, %v2737
        %v2762 = vpack.c.b16 %v2740, %v2738
        %v2763 = vpack.c.b16 %v2743, %v2741
        %v2764 = vpack.c.b16 %v2744, %v2742
        %v2765 = vpack.c.b16 %v2747, %v2745
        %v2766 = vpack.c.b16 %v2748, %v2746
        %v2767 = vpack.c.b16 %v2751, %v2749
        %v2768 = vpack.c.b16 %v2752, %v2750
        %2785 = vmatprep.subr.bf16.mxu0 %v2754
        %2786 = vmatpush1.bf16.msra.mxu0 %v2753
        %2787 = vmatprep.subr.bf16.mxu0 %v2756
        %2788 = vmatpush1.bf16.msra.mxu0 %v2755
        %2789 = vmatprep.subr.bf16.mxu0 %v2758
        %2790 = vmatpush1.bf16.msra.mxu0 %v2757
        %2791 = vmatprep.subr.bf16.mxu0 %v2760
        %2792 = vmatpush1.bf16.msra.mxu0 %v2759
        %2793 = vmatprep.subr.bf16.mxu0 %v2762
        %2794 = vmatpush1.bf16.msra.mxu0 %v2761
        %2795 = vmatprep.subr.bf16.mxu0 %v2764
        %2796 = vmatpush1.bf16.msra.mxu0 %v2763
        %2797 = vmatprep.subr.bf16.mxu0 %v2766
        %2798 = vmatpush1.bf16.msra.mxu0 %v2765
        %2799 = vmatprep.subr.bf16.mxu0 %v2768
        %2800 = vmatpush1.bf16.msra.mxu0 %v2767
        %2801 = vmatprep.subr.bf16.mxu0 0
        %2802 = vmatpush1.bf16.msra.mxu0 0
        %2803 = vmatprep.subr.bf16.mxu0 0
        %2804 = vmatpush1.bf16.msra.mxu0 0
        %2805 = vmatprep.subr.bf16.mxu0 0
        %2806 = vmatpush1.bf16.msra.mxu0 0
        %2807 = vmatprep.subr.bf16.mxu0 0
        %2808 = vmatpush1.bf16.msra.mxu0 0
        %2809 = vmatprep.subr.bf16.mxu0 0
        %2810 = vmatpush1.bf16.msra.mxu0 0
        %2811 = vmatprep.subr.bf16.mxu0 0
        %2812 = vmatpush1.bf16.msra.mxu0 0
        %2813 = vmatprep.subr.bf16.mxu0 0
        %2814 = vmatpush1.bf16.msra.mxu0 0
        %2815 = vmatprep.subr.bf16.mxu0 0
        %2816 = vmatpush1.bf16.msra.mxu0 0
        %2817 = vmatprep.mubr.bf16.mxu0 0
        %2818 = vmatmul.mubr.bf16.gmra.mrb[0].mxu0 %v2687
        %v2819 = vpop.f32.mrb[0].mxu0
        %v2820 = vadd.f32 0.0, %v2819
        %v2821 = vpop.f32.mrb[0].mxu0
        %v2822 = vadd.f32 0.0, %v2821
        %v2823 = vpop.f32.mrb[0].mxu0
        %v2824 = vpop.f32.mrb[0].mxu0
        %2825 = vdwg.mxu0
        %v2826 = vadd.f32 %v2680, %v2820
        %v2827 = vadd.f32 %v2682, %v2822
        %v2828 = vld [vmem:[#allocation4 + $0x3] sm:$0x7]
        %v2829 = vpack.c.bf16 %v2828, %v2828
        %s2830 = scalar_lea.vmem %s7, 384
        %v2831 = vld [vmem:[%s2830] sm:$0xff]
        %v2832 = vld [vmem:[%s2830 + $0x8] sm:$0xff]
        %v2833 = vld [vmem:[%s2830 + $0x10] sm:$0xff]
        %v2834 = vld [vmem:[%s2830 + $0x18] sm:$0xff]
        %v2835 = vld [vmem:[%s2830 + $0x20] sm:$0xff]
        %v2836 = vld [vmem:[%s2830 + $0x28] sm:$0xff]
        %v2837 = vld [vmem:[%s2830 + $0x30] sm:$0xff]
        %v2838 = vld [vmem:[%s2830 + $0x38] sm:$0xff]
        %v2839 = vld [vmem:[%s2830 + $0x40] sm:$0xff]
        %v2840 = vld [vmem:[%s2830 + $0x48] sm:$0xff]
        %v2841 = vld [vmem:[%s2830 + $0x50] sm:$0xff]
        %v2842 = vld [vmem:[%s2830 + $0x58] sm:$0xff]
        %v2843 = vld [vmem:[%s2830 + $0x60] sm:$0xff]
        %v2844 = vld [vmem:[%s2830 + $0x68] sm:$0xff]
        %v2845 = vld [vmem:[%s2830 + $0x70] sm:$0xff]
        %v2846 = vld [vmem:[%s2830 + $0x78] sm:$0xff]
        %v2863 = vunpack.c.l.b16 %v2831
        %v2864 = vunpack.c.h.b16 %v2831
        %v2865 = vunpack.c.l.b16 %v2832
        %v2866 = vunpack.c.h.b16 %v2832
        %v2867 = vunpack.c.l.b16 %v2833
        %v2868 = vunpack.c.h.b16 %v2833
        %v2869 = vunpack.c.l.b16 %v2834
        %v2870 = vunpack.c.h.b16 %v2834
        %v2871 = vunpack.c.l.b16 %v2835
        %v2872 = vunpack.c.h.b16 %v2835
        %v2873 = vunpack.c.l.b16 %v2836
        %v2874 = vunpack.c.h.b16 %v2836
        %v2875 = vunpack.c.l.b16 %v2837
        %v2876 = vunpack.c.h.b16 %v2837
        %v2877 = vunpack.c.l.b16 %v2838
        %v2878 = vunpack.c.h.b16 %v2838
        %v2879 = vunpack.c.l.b16 %v2839
        %v2880 = vunpack.c.h.b16 %v2839
        %v2881 = vunpack.c.l.b16 %v2840
        %v2882 = vunpack.c.h.b16 %v2840
        %v2883 = vunpack.c.l.b16 %v2841
        %v2884 = vunpack.c.h.b16 %v2841
        %v2885 = vunpack.c.l.b16 %v2842
        %v2886 = vunpack.c.h.b16 %v2842
        %v2887 = vunpack.c.l.b16 %v2843
        %v2888 = vunpack.c.h.b16 %v2843
        %v2889 = vunpack.c.l.b16 %v2844
        %v2890 = vunpack.c.h.b16 %v2844
        %v2891 = vunpack.c.l.b16 %v2845
        %v2892 = vunpack.c.h.b16 %v2845
        %v2893 = vunpack.c.l.b16 %v2846
        %v2894 = vunpack.c.h.b16 %v2846
        %v2895 = vpack.c.b16 %v2865, %v2863
        %v2896 = vpack.c.b16 %v2866, %v2864
        %v2897 = vpack.c.b16 %v2869, %v2867
        %v2898 = vpack.c.b16 %v2870, %v2868
        %v2899 = vpack.c.b16 %v2873, %v2871
        %v2900 = vpack.c.b16 %v2874, %v2872
        %v2901 = vpack.c.b16 %v2877, %v2875
        %v2902 = vpack.c.b16 %v2878, %v2876
        %v2903 = vpack.c.b16 %v2881, %v2879
        %v2904 = vpack.c.b16 %v2882, %v2880
        %v2905 = vpack.c.b16 %v2885, %v2883
        %v2906 = vpack.c.b16 %v2886, %v2884
        %v2907 = vpack.c.b16 %v2889, %v2887
        %v2908 = vpack.c.b16 %v2890, %v2888
        %v2909 = vpack.c.b16 %v2893, %v2891
        %v2910 = vpack.c.b16 %v2894, %v2892
        %2927 = vmatprep.subr.bf16.mxu0 %v2896
        %2928 = vmatpush1.bf16.msra.mxu0 %v2895
        %2929 = vmatprep.subr.bf16.mxu0 %v2898
        %2930 = vmatpush1.bf16.msra.mxu0 %v2897
        %2931 = vmatprep.subr.bf16.mxu0 %v2900
        %2932 = vmatpush1.bf16.msra.mxu0 %v2899
        %2933 = vmatprep.subr.bf16.mxu0 %v2902
        %2934 = vmatpush1.bf16.msra.mxu0 %v2901
        %2935 = vmatprep.subr.bf16.mxu0 %v2904
        %2936 = vmatpush1.bf16.msra.mxu0 %v2903
        %2937 = vmatprep.subr.bf16.mxu0 %v2906
        %2938 = vmatpush1.bf16.msra.mxu0 %v2905
        %2939 = vmatprep.subr.bf16.mxu0 %v2908
        %2940 = vmatpush1.bf16.msra.mxu0 %v2907
        %2941 = vmatprep.subr.bf16.mxu0 %v2910
        %2942 = vmatpush1.bf16.msra.mxu0 %v2909
        %2943 = vmatprep.subr.bf16.mxu0 0
        %2944 = vmatpush1.bf16.msra.mxu0 0
        %2945 = vmatprep.subr.bf16.mxu0 0
        %2946 = vmatpush1.bf16.msra.mxu0 0
        %2947 = vmatprep.subr.bf16.mxu0 0
        %2948 = vmatpush1.bf16.msra.mxu0 0
        %2949 = vmatprep.subr.bf16.mxu0 0
        %2950 = vmatpush1.bf16.msra.mxu0 0
        %2951 = vmatprep.subr.bf16.mxu0 0
        %2952 = vmatpush1.bf16.msra.mxu0 0
        %2953 = vmatprep.subr.bf16.mxu0 0
        %2954 = vmatpush1.bf16.msra.mxu0 0
        %2955 = vmatprep.subr.bf16.mxu0 0
        %2956 = vmatpush1.bf16.msra.mxu0 0
        %2957 = vmatprep.subr.bf16.mxu0 0
        %2958 = vmatpush1.bf16.msra.mxu0 0
        %2959 = vmatprep.mubr.bf16.mxu0 0
        %2960 = vmatmul.mubr.bf16.gmra.mrb[0].mxu0 %v2829
        %v2961 = vpop.f32.mrb[0].mxu0
        %v2962 = vadd.f32 0.0, %v2961
        %v2963 = vpop.f32.mrb[0].mxu0
        %v2964 = vadd.f32 0.0, %v2963
        %v2965 = vpop.f32.mrb[0].mxu0
        %v2966 = vpop.f32.mrb[0].mxu0
        %2967 = vdwg.mxu0
        %v2968 = vadd.f32 %v2826, %v2962
        %v2969 = vadd.f32 %v2827, %v2964
        %v2970 = vld [vmem:[%s12] sm:$0x3]
        %v2972 = vlaneseq
        %v2973 = vshrl.u32 %v2972, 7
        %v2974 = vsub.s32 0, %v2973
        %v2975 = vrot.slane %v2970, %v2974
        %v2976 = vlaneseq
        %v2977 = vshrl.u32 %v2976, 7
        %v2978 = vsub.s32 1, %v2977
        %v2979 = vrot.slane %v2970, %v2978
        %v2982 = vadd.f32 %v2968, %v2975
        %v2983 = vadd.f32 %v2969, %v2979
        %vm2984 = vcmp.ge.f32.partialorder %v2982, 0.0
        %vm2985 = vcmp.ge.f32.partialorder %v2983, 0.0
        %v2986 = vmul.f32 %v2982, 0.01
        %v2987 = vmul.f32 %v2983, 0.01
        %v2988 = vsel %vm2984, %v2982, %v2986
        %v2989 = vsel %vm2985, %v2983, %v2987
        %2990 = vst [vmem:[#allocation5] sm:$0x1f] 0.0
        %2991 = vst [vmem:[#allocation5 + $0x8] sm:$0x1f] 0.0
        %v2994 = vrot.slane %v2988, 7
        %v2995 = vrot.slane %v2989, 7
        %2998 = vst [vmem:[#allocation5] sm:$0xe] %v2994
        %2999 = vst [vmem:[#allocation5 + $0x8] sm:$0xe] %v2995
        %v3000 = vld [vmem:[#allocation5] sm:$0x3]
        %v3001 = vld [vmem:[#allocation5 + $0x8] sm:$0x3]
        %v3002 = vpack.c.bf16 %v3000, %v3000
        %v3003 = vpack.c.bf16 %v3001, %v3001
        %v3004 = vld [vmem:[#allocation11] sm:$0xf]
        %v3005 = vld [vmem:[#allocation11 + $0x4] sm:$0xf]
        %v3006 = vld [vmem:[#allocation11 + $0x8] sm:$0xf]
        %v3007 = vld [vmem:[#allocation11 + $0xc] sm:$0xf]
        %v3008 = vld [vmem:[#allocation11 + $0x10] sm:$0xf]
        %v3009 = vld [vmem:[#allocation11 + $0x14] sm:$0xf]
        %v3010 = vld [vmem:[#allocation11 + $0x18] sm:$0xf]
        %v3011 = vld [vmem:[#allocation11 + $0x1c] sm:$0xf]
        %v3012 = vld [vmem:[#allocation11 + $0x20] sm:$0xf]
        %v3013 = vld [vmem:[#allocation11 + $0x24] sm:$0xf]
        %v3014 = vld [vmem:[#allocation11 + $0x28] sm:$0xf]
        %v3015 = vld [vmem:[#allocation11 + $0x2c] sm:$0xf]
        %v3016 = vld [vmem:[#allocation11 + $0x30] sm:$0xf]
        %v3017 = vld [vmem:[#allocation11 + $0x34] sm:$0xf]
        %v3018 = vld [vmem:[#allocation11 + $0x38] sm:$0xf]
        %v3019 = vld [vmem:[#allocation11 + $0x3c] sm:$0xf]
        %v3020 = vld [vmem:[#allocation11 + $0x40] sm:$0xf]
        %v3021 = vld [vmem:[#allocation11 + $0x44] sm:$0xf]
        %v3022 = vld [vmem:[#allocation11 + $0x48] sm:$0xf]
        %v3023 = vld [vmem:[#allocation11 + $0x4c] sm:$0xf]
        %v3024 = vld [vmem:[#allocation11 + $0x50] sm:$0xf]
        %v3025 = vld [vmem:[#allocation11 + $0x54] sm:$0xf]
        %v3026 = vld [vmem:[#allocation11 + $0x58] sm:$0xf]
        %v3027 = vld [vmem:[#allocation11 + $0x5c] sm:$0xf]
        %v3028 = vld [vmem:[#allocation11 + $0x60] sm:$0xf]
        %v3029 = vld [vmem:[#allocation11 + $0x64] sm:$0xf]
        %v3030 = vld [vmem:[#allocation11 + $0x68] sm:$0xf]
        %v3031 = vld [vmem:[#allocation11 + $0x6c] sm:$0xf]
        %v3032 = vld [vmem:[#allocation11 + $0x70] sm:$0xf]
        %v3033 = vld [vmem:[#allocation11 + $0x74] sm:$0xf]
        %v3034 = vld [vmem:[#allocation11 + $0x78] sm:$0xf]
        %v3035 = vld [vmem:[#allocation11 + $0x7c] sm:$0xf]
        %v3036 = vld [vmem:[#allocation5] sm:$0x6]
        %v3037 = vld [vmem:[#allocation5 + $0x8] sm:$0x6]
        %v3038 = vpack.c.bf16 %v3036, %v3036
        %v3039 = vpack.c.bf16 %v3037, %v3037
        %s3040 = scalar_lea.vmem [#allocation11], 128
        %v3041 = vld [vmem:[%s3040] sm:$0xf]
        %v3042 = vld [vmem:[%s3040 + $0x4] sm:$0xf]
        %v3043 = vld [vmem:[%s3040 + $0x8] sm:$0xf]
        %v3044 = vld [vmem:[%s3040 + $0xc] sm:$0xf]
        %v3045 = vld [vmem:[%s3040 + $0x10] sm:$0xf]
        %v3046 = vld [vmem:[%s3040 + $0x14] sm:$0xf]
        %v3047 = vld [vmem:[%s3040 + $0x18] sm:$0xf]
        %v3048 = vld [vmem:[%s3040 + $0x1c] sm:$0xf]
        %v3049 = vld [vmem:[%s3040 + $0x20] sm:$0xf]
        %v3050 = vld [vmem:[%s3040 + $0x24] sm:$0xf]
        %v3051 = vld [vmem:[%s3040 + $0x28] sm:$0xf]
        %v3052 = vld [vmem:[%s3040 + $0x2c] sm:$0xf]
        %v3053 = vld [vmem:[%s3040 + $0x30] sm:$0xf]
        %v3054 = vld [vmem:[%s3040 + $0x34] sm:$0xf]
        %v3055 = vld [vmem:[%s3040 + $0x38] sm:$0xf]
        %v3056 = vld [vmem:[%s3040 + $0x3c] sm:$0xf]
        %v3057 = vld [vmem:[%s3040 + $0x40] sm:$0xf]
        %v3058 = vld [vmem:[%s3040 + $0x44] sm:$0xf]
        %v3059 = vld [vmem:[%s3040 + $0x48] sm:$0xf]
        %v3060 = vld [vmem:[%s3040 + $0x4c] sm:$0xf]
        %v3061 = vld [vmem:[%s3040 + $0x50] sm:$0xf]
        %v3062 = vld [vmem:[%s3040 + $0x54] sm:$0xf]
        %v3063 = vld [vmem:[%s3040 + $0x58] sm:$0xf]
        %v3064 = vld [vmem:[%s3040 + $0x5c] sm:$0xf]
        %v3065 = vld [vmem:[%s3040 + $0x60] sm:$0xf]
        %v3066 = vld [vmem:[%s3040 + $0x64] sm:$0xf]
        %v3067 = vld [vmem:[%s3040 + $0x68] sm:$0xf]
        %v3068 = vld [vmem:[%s3040 + $0x6c] sm:$0xf]
        %v3069 = vld [vmem:[%s3040 + $0x70] sm:$0xf]
        %v3070 = vld [vmem:[%s3040 + $0x74] sm:$0xf]
        %v3071 = vld [vmem:[%s3040 + $0x78] sm:$0xf]
        %v3072 = vld [vmem:[%s3040 + $0x7c] sm:$0xf]
        %v3074 = vshrl.u32 %v3038, 16
        %v3076 = vshll.u32 %v3038, 16
        %v3078 = vrot.slane %v3076, 1
        %v3079 = vor.u32 %v3074, %v3078
        %v3081 = vshrl.u32 %v3039, 16
        %v3083 = vshll.u32 %v3039, 16
        %v3085 = vrot.slane %v3083, 1
        %v3086 = vor.u32 %v3081, %v3085
        %v3121 = vunpack.c.l.b16 %v3041
        %v3122 = vunpack.c.l.b16 %v3042
        %v3123 = vunpack.c.l.b16 %v3043
        %v3124 = vunpack.c.l.b16 %v3044
        %v3125 = vunpack.c.l.b16 %v3045
        %v3126 = vunpack.c.l.b16 %v3046
        %v3127 = vunpack.c.l.b16 %v3047
        %v3128 = vunpack.c.l.b16 %v3048
        %v3129 = vunpack.c.l.b16 %v3049
        %v3130 = vunpack.c.l.b16 %v3050
        %v3131 = vunpack.c.l.b16 %v3051
        %v3132 = vunpack.c.l.b16 %v3052
        %v3133 = vunpack.c.l.b16 %v3053
        %v3134 = vunpack.c.l.b16 %v3054
        %v3135 = vunpack.c.l.b16 %v3055
        %v3136 = vunpack.c.l.b16 %v3056
        %v3137 = vunpack.c.l.b16 %v3057
        %v3138 = vunpack.c.l.b16 %v3058
        %v3139 = vunpack.c.l.b16 %v3059
        %v3140 = vunpack.c.l.b16 %v3060
        %v3141 = vunpack.c.l.b16 %v3061
        %v3142 = vunpack.c.l.b16 %v3062
        %v3143 = vunpack.c.l.b16 %v3063
        %v3144 = vunpack.c.l.b16 %v3064
        %v3145 = vunpack.c.l.b16 %v3065
        %v3146 = vunpack.c.l.b16 %v3066
        %v3147 = vunpack.c.l.b16 %v3067
        %v3148 = vunpack.c.l.b16 %v3068
        %v3149 = vunpack.c.l.b16 %v3069
        %v3150 = vunpack.c.l.b16 %v3070
        %v3151 = vunpack.c.l.b16 %v3071
        %v3152 = vunpack.c.l.b16 %v3072
        %v3153 = vpack.c.b16 %v3122, %v3121
        %v3154 = vpack.c.b16 %v3124, %v3123
        %v3155 = vpack.c.b16 %v3126, %v3125
        %v3156 = vpack.c.b16 %v3128, %v3127
        %v3157 = vpack.c.b16 %v3130, %v3129
        %v3158 = vpack.c.b16 %v3132, %v3131
        %v3159 = vpack.c.b16 %v3134, %v3133
        %v3160 = vpack.c.b16 %v3136, %v3135
        %v3161 = vpack.c.b16 %v3138, %v3137
        %v3162 = vpack.c.b16 %v3140, %v3139
        %v3163 = vpack.c.b16 %v3142, %v3141
        %v3164 = vpack.c.b16 %v3144, %v3143
        %v3165 = vpack.c.b16 %v3146, %v3145
        %v3166 = vpack.c.b16 %v3148, %v3147
        %v3167 = vpack.c.b16 %v3150, %v3149
        %v3168 = vpack.c.b16 %v3152, %v3151
        %3185 = vmatprep.subr.bf16.mxu0 0
        %3186 = vmatpush1.bf16.msra.mxu0 %v3153
        %3187 = vmatprep.subr.bf16.mxu0 0
        %3188 = vmatpush1.bf16.msra.mxu0 %v3154
        %3189 = vmatprep.subr.bf16.mxu0 0
        %3190 = vmatpush1.bf16.msra.mxu0 %v3155
        %3191 = vmatprep.subr.bf16.mxu0 0
        %3192 = vmatpush1.bf16.msra.mxu0 %v3156
        %3193 = vmatprep.subr.bf16.mxu0 0
        %3194 = vmatpush1.bf16.msra.mxu0 %v3157
        %3195 = vmatprep.subr.bf16.mxu0 0
        %3196 = vmatpush1.bf16.msra.mxu0 %v3158
        %3197 = vmatprep.subr.bf16.mxu0 0
        %3198 = vmatpush1.bf16.msra.mxu0 %v3159
        %3199 = vmatprep.subr.bf16.mxu0 0
        %3200 = vmatpush1.bf16.msra.mxu0 %v3160
        %3201 = vmatprep.subr.bf16.mxu0 0
        %3202 = vmatpush1.bf16.msra.mxu0 %v3161
        %3203 = vmatprep.subr.bf16.mxu0 0
        %3204 = vmatpush1.bf16.msra.mxu0 %v3162
        %3205 = vmatprep.subr.bf16.mxu0 0
        %3206 = vmatpush1.bf16.msra.mxu0 %v3163
        %3207 = vmatprep.subr.bf16.mxu0 0
        %3208 = vmatpush1.bf16.msra.mxu0 %v3164
        %3209 = vmatprep.subr.bf16.mxu0 0
        %3210 = vmatpush1.bf16.msra.mxu0 %v3165
        %3211 = vmatprep.subr.bf16.mxu0 0
        %3212 = vmatpush1.bf16.msra.mxu0 %v3166
        %3213 = vmatprep.subr.bf16.mxu0 0
        %3214 = vmatpush1.bf16.msra.mxu0 %v3167
        %3215 = vmatprep.subr.bf16.mxu0 0
        %3216 = vmatpush1.bf16.msra.mxu0 %v3168
        %3217 = vmatprep.mubr.bf16.mxu0 %v3086
        %3218 = vmatmul.mubr.bf16.gmra.mrb[0].mxu0 %v3079
        %v3219 = vpop.f32.mrb[0].mxu0
        %v3220 = vadd.f32 0.0, %v3219
        %v3221 = vpop.f32.mrb[0].mxu0
        %v3222 = vpop.f32.mrb[0].mxu0
        %v3223 = vpop.f32.mrb[0].mxu0
        %3224 = vdwg.mxu0
        %v3257 = vunpack.c.l.b16 %v3004
        %v3258 = vunpack.c.l.b16 %v3005
        %v3259 = vunpack.c.l.b16 %v3006
        %v3260 = vunpack.c.l.b16 %v3007
        %v3261 = vunpack.c.l.b16 %v3008
        %v3262 = vunpack.c.l.b16 %v3009
        %v3263 = vunpack.c.l.b16 %v3010
        %v3264 = vunpack.c.l.b16 %v3011
        %v3265 = vunpack.c.l.b16 %v3012
        %v3266 = vunpack.c.l.b16 %v3013
        %v3267 = vunpack.c.l.b16 %v3014
        %v3268 = vunpack.c.l.b16 %v3015
        %v3269 = vunpack.c.l.b16 %v3016
        %v3270 = vunpack.c.l.b16 %v3017
        %v3271 = vunpack.c.l.b16 %v3018
        %v3272 = vunpack.c.l.b16 %v3019
        %v3273 = vunpack.c.l.b16 %v3020
        %v3274 = vunpack.c.l.b16 %v3021
        %v3275 = vunpack.c.l.b16 %v3022
        %v3276 = vunpack.c.l.b16 %v3023
        %v3277 = vunpack.c.l.b16 %v3024
        %v3278 = vunpack.c.l.b16 %v3025
        %v3279 = vunpack.c.l.b16 %v3026
        %v3280 = vunpack.c.l.b16 %v3027
        %v3281 = vunpack.c.l.b16 %v3028
        %v3282 = vunpack.c.l.b16 %v3029
        %v3283 = vunpack.c.l.b16 %v3030
        %v3284 = vunpack.c.l.b16 %v3031
        %v3285 = vunpack.c.l.b16 %v3032
        %v3286 = vunpack.c.l.b16 %v3033
        %v3287 = vunpack.c.l.b16 %v3034
        %v3288 = vunpack.c.l.b16 %v3035
        %v3289 = vpack.c.b16 %v3258, %v3257
        %v3290 = vpack.c.b16 %v3260, %v3259
        %v3291 = vpack.c.b16 %v3262, %v3261
        %v3292 = vpack.c.b16 %v3264, %v3263
        %v3293 = vpack.c.b16 %v3266, %v3265
        %v3294 = vpack.c.b16 %v3268, %v3267
        %v3295 = vpack.c.b16 %v3270, %v3269
        %v3296 = vpack.c.b16 %v3272, %v3271
        %v3297 = vpack.c.b16 %v3274, %v3273
        %v3298 = vpack.c.b16 %v3276, %v3275
        %v3299 = vpack.c.b16 %v3278, %v3277
        %v3300 = vpack.c.b16 %v3280, %v3279
        %v3301 = vpack.c.b16 %v3282, %v3281
        %v3302 = vpack.c.b16 %v3284, %v3283
        %v3303 = vpack.c.b16 %v3286, %v3285
        %v3304 = vpack.c.b16 %v3288, %v3287
        %3321 = vmatprep.subr.bf16.mxu0 0
        %3322 = vmatpush1.bf16.msra.mxu0 %v3289
        %3323 = vmatprep.subr.bf16.mxu0 0
        %3324 = vmatpush1.bf16.msra.mxu0 %v3290
        %3325 = vmatprep.subr.bf16.mxu0 0
        %3326 = vmatpush1.bf16.msra.mxu0 %v3291
        %3327 = vmatprep.subr.bf16.mxu0 0
        %3328 = vmatpush1.bf16.msra.mxu0 %v3292
        %3329 = vmatprep.subr.bf16.mxu0 0
        %3330 = vmatpush1.bf16.msra.mxu0 %v3293
        %3331 = vmatprep.subr.bf16.mxu0 0
        %3332 = vmatpush1.bf16.msra.mxu0 %v3294
        %3333 = vmatprep.subr.bf16.mxu0 0
        %3334 = vmatpush1.bf16.msra.mxu0 %v3295
        %3335 = vmatprep.subr.bf16.mxu0 0
        %3336 = vmatpush1.bf16.msra.mxu0 %v3296
        %3337 = vmatprep.subr.bf16.mxu0 0
        %3338 = vmatpush1.bf16.msra.mxu0 %v3297
        %3339 = vmatprep.subr.bf16.mxu0 0
        %3340 = vmatpush1.bf16.msra.mxu0 %v3298
        %3341 = vmatprep.subr.bf16.mxu0 0
        %3342 = vmatpush1.bf16.msra.mxu0 %v3299
        %3343 = vmatprep.subr.bf16.mxu0 0
        %3344 = vmatpush1.bf16.msra.mxu0 %v3300
        %3345 = vmatprep.subr.bf16.mxu0 0
        %3346 = vmatpush1.bf16.msra.mxu0 %v3301
        %3347 = vmatprep.subr.bf16.mxu0 0
        %3348 = vmatpush1.bf16.msra.mxu0 %v3302
        %3349 = vmatprep.subr.bf16.mxu0 0
        %3350 = vmatpush1.bf16.msra.mxu0 %v3303
        %3351 = vmatprep.subr.bf16.mxu0 0
        %3352 = vmatpush1.bf16.msra.mxu0 %v3304
        %3353 = vmatprep.mubr.bf16.mxu0 %v3003
        %3354 = vmatmul.mubr.bf16.gmra.mrb[0].mxu0 %v3002
        %v3355 = vpop.f32.mrb[0].mxu0
        %v3356 = vadd.f32 %v3220, %v3355
        %v3357 = vpop.f32.mrb[0].mxu0
        %v3358 = vpop.f32.mrb[0].mxu0
        %v3359 = vpop.f32.mrb[0].mxu0
        %3360 = vdwg.mxu0
        %v3361 = vld [vmem:[#allocation5] sm:$0xc]
        %v3362 = vld [vmem:[#allocation5 + $0x8] sm:$0xc]
        %v3363 = vpack.c.bf16 %v3361, %v3361
        %v3364 = vpack.c.bf16 %v3362, %v3362
        %s3365 = scalar_lea.vmem [#allocation11], 256
        %v3366 = vld [vmem:[%s3365] sm:$0xf]
        %v3367 = vld [vmem:[%s3365 + $0x4] sm:$0xf]
        %v3368 = vld [vmem:[%s3365 + $0x8] sm:$0xf]
        %v3369 = vld [vmem:[%s3365 + $0xc] sm:$0xf]
        %v3370 = vld [vmem:[%s3365 + $0x10] sm:$0xf]
        %v3371 = vld [vmem:[%s3365 + $0x14] sm:$0xf]
        %v3372 = vld [vmem:[%s3365 + $0x18] sm:$0xf]
        %v3373 = vld [vmem:[%s3365 + $0x1c] sm:$0xf]
        %v3374 = vld [vmem:[%s3365 + $0x20] sm:$0xf]
        %v3375 = vld [vmem:[%s3365 + $0x24] sm:$0xf]
        %v3376 = vld [vmem:[%s3365 + $0x28] sm:$0xf]
        %v3377 = vld [vmem:[%s3365 + $0x2c] sm:$0xf]
        %v3378 = vld [vmem:[%s3365 + $0x30] sm:$0xf]
        %v3379 = vld [vmem:[%s3365 + $0x34] sm:$0xf]
        %v3380 = vld [vmem:[%s3365 + $0x38] sm:$0xf]
        %v3381 = vld [vmem:[%s3365 + $0x3c] sm:$0xf]
        %v3382 = vld [vmem:[%s3365 + $0x40] sm:$0xf]
        %v3383 = vld [vmem:[%s3365 + $0x44] sm:$0xf]
        %v3384 = vld [vmem:[%s3365 + $0x48] sm:$0xf]
        %v3385 = vld [vmem:[%s3365 + $0x4c] sm:$0xf]
        %v3386 = vld [vmem:[%s3365 + $0x50] sm:$0xf]
        %v3387 = vld [vmem:[%s3365 + $0x54] sm:$0xf]
        %v3388 = vld [vmem:[%s3365 + $0x58] sm:$0xf]
        %v3389 = vld [vmem:[%s3365 + $0x5c] sm:$0xf]
        %v3390 = vld [vmem:[%s3365 + $0x60] sm:$0xf]
        %v3391 = vld [vmem:[%s3365 + $0x64] sm:$0xf]
        %v3392 = vld [vmem:[%s3365 + $0x68] sm:$0xf]
        %v3393 = vld [vmem:[%s3365 + $0x6c] sm:$0xf]
        %v3394 = vld [vmem:[%s3365 + $0x70] sm:$0xf]
        %v3395 = vld [vmem:[%s3365 + $0x74] sm:$0xf]
        %v3396 = vld [vmem:[%s3365 + $0x78] sm:$0xf]
        %v3397 = vld [vmem:[%s3365 + $0x7c] sm:$0xf]
        %v3400 = vrot.slane %v3363, 1
        %v3401 = vrot.slane %v3364, 1
        %v3436 = vunpack.c.l.b16 %v3366
        %v3437 = vunpack.c.l.b16 %v3367
        %v3438 = vunpack.c.l.b16 %v3368
        %v3439 = vunpack.c.l.b16 %v3369
        %v3440 = vunpack.c.l.b16 %v3370
        %v3441 = vunpack.c.l.b16 %v3371
        %v3442 = vunpack.c.l.b16 %v3372
        %v3443 = vunpack.c.l.b16 %v3373
        %v3444 = vunpack.c.l.b16 %v3374
        %v3445 = vunpack.c.l.b16 %v3375
        %v3446 = vunpack.c.l.b16 %v3376
        %v3447 = vunpack.c.l.b16 %v3377
        %v3448 = vunpack.c.l.b16 %v3378
        %v3449 = vunpack.c.l.b16 %v3379
        %v3450 = vunpack.c.l.b16 %v3380
        %v3451 = vunpack.c.l.b16 %v3381
        %v3452 = vunpack.c.l.b16 %v3382
        %v3453 = vunpack.c.l.b16 %v3383
        %v3454 = vunpack.c.l.b16 %v3384
        %v3455 = vunpack.c.l.b16 %v3385
        %v3456 = vunpack.c.l.b16 %v3386
        %v3457 = vunpack.c.l.b16 %v3387
        %v3458 = vunpack.c.l.b16 %v3388
        %v3459 = vunpack.c.l.b16 %v3389
        %v3460 = vunpack.c.l.b16 %v3390
        %v3461 = vunpack.c.l.b16 %v3391
        %v3462 = vunpack.c.l.b16 %v3392
        %v3463 = vunpack.c.l.b16 %v3393
        %v3464 = vunpack.c.l.b16 %v3394
        %v3465 = vunpack.c.l.b16 %v3395
        %v3466 = vunpack.c.l.b16 %v3396
        %v3467 = vunpack.c.l.b16 %v3397
        %v3468 = vpack.c.b16 %v3437, %v3436
        %v3469 = vpack.c.b16 %v3439, %v3438
        %v3470 = vpack.c.b16 %v3441, %v3440
        %v3471 = vpack.c.b16 %v3443, %v3442
        %v3472 = vpack.c.b16 %v3445, %v3444
        %v3473 = vpack.c.b16 %v3447, %v3446
        %v3474 = vpack.c.b16 %v3449, %v3448
        %v3475 = vpack.c.b16 %v3451, %v3450
        %v3476 = vpack.c.b16 %v3453, %v3452
        %v3477 = vpack.c.b16 %v3455, %v3454
        %v3478 = vpack.c.b16 %v3457, %v3456
        %v3479 = vpack.c.b16 %v3459, %v3458
        %v3480 = vpack.c.b16 %v3461, %v3460
        %v3481 = vpack.c.b16 %v3463, %v3462
        %v3482 = vpack.c.b16 %v3465, %v3464
        %v3483 = vpack.c.b16 %v3467, %v3466
        %3500 = vmatprep.subr.bf16.mxu0 0
        %3501 = vmatpush1.bf16.msra.mxu0 %v3468
        %3502 = vmatprep.subr.bf16.mxu0 0
        %3503 = vmatpush1.bf16.msra.mxu0 %v3469
        %3504 = vmatprep.subr.bf16.mxu0 0
        %3505 = vmatpush1.bf16.msra.mxu0 %v3470
        %3506 = vmatprep.subr.bf16.mxu0 0
        %3507 = vmatpush1.bf16.msra.mxu0 %v3471
        %3508 = vmatprep.subr.bf16.mxu0 0
        %3509 = vmatpush1.bf16.msra.mxu0 %v3472
        %3510 = vmatprep.subr.bf16.mxu0 0
        %3511 = vmatpush1.bf16.msra.mxu0 %v3473
        %3512 = vmatprep.subr.bf16.mxu0 0
        %3513 = vmatpush1.bf16.msra.mxu0 %v3474
        %3514 = vmatprep.subr.bf16.mxu0 0
        %3515 = vmatpush1.bf16.msra.mxu0 %v3475
        %3516 = vmatprep.subr.bf16.mxu0 0
        %3517 = vmatpush1.bf16.msra.mxu0 %v3476
        %3518 = vmatprep.subr.bf16.mxu0 0
        %3519 = vmatpush1.bf16.msra.mxu0 %v3477
        %3520 = vmatprep.subr.bf16.mxu0 0
        %3521 = vmatpush1.bf16.msra.mxu0 %v3478
        %3522 = vmatprep.subr.bf16.mxu0 0
        %3523 = vmatpush1.bf16.msra.mxu0 %v3479
        %3524 = vmatprep.subr.bf16.mxu0 0
        %3525 = vmatpush1.bf16.msra.mxu0 %v3480
        %3526 = vmatprep.subr.bf16.mxu0 0
        %3527 = vmatpush1.bf16.msra.mxu0 %v3481
        %3528 = vmatprep.subr.bf16.mxu0 0
        %3529 = vmatpush1.bf16.msra.mxu0 %v3482
        %3530 = vmatprep.subr.bf16.mxu0 0
        %3531 = vmatpush1.bf16.msra.mxu0 %v3483
        %3532 = vmatprep.mubr.bf16.mxu0 %v3401
        %3533 = vmatmul.mubr.bf16.gmra.mrb[0].mxu0 %v3400
        %v3534 = vpop.f32.mrb[0].mxu0
        %v3535 = vadd.f32 0.0, %v3534
        %v3536 = vpop.f32.mrb[0].mxu0
        %v3537 = vpop.f32.mrb[0].mxu0
        %v3538 = vpop.f32.mrb[0].mxu0
        %3539 = vdwg.mxu0
        %v3540 = vadd.f32 %v3356, %v3535
        %v3541 = vld [vmem:[#allocation5] sm:$0x18]
        %v3542 = vld [vmem:[#allocation5 + $0x8] sm:$0x18]
        %v3543 = vpack.c.bf16 %v3541, %v3541
        %v3544 = vpack.c.bf16 %v3542, %v3542
        %s3545 = scalar_lea.vmem [#allocation11], 384
        %v3546 = vld [vmem:[%s3545] sm:$0xf]
        %v3547 = vld [vmem:[%s3545 + $0x4] sm:$0xf]
        %v3548 = vld [vmem:[%s3545 + $0x8] sm:$0xf]
        %v3549 = vld [vmem:[%s3545 + $0xc] sm:$0xf]
        %v3550 = vld [vmem:[%s3545 + $0x10] sm:$0xf]
        %v3551 = vld [vmem:[%s3545 + $0x14] sm:$0xf]
        %v3552 = vld [vmem:[%s3545 + $0x18] sm:$0xf]
        %v3553 = vld [vmem:[%s3545 + $0x1c] sm:$0xf]
        %v3554 = vld [vmem:[%s3545 + $0x20] sm:$0xf]
        %v3555 = vld [vmem:[%s3545 + $0x24] sm:$0xf]
        %v3556 = vld [vmem:[%s3545 + $0x28] sm:$0xf]
        %v3557 = vld [vmem:[%s3545 + $0x2c] sm:$0xf]
        %v3558 = vld [vmem:[%s3545 + $0x30] sm:$0xf]
        %v3559 = vld [vmem:[%s3545 + $0x34] sm:$0xf]
        %v3560 = vld [vmem:[%s3545 + $0x38] sm:$0xf]
        %v3561 = vld [vmem:[%s3545 + $0x3c] sm:$0xf]
        %v3562 = vld [vmem:[%s3545 + $0x40] sm:$0xf]
        %v3563 = vld [vmem:[%s3545 + $0x44] sm:$0xf]
        %v3564 = vld [vmem:[%s3545 + $0x48] sm:$0xf]
        %v3565 = vld [vmem:[%s3545 + $0x4c] sm:$0xf]
        %v3566 = vld [vmem:[%s3545 + $0x50] sm:$0xf]
        %v3567 = vld [vmem:[%s3545 + $0x54] sm:$0xf]
        %v3568 = vld [vmem:[%s3545 + $0x58] sm:$0xf]
        %v3569 = vld [vmem:[%s3545 + $0x5c] sm:$0xf]
        %v3570 = vld [vmem:[%s3545 + $0x60] sm:$0xf]
        %v3571 = vld [vmem:[%s3545 + $0x64] sm:$0xf]
        %v3572 = vld [vmem:[%s3545 + $0x68] sm:$0xf]
        %v3573 = vld [vmem:[%s3545 + $0x6c] sm:$0xf]
        %v3574 = vld [vmem:[%s3545 + $0x70] sm:$0xf]
        %v3575 = vld [vmem:[%s3545 + $0x74] sm:$0xf]
        %v3576 = vld [vmem:[%s3545 + $0x78] sm:$0xf]
        %v3577 = vld [vmem:[%s3545 + $0x7c] sm:$0xf]
        %v3579 = vshrl.u32 %v3543, 16
        %v3581 = vrot.slane %v3579, 1
        %v3582 = vshll.u32 %v3543, 16
        %v3584 = vrot.slane %v3582, 2
        %v3585 = vor.u32 %v3581, %v3584
        %v3587 = vshrl.u32 %v3544, 16
        %v3589 = vrot.slane %v3587, 1
        %v3590 = vshll.u32 %v3544, 16
        %v3592 = vrot.slane %v3590, 2
        %v3593 = vor.u32 %v3589, %v3592
        %v3628 = vunpack.c.l.b16 %v3546
        %v3629 = vunpack.c.l.b16 %v3547
        %v3630 = vunpack.c.l.b16 %v3548
        %v3631 = vunpack.c.l.b16 %v3549
        %v3632 = vunpack.c.l.b16 %v3550
        %v3633 = vunpack.c.l.b16 %v3551
        %v3634 = vunpack.c.l.b16 %v3552
        %v3635 = vunpack.c.l.b16 %v3553
        %v3636 = vunpack.c.l.b16 %v3554
        %v3637 = vunpack.c.l.b16 %v3555
        %v3638 = vunpack.c.l.b16 %v3556
        %v3639 = vunpack.c.l.b16 %v3557
        %v3640 = vunpack.c.l.b16 %v3558
        %v3641 = vunpack.c.l.b16 %v3559
        %v3642 = vunpack.c.l.b16 %v3560
        %v3643 = vunpack.c.l.b16 %v3561
        %v3644 = vunpack.c.l.b16 %v3562
        %v3645 = vunpack.c.l.b16 %v3563
        %v3646 = vunpack.c.l.b16 %v3564
        %v3647 = vunpack.c.l.b16 %v3565
        %v3648 = vunpack.c.l.b16 %v3566
        %v3649 = vunpack.c.l.b16 %v3567
        %v3650 = vunpack.c.l.b16 %v3568
        %v3651 = vunpack.c.l.b16 %v3569
        %v3652 = vunpack.c.l.b16 %v3570
        %v3653 = vunpack.c.l.b16 %v3571
        %v3654 = vunpack.c.l.b16 %v3572
        %v3655 = vunpack.c.l.b16 %v3573
        %v3656 = vunpack.c.l.b16 %v3574
        %v3657 = vunpack.c.l.b16 %v3575
        %v3658 = vunpack.c.l.b16 %v3576
        %v3659 = vunpack.c.l.b16 %v3577
        %v3660 = vpack.c.b16 %v3629, %v3628
        %v3661 = vpack.c.b16 %v3631, %v3630
        %v3662 = vpack.c.b16 %v3633, %v3632
        %v3663 = vpack.c.b16 %v3635, %v3634
        %v3664 = vpack.c.b16 %v3637, %v3636
        %v3665 = vpack.c.b16 %v3639, %v3638
        %v3666 = vpack.c.b16 %v3641, %v3640
        %v3667 = vpack.c.b16 %v3643, %v3642
        %v3668 = vpack.c.b16 %v3645, %v3644
        %v3669 = vpack.c.b16 %v3647, %v3646
        %v3670 = vpack.c.b16 %v3649, %v3648
        %v3671 = vpack.c.b16 %v3651, %v3650
        %v3672 = vpack.c.b16 %v3653, %v3652
        %v3673 = vpack.c.b16 %v3655, %v3654
        %v3674 = vpack.c.b16 %v3657, %v3656
        %v3675 = vpack.c.b16 %v3659, %v3658
        %3692 = vmatprep.subr.bf16.mxu0 0
        %3693 = vmatpush1.bf16.msra.mxu0 %v3660
        %3694 = vmatprep.subr.bf16.mxu0 0
        %3695 = vmatpush1.bf16.msra.mxu0 %v3661
        %3696 = vmatprep.subr.bf16.mxu0 0
        %3697 = vmatpush1.bf16.msra.mxu0 %v3662
        %3698 = vmatprep.subr.bf16.mxu0 0
        %3699 = vmatpush1.bf16.msra.mxu0 %v3663
        %3700 = vmatprep.subr.bf16.mxu0 0
        %3701 = vmatpush1.bf16.msra.mxu0 %v3664
        %3702 = vmatprep.subr.bf16.mxu0 0
        %3703 = vmatpush1.bf16.msra.mxu0 %v3665
        %3704 = vmatprep.subr.bf16.mxu0 0
        %3705 = vmatpush1.bf16.msra.mxu0 %v3666
        %3706 = vmatprep.subr.bf16.mxu0 0
        %3707 = vmatpush1.bf16.msra.mxu0 %v3667
        %3708 = vmatprep.subr.bf16.mxu0 0
        %3709 = vmatpush1.bf16.msra.mxu0 %v3668
        %3710 = vmatprep.subr.bf16.mxu0 0
        %3711 = vmatpush1.bf16.msra.mxu0 %v3669
        %3712 = vmatprep.subr.bf16.mxu0 0
        %3713 = vmatpush1.bf16.msra.mxu0 %v3670
        %3714 = vmatprep.subr.bf16.mxu0 0
        %3715 = vmatpush1.bf16.msra.mxu0 %v3671
        %3716 = vmatprep.subr.bf16.mxu0 0
        %3717 = vmatpush1.bf16.msra.mxu0 %v3672
        %3718 = vmatprep.subr.bf16.mxu0 0
        %3719 = vmatpush1.bf16.msra.mxu0 %v3673
        %3720 = vmatprep.subr.bf16.mxu0 0
        %3721 = vmatpush1.bf16.msra.mxu0 %v3674
        %3722 = vmatprep.subr.bf16.mxu0 0
        %3723 = vmatpush1.bf16.msra.mxu0 %v3675
        %3724 = vmatprep.mubr.bf16.mxu0 %v3593
        %3725 = vmatmul.mubr.bf16.gmra.mrb[0].mxu0 %v3585
        %v3726 = vpop.f32.mrb[0].mxu0
        %v3727 = vadd.f32 0.0, %v3726
        %v3728 = vpop.f32.mrb[0].mxu0
        %v3729 = vpop.f32.mrb[0].mxu0
        %v3730 = vpop.f32.mrb[0].mxu0
        %3731 = vdwg.mxu0
        %v3732 = vadd.f32 %v3540, %v3727
        %3733 = vst [vmem:[%s477] sm:$0x3] %v3732
        %s3734 = sand.u32 %s315, 1
        %s3735 = scalar_lea.sflag [#allocation8], %s3734
        %s3736 = sand.u32 %s315, 1
        %s3737 = smul.addr %s3736, 2
        %s3738 = scalar_lea.vmem [#allocation12], %s3737
        // Predicated region
        $region85: #{forward.1} parent=71 // pred_check
          %p3739 = pneg %p325
        $region86: #{forward.1} parent=71 // pred_check_branch
          %3741 = sbr.rel (%p3739) target = $region88
        $region87: #{forward.1} parent=71 // pred_region
          %s3743 = ssub.s32 32, 32
          %3744 = vsyncadd %s3735, %s3743
          %s3745 = smul.addr %s29, 32
          %s3746 = scalar_lea.hbm %s13, %s3745
          %s3748 = sshll.u32 %s3738, 4
          %s3749 = int_to_ptr.vmem [resolvable:$true] %s3748
          %3751 = dma.vmem_to_hbm [thread:$0]  %s3749, 32, %s3746, %s3735
        $region88: #{forward.1} parent=71 // pred_fallthru
          _
      $region72: #{forward.1} parent=5 // pred_fallthru
        _
      %p3752 = scmp.le.s32.totalorder 2, %s24
      // Predicated region
      $region89: #{forward.1} parent=5 // pred_check
        %p3753 = pneg %p3752
      $region90: #{forward.1} parent=5 // pred_check_branch
        %3755 = sbr.rel (%p3753) target = $region92
      $region91: #{forward.1} parent=5 // pred_region
        %s3756 = ssub.s32 %s24, 2
        // Predicated region
        $region93: #{forward.1} parent=91 // pred_check
          %p3757 = pneg %p331
        $region94: #{forward.1} parent=91 // pred_check_branch
          %3759 = sbr.rel (%p3757) target = $region96
        $region95: #{forward.1} parent=91 // pred_region
          %s3760 = sand.u32 %s316, 1
          %s3761 = scalar_lea.sflag [#allocation8], %s3760
          %s3762 = sand.u32 %s316, 1
          %s3763 = smul.addr %s3762, 2
          %s3764 = scalar_lea.vmem [#allocation12], %s3763
          %3765 = dma.done %s3761, 32
        $region96: #{forward.1} parent=91 // pred_fallthru
          _
      $region92: #{forward.1} parent=5 // pred_fallthru
        _
    $region6: #{forward.1} parent=1 // loop_footer
      %s28 = sadd.s32 1, %s24
    $region7: #{forward.1} parent=1 // loop_footer_branch
      %23 = sbr.rel target = $region3
    $region8: #{forward.1} parent=1 // loop_exit
      _
    %3766 = vsyncpa [#allocation7], 1
    %s3767 = scalar_lea.sflag [#allocation7], 1
    %3768 = vsyncpa %s3767, 1
    %3769 = vsyncpa [#allocation10], 1
    %3770 = vsyncpa [#allocation8], 1
    %s3771 = scalar_lea.sflag [#allocation8], 1
    %3772 = vsyncpa %s3771, 1

</llo_original>
